<compile_context>
chip_gen: v7x
topology: tpu7x:2x2x1
jax: 0.10.0
libtpu: 0.0.40
codegen_flags: <defaults>
</compile_context>

<pallas_src>
import functools

import jax
import jax.numpy as jnp
import numpy as np
from jax import lax
from jax.experimental import pallas as pl
from jax.experimental.pallas import tpu as pltpu


# ---------------------------------------------------------------------------
# Kernel 1: 3-D conv as a sum of banded GEMMs over the (kd, kh) taps
#           (kw taps folded into the band) + bias + LeakyReLU(0.2)
#           + global-average-pool partial sums.
#
# Layouts (all lane-dense in the last dim):
#   x_ref    : (1, Dp, Hp, Wp*Cin)        padded input, channel-last, bf16
#   wb_ref   : (kd*kh, Wp*Cin, Wo*Cout)   banded weights, bf16
#   bias_ref : (1, Wo*Cout)               conv bias tiled over Wo, f32
#   act_ref  : (1, td*Ho, Wo*Cout)        conv activations, bf16
#   pool_ref : (1, 1, 1, Wo*Cout)         raw pool sums for this depth tile
# ---------------------------------------------------------------------------
def _conv_band_kernel(x_ref, wb_ref, bias_ref, act_ref, pool_ref, *,
                      td, Ho, wp_cin, wo_cout, kd, kh, stride):
    # First padded-depth row used by this depth tile (tap a == 0).
    d0 = pl.multiple_of(pl.program_id(1) * (td * stride), td * stride)

    acc = jnp.zeros((td * Ho, wo_cout), jnp.float32)
    for a in range(kd):                              # depth taps
        for b in range(kh):                          # height taps
            if stride == 1:
                slab = x_ref[0, pl.ds(d0 + a, td), pl.ds(b, Ho), :]
            else:
                # TODO(synk): pre-de-interleave strided rows in the wrapper so
                # the kernel only ever sees contiguous slabs (review item);
                # this branch is unexercised by the stride=1 test below.
                slab = x_ref[0, pl.ds(d0 + a, td, stride=stride),
                             pl.ds(b, Ho, stride=stride), :]
            slab = slab.reshape(td * Ho, wp_cin)     # merge leading dims only
            acc += jnp.dot(slab, wb_ref[a * kh + b],
                           preferred_element_type=jnp.float32)

    acc = acc + bias_ref[...]                        # (1, Wo*Cout) broadcast
    act = jnp.where(acc >= 0.0, acc, 0.2 * acc)      # LeakyReLU(0.2), f32
    act_ref[0] = act.astype(act_ref.dtype)           # lane-dense bf16 store
    # Raw pool sums in f32 (pre-cast); 1/M applied once outside the kernel.
    pool_ref[0, 0] = jnp.sum(act, axis=0, keepdims=True)


# ---------------------------------------------------------------------------
# Kernel 2: SE epilogue — per-channel rescale fused with the channel-major
# relayout.  The transpose is done on the MXU (identity-dot against the
# transposed operand), so every store is a lane-dense (Cout, tile_m) row and
# no Mosaic shape_cast / strided store is needed.
#   act_ref   : (1, tile_m, Cout)  bf16   (tile_m = multiple of 128 or full M)
#   scale_ref : (1, 1, Cout)       f32    SE scale for this batch
#   out_ref   : (1, Cout, tile_m)  f32
# ---------------------------------------------------------------------------
def _se_scale_transpose_kernel(act_ref, scale_ref, out_ref, *, cout):
    act = act_ref[0].astype(jnp.float32) * scale_ref[0]          # (tile_m, Cout)
    row = lax.broadcasted_iota(jnp.int32, (cout, cout), 0)
    col = lax.broadcasted_iota(jnp.int32, (cout, cout), 1)
    eye = (row == col).astype(jnp.float32)
    # eye @ act^T  ->  (Cout, tile_m); exact (one nonzero per contraction).
    out_ref[0] = lax.dot_general(eye, act, (((1,), (1,)), ((), ())),
                                 preferred_element_type=jnp.float32)


def _vmem_capacity_bytes():
    try:
        return int(pltpu.get_tpu_info().vmem_capacity_bytes)
    except Exception:                                # pragma: no cover
        return 64 << 20                              # conservative (v7x-sized)


# ---------------------------------------------------------------------------
# Wrapper
# ---------------------------------------------------------------------------
def conv3d_for_d(x, params, *, stride=1, padding=1, td=None):
    """x: (B, Cin, D, H, W) float32.  Returns (B, Cout, Do, Ho, Wo) float32."""
    conv_w, conv_b, fc1_w, fc1_b, fc2_w, fc2_b = params
    B, Cin, D, H, W = x.shape
    Cout, _, kd, kh, kw = conv_w.shape
    Do = (D + 2 * padding - kd) // stride + 1
    Ho = (H + 2 * padding - kh) // stride + 1
    Wo = (W + 2 * padding - kw) // stride + 1
    Dp, Hp, Wp = D + 2 * padding, H + 2 * padding, W + 2 * padding
    M = Do * Ho * Wo
    wp_cin = Wp * Cin
    wo_cout = Wo * Cout

    # --- depth tile: bound the vreg accumulator (<=128 rows ~ 32 vregs at
    #     wo_cout=256), keep act blocks sublane-aligned, and guarantee >= 2
    #     parallel grid steps when B == 1 (v7x megacore).
    if td is None:
        td = Do
        for t in sorted((t for t in range(1, Do + 1) if Do % t == 0),
                        reverse=True):
            rows = t * Ho
            if rows > 128:
                continue
            if rows % 8 and t != Do:
                continue
            if B < 2 and Do // t < 2 < Do:
                continue
            td = t
            break
    assert Do % td == 0, "depth tile must divide the output depth"
    n_dt = Do // td

    # --- glue: channel-last + zero pad + bf16 (one cheap pass over small x) --
    xcl = jnp.transpose(x, (0, 2, 3, 4, 1))                    # (B,D,H,W,Cin)
    xp = jnp.pad(xcl, ((0, 0), (padding, padding), (padding, padding),
                       (padding, padding), (0, 0)))
    xp = xp.reshape(B, Dp, Hp, wp_cin).astype(jnp.bfloat16)

    # --- banded weights, vectorized (review: no .at[].set loop) -------------
    # wb[a,b,p,i,o,q] = w_t[a,b,c,i,q] where p == o*stride + c, else 0.
    w_t = jnp.transpose(conv_w, (2, 3, 4, 1, 0)).astype(jnp.float32)
    c_ix = jnp.arange(kw)[:, None, None]
    p_ix = jnp.arange(Wp)[None, :, None]
    o_ix = jnp.arange(Wo)[None, None, :]
    sel = (p_ix == o_ix * stride + c_ix).astype(jnp.float32)   # (kw, Wp, Wo)
    wb = jnp.einsum("cpo,abciq->abpioq", sel, w_t)
    wb = wb.reshape(kd * kh, wp_cin, wo_cout).astype(jnp.bfloat16)
    # TODO(synk): at production W, tile Wo (extra grid axis) or switch to
    # per-kw-tap dots — the replicated band grows ~Wp*Wo (review item).
    bias_row = jnp.tile(conv_b.astype(jnp.float32), Wo).reshape(1, wo_cout)

    # --- chip-aware VMEM limit ------------------------------------------------
    vmem_cap = _vmem_capacity_bytes()
    cap = (96 << 20) if vmem_cap > (80 << 20) else (40 << 20)
    est = (2 * Dp * Hp * wp_cin * 2                  # x block (dbuf, bf16)
           + 2 * kd * kh * wp_cin * wo_cout * 2      # banded weights (bf16)
           + 2 * wo_cout * 4                         # bias
           + 2 * td * Ho * wo_cout * 2               # act block (bf16)
           + 2 * wo_cout * 4                         # pool block
           + td * Ho * wo_cout * 4)                  # f32 accumulator headroom
    vmem_limit = int(min(max(4 * est, 8 << 20), cap))

    # TODO(synk): for production D/H/Cin on v7x, window x along depth with a
    # halo block (pl.Element / manual DMA) and single-buffer the grid-constant
    # wb/bias via pipeline_mode=pl.Buffered(1); full-volume x blocks are fine
    # at these test shapes.  (v5e: padding wp_cin to 128 is also deferred.)
    conv_act, pool_raw = pl.pallas_call(
        functools.partial(_conv_band_kernel, td=td, Ho=Ho, wp_cin=wp_cin,
                          wo_cout=wo_cout, kd=kd, kh=kh, stride=stride),
        out_shape=(jax.ShapeDtypeStruct((B, Do * Ho, wo_cout), jnp.bfloat16),
                   jax.ShapeDtypeStruct((B, n_dt, 1, wo_cout), jnp.float32)),
        grid=(B, n_dt),
        in_specs=[pl.BlockSpec((1, Dp, Hp, wp_cin),
                               lambda bi, di: (bi, 0, 0, 0)),  # const over di
                  pl.BlockSpec((kd * kh, wp_cin, wo_cout),
                               lambda bi, di: (0, 0, 0)),
                  pl.BlockSpec((1, wo_cout), lambda bi, di: (0, 0))],
        out_specs=(pl.BlockSpec((1, td * Ho, wo_cout),
                                lambda bi, di: (bi, di, 0)),
                   pl.BlockSpec((1, 1, 1, wo_cout),
                                lambda bi, di: (bi, di, 0, 0))),
        compiler_params=pltpu.CompilerParams(
            dimension_semantics=("parallel", "parallel"),
            vmem_limit_bytes=vmem_limit),
    )(xp, wb, bias_row)

    # --- SE squeeze + excitation: tiny MLP, plain JAX (negligible work) ------
    pooled = (pool_raw.reshape(B, n_dt, wo_cout).sum(axis=1)
              .reshape(B, Wo, Cout).sum(axis=1)) * (1.0 / M)
    h = jnp.maximum(pooled @ fc1_w.T + fc1_b, 0.0)
    scale = jax.nn.sigmoid(h @ fc2_w.T + fc2_b)                 # (B, Cout) f32

    # --- Pallas SE epilogue: fused channel rescale + lane-dense relayout -----
    # (m, wo*Cout + c) flattens to ((m*Wo + wo), c), so this reshape is a pure
    # re-tiling of the bf16 intermediate; the heavy f32 result is then written
    # lane-dense (Cout, tile_m) by the kernel, and the final NCDHW view is a
    # plain reshape of the channel-major output.
    act_mc = conv_act.reshape(B, M, Cout)
    scale_in = scale.reshape(B, 1, Cout).astype(jnp.float32)

    tile_m = M
    if M > 4096:
        for t in range(4096, 127, -128):
            if M % t == 0:
                tile_m = t
                break
    n_mt = M // tile_m

    y_cm = pl.pallas_call(
        functools.partial(_se_scale_transpose_kernel, cout=Cout),
        out_shape=jax.ShapeDtypeStruct((B, Cout, M), jnp.float32),
        grid=(B, n_mt),
        in_specs=[pl.BlockSpec((1, tile_m, Cout), lambda bi, mi: (bi, mi, 0)),
                  pl.BlockSpec((1, 1, Cout), lambda bi, mi: (bi, 0, 0))],
        out_specs=pl.BlockSpec((1, Cout, tile_m), lambda bi, mi: (bi, 0, mi)),
        compiler_params=pltpu.CompilerParams(
            dimension_semantics=("parallel", "parallel")),
    )(act_mc, scale_in)

    return y_cm.reshape(B, Cout, Do, Ho, Wo)


# ---------------------------------------------------------------------------
# Pure-JAX reference (same math as the PyTorch module) for a sanity check.
# ---------------------------------------------------------------------------
def reference(x, params, *, stride=1, padding=1):
    conv_w, conv_b, fc1_w, fc1_b, fc2_w, fc2_b = params
    Cout = conv_w.shape[0]
    out = lax.conv_general_dilated(
        x, conv_w, window_strides=(stride,) * 3,
        padding=[(padding, padding)] * 3,
        dimension_numbers=("NCDHW", "OIDHW", "NCDHW"))
    out = out + conv_b.reshape(1, Cout, 1, 1, 1)
    out = jnp.where(out >= 0.0, out, 0.2 * out)
    pooled = out.mean(axis=(2, 3, 4))
    h = jnp.maximum(pooled @ fc1_w.T + fc1_b, 0.0)
    s = jax.nn.sigmoid(h @ fc2_w.T + fc2_b)
    return out * s[:, :, None, None, None]


if __name__ == "__main__":
    # Small shapes consistent with the module: SE needs out_channels >= 16.
    B, Cin, D, H, W = 2, 4, 8, 8, 8
    Cout, k, stride, padding = 32, 3, 1, 1
    Cr = Cout // 16                              # SE reduction

    key = jax.random.PRNGKey(0)
    kx, k1, k2, k3, k4, k5, k6 = jax.random.split(key, 7)

    x = jax.random.normal(kx, (B, Cin, D, H, W), jnp.float32)

    # Deterministic parameter init (PyTorch-style uniform bounds).
    fan_conv = Cin * k * k * k
    bc = 1.0 / np.sqrt(fan_conv)
    conv_w = jax.random.uniform(k1, (Cout, Cin, k, k, k), jnp.float32, -bc, bc)
    conv_b = jax.random.uniform(k2, (Cout,), jnp.float32, -bc, bc)
    b1 = 1.0 / np.sqrt(Cout)
    fc1_w = jax.random.uniform(k3, (Cr, Cout), jnp.float32, -b1, b1)
    fc1_b = jax.random.uniform(k4, (Cr,), jnp.float32, -b1, b1)
    b2 = 1.0 / np.sqrt(Cr)
    fc2_w = jax.random.uniform(k5, (Cout, Cr), jnp.float32, -b2, b2)
    fc2_b = jax.random.uniform(k6, (Cout,), jnp.float32, -b2, b2)

    params = (conv_w, conv_b, fc1_w, fc1_b, fc2_w, fc2_b)

    fn = jax.jit(functools.partial(conv3d_for_d, stride=stride,
                                   padding=padding))
    out = jax.block_until_ready(fn(x, params))

    ref = jax.block_until_ready(reference(x, params, stride=stride,
                                          padding=padding))
    np.testing.assert_allclose(np.asarray(out), np.asarray(ref),
                               rtol=3e-2, atol=3e-2)

    print("KERNEL_OK")
</pallas_src>

<mosaic_0001>
module attributes {stable_mosaic.version = 11 : i64} {
  func.func @_conv_band_kernel(%arg0: i32, %arg1: i32, %arg2: memref<1x10x10x40xbf16, #tpu.memory_space<vmem>>, %arg3: memref<9x40x256xbf16, #tpu.memory_space<vmem>>, %arg4: memref<1x256xf32, #tpu.memory_space<vmem>>, %arg5: memref<1x64x256xbf16, #tpu.memory_space<vmem>>, %arg6: memref<1x1x1x256xf32, #tpu.memory_space<vmem>>) attributes {dimension_semantics = [#tpu.dimension_semantics<parallel>, #tpu.dimension_semantics<parallel>], iteration_bounds = array<i64: 2, 1>, scalar_prefetch = 0 : i64, scratch_operands = 0 : i64, tpu.core_type = #tpu.core_type<tc>, window_params = [{transform_indices = @transform_0, window_bounds = array<i64: 1, 10, 10, 40>}, {pipeline_mode = #tpu.pipeline_mode<synchronous>, transform_indices = @transform_1, window_bounds = array<i64: 9, 40, 256>}, {pipeline_mode = #tpu.pipeline_mode<synchronous>, transform_indices = @transform_2, window_bounds = array<i64: 1, 256>}, {transform_indices = @transform_3, window_bounds = array<i64: 1, 64, 256>}, {transform_indices = @transform_4, window_bounds = array<i64: 1, 1, 1, 256>}]} {
    %c8_i32 = arith.constant 8 : i32
    %0 = arith.muli %arg1, %c8_i32 : i32
    %1 = tpu.assume_multiple %0, 8 : i32
    %cst = arith.constant 0.000000e+00 : f32
    %2 = vector.broadcast %cst : f32 to vector<64x256xf32>
    %c0_i32 = arith.constant 0 : i32
    %3 = arith.addi %1, %c0_i32 : i32
    %c0 = arith.constant 0 : index
    %4 = arith.index_cast %3 : i32 to index
    %c0_0 = arith.constant 0 : index
    %c0_1 = arith.constant 0 : index
    %5 = vector.load %arg2[%c0, %4, %c0_0, %c0_1] : memref<1x10x10x40xbf16, #tpu.memory_space<vmem>>, vector<1x8x8x40xbf16>
    %6 = vector.shape_cast %5 : vector<1x8x8x40xbf16> to vector<8x8x40xbf16>
    %7 = vector.shape_cast %6 : vector<8x8x40xbf16> to vector<64x40xbf16>
    %c0_2 = arith.constant 0 : index
    %c0_3 = arith.constant 0 : index
    %c0_4 = arith.constant 0 : index
    %8 = vector.load %arg3[%c0_2, %c0_3, %c0_4] : memref<9x40x256xbf16, #tpu.memory_space<vmem>>, vector<1x40x256xbf16>
    %9 = vector.shape_cast %8 : vector<1x40x256xbf16> to vector<40x256xbf16>
    %cst_5 = arith.constant dense<0.000000e+00> : vector<64x256xf32>
    %10 = tpu.matmul %7, %9, %cst_5 {dimension_numbers = #tpu.dot_dimension_numbers<[1], [0], [0], [1], [0, 0, 1, 1], [], []>} : vector<64x40xbf16>, vector<40x256xbf16>, vector<64x256xf32> -> vector<64x256xf32>
    %11 = arith.addf %2, %10 : vector<64x256xf32>
    %c0_i32_6 = arith.constant 0 : i32
    %12 = arith.addi %1, %c0_i32_6 : i32
    %c0_7 = arith.constant 0 : index
    %13 = arith.index_cast %12 : i32 to index
    %c1 = arith.constant 1 : index
    %c0_8 = arith.constant 0 : index
    %14 = vector.load %arg2[%c0_7, %13, %c1, %c0_8] : memref<1x10x10x40xbf16, #tpu.memory_space<vmem>>, vector<1x8x8x40xbf16>
    %15 = vector.shape_cast %14 : vector<1x8x8x40xbf16> to vector<8x8x40xbf16>
    %16 = vector.shape_cast %15 : vector<8x8x40xbf16> to vector<64x40xbf16>
    %c1_9 = arith.constant 1 : index
    %c0_10 = arith.constant 0 : index
    %c0_11 = arith.constant 0 : index
    %17 = vector.load %arg3[%c1_9, %c0_10, %c0_11] : memref<9x40x256xbf16, #tpu.memory_space<vmem>>, vector<1x40x256xbf16>
    %18 = vector.shape_cast %17 : vector<1x40x256xbf16> to vector<40x256xbf16>
    %cst_12 = arith.constant dense<0.000000e+00> : vector<64x256xf32>
    %19 = tpu.matmul %16, %18, %cst_12 {dimension_numbers = #tpu.dot_dimension_numbers<[1], [0], [0], [1], [0, 0, 1, 1], [], []>} : vector<64x40xbf16>, vector<40x256xbf16>, vector<64x256xf32> -> vector<64x256xf32>
    %20 = arith.addf %11, %19 : vector<64x256xf32>
    %c0_i32_13 = arith.constant 0 : i32
    %21 = arith.addi %1, %c0_i32_13 : i32
    %c0_14 = arith.constant 0 : index
    %22 = arith.index_cast %21 : i32 to index
    %c2 = arith.constant 2 : index
    %c0_15 = arith.constant 0 : index
    %23 = vector.load %arg2[%c0_14, %22, %c2, %c0_15] : memref<1x10x10x40xbf16, #tpu.memory_space<vmem>>, vector<1x8x8x40xbf16>
    %24 = vector.shape_cast %23 : vector<1x8x8x40xbf16> to vector<8x8x40xbf16>
    %25 = vector.shape_cast %24 : vector<8x8x40xbf16> to vector<64x40xbf16>
    %c2_16 = arith.constant 2 : index
    %c0_17 = arith.constant 0 : index
    %c0_18 = arith.constant 0 : index
    %26 = vector.load %arg3[%c2_16, %c0_17, %c0_18] : memref<9x40x256xbf16, #tpu.memory_space<vmem>>, vector<1x40x256xbf16>
    %27 = vector.shape_cast %26 : vector<1x40x256xbf16> to vector<40x256xbf16>
    %cst_19 = arith.constant dense<0.000000e+00> : vector<64x256xf32>
    %28 = tpu.matmul %25, %27, %cst_19 {dimension_numbers = #tpu.dot_dimension_numbers<[1], [0], [0], [1], [0, 0, 1, 1], [], []>} : vector<64x40xbf16>, vector<40x256xbf16>, vector<64x256xf32> -> vector<64x256xf32>
    %29 = arith.addf %20, %28 : vector<64x256xf32>
    %c1_i32 = arith.constant 1 : i32
    %30 = arith.addi %1, %c1_i32 : i32
    %c0_20 = arith.constant 0 : index
    %31 = arith.index_cast %30 : i32 to index
    %c0_21 = arith.constant 0 : index
    %c0_22 = arith.constant 0 : index
    %32 = vector.load %arg2[%c0_20, %31, %c0_21, %c0_22] : memref<1x10x10x40xbf16, #tpu.memory_space<vmem>>, vector<1x8x8x40xbf16>
    %33 = vector.shape_cast %32 : vector<1x8x8x40xbf16> to vector<8x8x40xbf16>
    %34 = vector.shape_cast %33 : vector<8x8x40xbf16> to vector<64x40xbf16>
    %c3 = arith.constant 3 : index
    %c0_23 = arith.constant 0 : index
    %c0_24 = arith.constant 0 : index
    %35 = vector.load %arg3[%c3, %c0_23, %c0_24] : memref<9x40x256xbf16, #tpu.memory_space<vmem>>, vector<1x40x256xbf16>
    %36 = vector.shape_cast %35 : vector<1x40x256xbf16> to vector<40x256xbf16>
    %cst_25 = arith.constant dense<0.000000e+00> : vector<64x256xf32>
    %37 = tpu.matmul %34, %36, %cst_25 {dimension_numbers = #tpu.dot_dimension_numbers<[1], [0], [0], [1], [0, 0, 1, 1], [], []>} : vector<64x40xbf16>, vector<40x256xbf16>, vector<64x256xf32> -> vector<64x256xf32>
    %38 = arith.addf %29, %37 : vector<64x256xf32>
    %c1_i32_26 = arith.constant 1 : i32
    %39 = arith.addi %1, %c1_i32_26 : i32
    %c0_27 = arith.constant 0 : index
    %40 = arith.index_cast %39 : i32 to index
    %c1_28 = arith.constant 1 : index
    %c0_29 = arith.constant 0 : index
    %41 = vector.load %arg2[%c0_27, %40, %c1_28, %c0_29] : memref<1x10x10x40xbf16, #tpu.memory_space<vmem>>, vector<1x8x8x40xbf16>
    %42 = vector.shape_cast %41 : vector<1x8x8x40xbf16> to vector<8x8x40xbf16>
    %43 = vector.shape_cast %42 : vector<8x8x40xbf16> to vector<64x40xbf16>
    %c4 = arith.constant 4 : index
    %c0_30 = arith.constant 0 : index
    %c0_31 = arith.constant 0 : index
    %44 = vector.load %arg3[%c4, %c0_30, %c0_31] : memref<9x40x256xbf16, #tpu.memory_space<vmem>>, vector<1x40x256xbf16>
    %45 = vector.shape_cast %44 : vector<1x40x256xbf16> to vector<40x256xbf16>
    %cst_32 = arith.constant dense<0.000000e+00> : vector<64x256xf32>
    %46 = tpu.matmul %43, %45, %cst_32 {dimension_numbers = #tpu.dot_dimension_numbers<[1], [0], [0], [1], [0, 0, 1, 1], [], []>} : vector<64x40xbf16>, vector<40x256xbf16>, vector<64x256xf32> -> vector<64x256xf32>
    %47 = arith.addf %38, %46 : vector<64x256xf32>
    %c1_i32_33 = arith.constant 1 : i32
    %48 = arith.addi %1, %c1_i32_33 : i32
    %c0_34 = arith.constant 0 : index
    %49 = arith.index_cast %48 : i32 to index
    %c2_35 = arith.constant 2 : index
    %c0_36 = arith.constant 0 : index
    %50 = vector.load %arg2[%c0_34, %49, %c2_35, %c0_36] : memref<1x10x10x40xbf16, #tpu.memory_space<vmem>>, vector<1x8x8x40xbf16>
    %51 = vector.shape_cast %50 : vector<1x8x8x40xbf16> to vector<8x8x40xbf16>
    %52 = vector.shape_cast %51 : vector<8x8x40xbf16> to vector<64x40xbf16>
    %c5 = arith.constant 5 : index
    %c0_37 = arith.constant 0 : index
    %c0_38 = arith.constant 0 : index
    %53 = vector.load %arg3[%c5, %c0_37, %c0_38] : memref<9x40x256xbf16, #tpu.memory_space<vmem>>, vector<1x40x256xbf16>
    %54 = vector.shape_cast %53 : vector<1x40x256xbf16> to vector<40x256xbf16>
    %cst_39 = arith.constant dense<0.000000e+00> : vector<64x256xf32>
    %55 = tpu.matmul %52, %54, %cst_39 {dimension_numbers = #tpu.dot_dimension_numbers<[1], [0], [0], [1], [0, 0, 1, 1], [], []>} : vector<64x40xbf16>, vector<40x256xbf16>, vector<64x256xf32> -> vector<64x256xf32>
    %56 = arith.addf %47, %55 : vector<64x256xf32>
    %c2_i32 = arith.constant 2 : i32
    %57 = arith.addi %1, %c2_i32 : i32
    %c0_40 = arith.constant 0 : index
    %58 = arith.index_cast %57 : i32 to index
    %c0_41 = arith.constant 0 : index
    %c0_42 = arith.constant 0 : index
    %59 = vector.load %arg2[%c0_40, %58, %c0_41, %c0_42] : memref<1x10x10x40xbf16, #tpu.memory_space<vmem>>, vector<1x8x8x40xbf16>
    %60 = vector.shape_cast %59 : vector<1x8x8x40xbf16> to vector<8x8x40xbf16>
    %61 = vector.shape_cast %60 : vector<8x8x40xbf16> to vector<64x40xbf16>
    %c6 = arith.constant 6 : index
    %c0_43 = arith.constant 0 : index
    %c0_44 = arith.constant 0 : index
    %62 = vector.load %arg3[%c6, %c0_43, %c0_44] : memref<9x40x256xbf16, #tpu.memory_space<vmem>>, vector<1x40x256xbf16>
    %63 = vector.shape_cast %62 : vector<1x40x256xbf16> to vector<40x256xbf16>
    %cst_45 = arith.constant dense<0.000000e+00> : vector<64x256xf32>
    %64 = tpu.matmul %61, %63, %cst_45 {dimension_numbers = #tpu.dot_dimension_numbers<[1], [0], [0], [1], [0, 0, 1, 1], [], []>} : vector<64x40xbf16>, vector<40x256xbf16>, vector<64x256xf32> -> vector<64x256xf32>
    %65 = arith.addf %56, %64 : vector<64x256xf32>
    %c2_i32_46 = arith.constant 2 : i32
    %66 = arith.addi %1, %c2_i32_46 : i32
    %c0_47 = arith.constant 0 : index
    %67 = arith.index_cast %66 : i32 to index
    %c1_48 = arith.constant 1 : index
    %c0_49 = arith.constant 0 : index
    %68 = vector.load %arg2[%c0_47, %67, %c1_48, %c0_49] : memref<1x10x10x40xbf16, #tpu.memory_space<vmem>>, vector<1x8x8x40xbf16>
    %69 = vector.shape_cast %68 : vector<1x8x8x40xbf16> to vector<8x8x40xbf16>
    %70 = vector.shape_cast %69 : vector<8x8x40xbf16> to vector<64x40xbf16>
    %c7 = arith.constant 7 : index
    %c0_50 = arith.constant 0 : index
    %c0_51 = arith.constant 0 : index
    %71 = vector.load %arg3[%c7, %c0_50, %c0_51] : memref<9x40x256xbf16, #tpu.memory_space<vmem>>, vector<1x40x256xbf16>
    %72 = vector.shape_cast %71 : vector<1x40x256xbf16> to vector<40x256xbf16>
    %cst_52 = arith.constant dense<0.000000e+00> : vector<64x256xf32>
    %73 = tpu.matmul %70, %72, %cst_52 {dimension_numbers = #tpu.dot_dimension_numbers<[1], [0], [0], [1], [0, 0, 1, 1], [], []>} : vector<64x40xbf16>, vector<40x256xbf16>, vector<64x256xf32> -> vector<64x256xf32>
    %74 = arith.addf %65, %73 : vector<64x256xf32>
    %c2_i32_53 = arith.constant 2 : i32
    %75 = arith.addi %1, %c2_i32_53 : i32
    %c0_54 = arith.constant 0 : index
    %76 = arith.index_cast %75 : i32 to index
    %c2_55 = arith.constant 2 : index
    %c0_56 = arith.constant 0 : index
    %77 = vector.load %arg2[%c0_54, %76, %c2_55, %c0_56] : memref<1x10x10x40xbf16, #tpu.memory_space<vmem>>, vector<1x8x8x40xbf16>
    %78 = vector.shape_cast %77 : vector<1x8x8x40xbf16> to vector<8x8x40xbf16>
    %79 = vector.shape_cast %78 : vector<8x8x40xbf16> to vector<64x40xbf16>
    %c8 = arith.constant 8 : index
    %c0_57 = arith.constant 0 : index
    %c0_58 = arith.constant 0 : index
    %80 = vector.load %arg3[%c8, %c0_57, %c0_58] : memref<9x40x256xbf16, #tpu.memory_space<vmem>>, vector<1x40x256xbf16>
    %81 = vector.shape_cast %80 : vector<1x40x256xbf16> to vector<40x256xbf16>
    %cst_59 = arith.constant dense<0.000000e+00> : vector<64x256xf32>
    %82 = tpu.matmul %79, %81, %cst_59 {dimension_numbers = #tpu.dot_dimension_numbers<[1], [0], [0], [1], [0, 0, 1, 1], [], []>} : vector<64x40xbf16>, vector<40x256xbf16>, vector<64x256xf32> -> vector<64x256xf32>
    %83 = arith.addf %74, %82 : vector<64x256xf32>
    %c0_60 = arith.constant 0 : index
    %c0_61 = arith.constant 0 : index
    %84 = vector.load %arg4[%c0_60, %c0_61] : memref<1x256xf32, #tpu.memory_space<vmem>>, vector<1x256xf32>
    %85 = vector.broadcast %84 : vector<1x256xf32> to vector<64x256xf32>
    %86 = arith.addf %83, %85 : vector<64x256xf32>
    %cst_62 = arith.constant 0.000000e+00 : f32
    %87 = vector.broadcast %cst_62 : f32 to vector<64x256xf32>
    %88 = arith.cmpf oge, %86, %87 : vector<64x256xf32>
    %cst_63 = arith.constant 2.000000e-01 : f32
    %89 = vector.broadcast %cst_63 : f32 to vector<64x256xf32>
    %90 = arith.mulf %89, %86 : vector<64x256xf32>
    %91 = arith.select %88, %86, %90 : vector<64x256xi1>, vector<64x256xf32>
    %92 = arith.truncf %91 : vector<64x256xf32> to vector<64x256xbf16>
    %c0_64 = arith.constant 0 : index
    %c0_65 = arith.constant 0 : index
    %c0_66 = arith.constant 0 : index
    %93 = vector.load %arg5[%c0_64, %c0_65, %c0_66] : memref<1x64x256xbf16, #tpu.memory_space<vmem>>, vector<1x64x256xbf16>
    %94 = vector.shape_cast %93 : vector<1x64x256xbf16> to vector<64x256xbf16>
    %95 = vector.shape_cast %92 : vector<64x256xbf16> to vector<1x64x256xbf16>
    tpu.vector_store %arg5[%c0_64, %c0_65, %c0_66], %95 {strides = array<i32>} : memref<1x64x256xbf16, #tpu.memory_space<vmem>>, vector<1x64x256xbf16>,
    %cst_67 = arith.constant dense<0.000000e+00> : vector<256xf32>
    %96 = vector.multi_reduction <add>, %91, %cst_67 [0] : vector<64x256xf32> to vector<256xf32>
    %97 = vector.shape_cast %96 : vector<256xf32> to vector<1x256xf32>
    %c0_68 = arith.constant 0 : index
    %c0_69 = arith.constant 0 : index
    %c0_70 = arith.constant 0 : index
    %c0_71 = arith.constant 0 : index
    %98 = vector.load %arg6[%c0_68, %c0_69, %c0_70, %c0_71] : memref<1x1x1x256xf32, #tpu.memory_space<vmem>>, vector<1x1x1x256xf32>
    %99 = vector.shape_cast %98 : vector<1x1x1x256xf32> to vector<1x256xf32>
    %100 = vector.shape_cast %97 : vector<1x256xf32> to vector<1x1x1x256xf32>
    tpu.vector_store %arg6[%c0_68, %c0_69, %c0_70, %c0_71], %100 {strides = array<i32>} : memref<1x1x1x256xf32, #tpu.memory_space<vmem>>, vector<1x1x1x256xf32>,
    return
  }
  func.func @transform_0(%arg0: i32, %arg1: i32) -> (i32, i32, i32, i32) {
    %c0_i32 = arith.constant 0 : i32
    %c0_i32_0 = arith.constant 0 : i32
    %c0_i32_1 = arith.constant 0 : i32
    %c0_i32_2 = arith.constant 0 : i32
    return %arg0, %c0_i32, %c0_i32_0, %c0_i32_1 : i32, i32, i32, i32
  }
  func.func @transform_1(%arg0: i32, %arg1: i32) -> (i32, i32, i32) {
    %c0_i32 = arith.constant 0 : i32
    %c0_i32_0 = arith.constant 0 : i32
    %c0_i32_1 = arith.constant 0 : i32
    %c0_i32_2 = arith.constant 0 : i32
    return %c0_i32, %c0_i32_0, %c0_i32_1 : i32, i32, i32
  }
  func.func @transform_2(%arg0: i32, %arg1: i32) -> (i32, i32) {
    %c0_i32 = arith.constant 0 : i32
    %c0_i32_0 = arith.constant 0 : i32
    %c0_i32_1 = arith.constant 0 : i32
    return %c0_i32, %c0_i32_0 : i32, i32
  }
  func.func @transform_3(%arg0: i32, %arg1: i32) -> (i32, i32, i32) {
    %c0_i32 = arith.constant 0 : i32
    %c0_i32_0 = arith.constant 0 : i32
    return %arg0, %arg1, %c0_i32 : i32, i32, i32
  }
  func.func @transform_4(%arg0: i32, %arg1: i32) -> (i32, i32, i32, i32) {
    %c0_i32 = arith.constant 0 : i32
    %c0_i32_0 = arith.constant 0 : i32
    %c0_i32_1 = arith.constant 0 : i32
    return %arg0, %arg1, %c0_i32, %c0_i32_0 : i32, i32, i32, i32
  }
}

module attributes {stable_mosaic.version = 11 : i64} {
  func.func @_se_scale_transpose_kernel(%arg0: i32, %arg1: i32, %arg2: memref<1x512x32xbf16, #tpu.memory_space<vmem>>, %arg3: memref<1x1x32xf32, #tpu.memory_space<vmem>>, %arg4: memref<1x32x512xf32, #tpu.memory_space<vmem>>) attributes {dimension_semantics = [#tpu.dimension_semantics<parallel>, #tpu.dimension_semantics<parallel>], iteration_bounds = array<i64: 2, 1>, scalar_prefetch = 0 : i64, scratch_operands = 0 : i64, tpu.core_type = #tpu.core_type<tc>, window_params = [{transform_indices = @transform_0, window_bounds = array<i64: 1, 512, 32>}, {transform_indices = @transform_1, window_bounds = array<i64: 1, 1, 32>}, {transform_indices = @transform_2, window_bounds = array<i64: 1, 32, 512>}]} {
    %c0 = arith.constant 0 : index
    %c0_0 = arith.constant 0 : index
    %c0_1 = arith.constant 0 : index
    %0 = vector.load %arg2[%c0, %c0_0, %c0_1] : memref<1x512x32xbf16, #tpu.memory_space<vmem>>, vector<1x512x32xbf16>
    %1 = vector.shape_cast %0 : vector<1x512x32xbf16> to vector<512x32xbf16>
    %2 = arith.extf %1 : vector<512x32xbf16> to vector<512x32xf32>
    %c0_2 = arith.constant 0 : index
    %c0_3 = arith.constant 0 : index
    %c0_4 = arith.constant 0 : index
    %3 = vector.load %arg3[%c0_2, %c0_3, %c0_4] : memref<1x1x32xf32, #tpu.memory_space<vmem>>, vector<1x1x32xf32>
    %4 = vector.shape_cast %3 : vector<1x1x32xf32> to vector<1x32xf32>
    %5 = vector.broadcast %4 : vector<1x32xf32> to vector<512x32xf32>
    %6 = arith.mulf %2, %5 : vector<512x32xf32>
    %7 = tpu.iota {dimensions = array<i32: 0>} : vector<32x32xi32>
    %8 = tpu.iota {dimensions = array<i32: 1>} : vector<32x32xi32>
    %9 = arith.cmpi eq, %7, %8 : vector<32x32xi32>
    %10 = arith.extui %9 : vector<32x32xi1> to vector<32x32xi32>
    %11 = arith.sitofp %10 : vector<32x32xi32> to vector<32x32xf32>
    %cst = arith.constant dense<0.000000e+00> : vector<32x512xf32>
    %12 = tpu.matmul %11, %6, %cst {dimension_numbers = #tpu.dot_dimension_numbers<[1], [1], [0], [0], [0, 0, 1, 0], [], []>} : vector<32x32xf32>, vector<512x32xf32>, vector<32x512xf32> -> vector<32x512xf32>
    %c0_5 = arith.constant 0 : index
    %c0_6 = arith.constant 0 : index
    %c0_7 = arith.constant 0 : index
    %13 = vector.load %arg4[%c0_5, %c0_6, %c0_7] : memref<1x32x512xf32, #tpu.memory_space<vmem>>, vector<1x32x512xf32>
    %14 = vector.shape_cast %13 : vector<1x32x512xf32> to vector<32x512xf32>
    %15 = vector.shape_cast %12 : vector<32x512xf32> to vector<1x32x512xf32>
    tpu.vector_store %arg4[%c0_5, %c0_6, %c0_7], %15 {strides = array<i32>} : memref<1x32x512xf32, #tpu.memory_space<vmem>>, vector<1x32x512xf32>,
    return
  }
  func.func @transform_0(%arg0: i32, %arg1: i32) -> (i32, i32, i32) {
    %c0_i32 = arith.constant 0 : i32
    %c0_i32_0 = arith.constant 0 : i32
    return %arg0, %arg1, %c0_i32 : i32, i32, i32
  }
  func.func @transform_1(%arg0: i32, %arg1: i32) -> (i32, i32, i32) {
    %c0_i32 = arith.constant 0 : i32
    %c0_i32_0 = arith.constant 0 : i32
    %c0_i32_1 = arith.constant 0 : i32
    return %arg0, %c0_i32, %c0_i32_0 : i32, i32, i32
  }
  func.func @transform_2(%arg0: i32, %arg1: i32) -> (i32, i32, i32) {
    %c0_i32 = arith.constant 0 : i32
    %c0_i32_0 = arith.constant 0 : i32
    return %arg0, %c0_i32, %arg1 : i32, i32, i32
  }
}

</mosaic_0001>

<llo_original>
// kernel: tile.8
$region0: #{tile.8}
  #allocation0 [shape = 's32[1]{0}', space=sflag, size = 0x4, scoped, tag = 'scoped memory for tile.8']
  %s0 = inlined_call_operand.vmem [shape: f32[32], index: 0, kind: input, shape index: {}]
  %s1 = inlined_call_operand.vmem [shape: f32[8,32], index: 1, kind: output, shape index: {}]
  // Predicated region
  $region2: #{tile.8} parent=0 // pred_check
    _
  $region3: #{tile.8} parent=0 // pred_check_branch
    %3 = sbr.rel (0) target = $region5
  $region4: #{tile.8} parent=0 // pred_region
    _
  $region5: #{tile.8} parent=0 // pred_fallthru
    _
  %v4 = vld [vmem:[%s0] ss:$0 sm:$0xff]
  %5 = vst [vmem:[%s1] sm:$0xff] %v4

// kernel: tile.9
$region0: #{tile.9}
  %s0 = inlined_call_operand.vmem [shape: f32[8,32], index: 0, kind: input, shape index: {}]
  %s1 = inlined_call_operand.vmem [shape: f32[1,256], index: 1, kind: output, shape index: {}]
  $region1: #{tile.9} parent=0
    #allocation0 [shape = 'u8[8192]{0}', space=vmem, size = 0x2000, scoped, tag = 'scoped mem for output reshape']
    %s2 = smov 3
    %v3 = vld [vmem:[%s0] ss:$4 sm:%s2]
    %vm4 = vcmask 261120
    %5 = vst.msk [vmem:[#allocation0] ss:$8 sm:$0x3] %vm4, %v3
    %s6 = scalar_lea.vmem %s0, 3
    %s7 = smov 3
    %v8 = vld [vmem:[%s6] ss:$4 sm:%s7]
    %9 = vrot.lane.b32.xlu0 %v8, 96
    %v10 = vpop.permute.xlu0 %9
    %vm11 = vcmask 1048320
    %12 = vst.msk [vmem:[#allocation0] ss:$8 sm:$0x3] %vm11, %v10
    %s13 = scalar_lea.vmem %s0, 2
    %s14 = smov 3
    %v15 = vld [vmem:[%s13] ss:$4 sm:%s14]
    %16 = vrot.lane.b32.xlu0 %v15, 64
    %v17 = vpop.permute.xlu0 %16
    %vm18 = vcmask 785920
    %19 = vst.msk [vmem:[#allocation0] ss:$8 sm:$0x3] %vm18, %v17
    %s20 = scalar_lea.vmem %s0, 1
    %s21 = smov 3
    %v22 = vld [vmem:[%s20] ss:$4 sm:%s21]
    %23 = vrot.lane.b32.xlu0 %v22, 32
    %v24 = vpop.permute.xlu0 %23
    %vm25 = vcmask 523520
    %26 = vst.msk [vmem:[#allocation0] ss:$8 sm:$0x3] %vm25, %v24
    %s28 = sshllo.u32 0, 1
    %v30 = vld [vmem:[#allocation0] sm:%s28]
    %s31 = sshllo.u32 0, 1
    %32 = vst [vmem:[%s1] sm:%s31] %v30
    %s33 = scalar_lea.vmem [#allocation0], 8
    %v34 = vld [vmem:[%s33] sm:%s28]
    %s35 = sshllo.u32 0, 1
    %s36 = scalar_lea.vmem %s1, 1
    %37 = vst [vmem:[%s36] sm:%s35] %v34

// kernel: conv3d_for_d.3
$region0: #{conv3d_for_d.3}
  #allocation0 [shape = 'u32[]', space=smem, size = 0x4, offset = 0x4, fixed_abs, tag = 'smem constant byte address 0x4 - core index']
  #allocation1 [shape = 'u32[144,128]{1,0:T(1,128)}', space=vmem, size = 0x12000, scoped, tag = 'internal scratch']
  %s0 = inlined_call_operand.vmem [shape: bf16[2,512,32], index: 0, kind: input, shape index: {}]
  %s1 = inlined_call_operand.vmem [shape: f32[2,1,32], index: 1, kind: input, shape index: {}]
  %s2 = inlined_call_operand.vmem [shape: f32[2,32,512], index: 2, kind: output, shape index: {}]
  %s3 = sld [smem:[#allocation0]]
  $region41: #{conv3d_for_d.3} parent=0
    _
  %s5 = ssub.s32 1, %s3
  %s6 = scalar_select 0, %s5, %s3
  loop: start=0, step=1, limit=4
  $region2: #{conv3d_for_d.3} parent=0 // loop_pre_header
    _
  $region3: #{conv3d_for_d.3} parent=0 // loop_header
    %s8 = sphi 0, %s12
    %p9 = scmp.ge.s32.totalorder %s8, 4
    %s15 = sphi 0, %s27
    %s16 = sphi 0, %s23
    %s17 = sphi 0, %s15
    %s18 = sphi 0, %s16
    %s19 = sphi 0, %s17
    %s20 = sphi 0, %s18
    %s32 = sphi 0, %s34
    %s35 = sphi 0, %s32
    %s36 = sphi 0, %s35
    %s52 = sphi 0, %s36
    %s58 = sphi 0, %s60
    %s61 = sphi 0, %s58
    %s62 = sphi 0, %s61
    %s78 = sphi 0, %s62
    %s86 = sphi 0, %s88
    %s89 = sphi 0, %s86
    %s90 = sphi 0, %s89
    %s106 = sphi 0, %s90
  $region4: #{conv3d_for_d.3} parent=0 // loop_header_branch
    %11 = sbr.rel (%p9) target = $region8
  $region5: #{conv3d_for_d.3} parent=0 // loop_body
    %s13 = ssub.s32 %s8, 1
    %s14 = ssub.s32 %s8, 2
    %s21 = sadd.s32 1, %s16
    %p22 = scmp.ge.s32.totalorder %s21, 1
    %s23 = scalar_select %p22, 0, %s21
    %s24 = sadd.s32 1, %s15
    %s25 = scalar_select %p22, %s24, %s15
    %p26 = scmp.ge.s32.totalorder %s25, 2
    %s27 = scalar_select %p26, 0, %s25
    %s28 = ssub.s32 %s15, %s27
    %s29 = ssub.s32 %s16, %s23
    %s30 = sor.u32 %s28, %s29
    %p31 = scmp.eq.s32.totalorder %s30, 0
    %s33 = sadd.s32 %s32, 1
    %s34 = scalar_select %p31, %s32, %s33
    %p37 = pneg %p31
    %p38 = scmp.eq.s32.totalorder %s8, 1
    %p39 = por %p37, %p38
    %p40 = scmp.ne.s32.totalorder %s32, %s35
    %p41 = scmp.eq.s32.totalorder %s8, 0
    %p42 = por %p40, %p41
    %p43 = scmp.ne.s32.totalorder %s32, %s35
    %p44 = scmp.eq.s32.totalorder %s13, 1
    %p45 = por %p43, %p44
    %p46 = scmp.ne.s32.totalorder %s35, %s36
    %p47 = scmp.eq.s32.totalorder %s13, 0
    %p48 = por %p46, %p47
    %p49 = scmp.ne.s32.totalorder %s35, %s36
    %p50 = scmp.eq.s32.totalorder %s14, 1
    %p51 = por %p49, %p50
    %p53 = scmp.ne.s32.totalorder %s36, %s52
    %p54 = scmp.eq.s32.totalorder %s14, 0
    %p55 = por %p53, %p54
    %s56 = ssub.s32 %s15, %s27
    %p57 = scmp.eq.s32.totalorder %s56, 0
    %s59 = sadd.s32 %s58, 1
    %s60 = scalar_select %p57, %s58, %s59
    %p63 = pneg %p57
    %p64 = scmp.eq.s32.totalorder %s8, 1
    %p65 = por %p63, %p64
    %p66 = scmp.ne.s32.totalorder %s58, %s61
    %p67 = scmp.eq.s32.totalorder %s8, 0
    %p68 = por %p66, %p67
    %p69 = scmp.ne.s32.totalorder %s58, %s61
    %p70 = scmp.eq.s32.totalorder %s13, 1
    %p71 = por %p69, %p70
    %p72 = scmp.ne.s32.totalorder %s61, %s62
    %p73 = scmp.eq.s32.totalorder %s13, 0
    %p74 = por %p72, %p73
    %p75 = scmp.ne.s32.totalorder %s61, %s62
    %p76 = scmp.eq.s32.totalorder %s14, 1
    %p77 = por %p75, %p76
    %p79 = scmp.ne.s32.totalorder %s62, %s78
    %p80 = scmp.eq.s32.totalorder %s14, 0
    %p81 = por %p79, %p80
    %s82 = ssub.s32 %s15, %s27
    %s83 = ssub.s32 %s16, %s23
    %s84 = sor.u32 %s82, %s83
    %p85 = scmp.eq.s32.totalorder %s84, 0
    %s87 = sadd.s32 %s86, 1
    %s88 = scalar_select %p85, %s86, %s87
    %p91 = pneg %p85
    %p92 = scmp.eq.s32.totalorder %s8, 1
    %p93 = por %p91, %p92
    %p94 = scmp.ne.s32.totalorder %s86, %s89
    %p95 = scmp.eq.s32.totalorder %s8, 0
    %p96 = por %p94, %p95
    %p97 = scmp.ne.s32.totalorder %s86, %s89
    %p98 = scmp.eq.s32.totalorder %s13, 1
    %p99 = por %p97, %p98
    %p100 = scmp.ne.s32.totalorder %s89, %s90
    %p101 = scmp.eq.s32.totalorder %s13, 0
    %p102 = por %p100, %p101
    %p103 = scmp.ne.s32.totalorder %s89, %s90
    %p104 = scmp.eq.s32.totalorder %s14, 1
    %p105 = por %p103, %p104
    %p107 = scmp.ne.s32.totalorder %s90, %s106
    %p108 = scmp.eq.s32.totalorder %s14, 0
    %p109 = por %p107, %p108
    %p110 = scmp.le.s32.totalorder 1, %s8
    %p111 = scmp.lt.s32.totalorder %s8, 3
    %p112 = pnand %p110, %p111
    %p113 = pneg %p112
    // Predicated region
    $region9: #{conv3d_for_d.3} parent=5 // pred_check
      _
    $region10: #{conv3d_for_d.3} parent=5 // pred_check_branch
      %115 = sbr.rel (%p112) target = $region12
    $region11: #{conv3d_for_d.3} parent=5 // pred_region
      %s116 = ssub.s32 %s8, 1
    $region12: #{conv3d_for_d.3} parent=5 // pred_fallthru
      _
    %p117 = scmp.lt.s32.totalorder %s8, 2
    // Predicated region
    $region13: #{conv3d_for_d.3} parent=5 // pred_check
      %p118 = pneg %p117
    $region14: #{conv3d_for_d.3} parent=5 // pred_check_branch
      %120 = sbr.rel (%p118) target = $region16
    $region15: #{conv3d_for_d.3} parent=5 // pred_region
      // Predicated region
      $region17: #{conv3d_for_d.3} parent=15 // pred_check
        %p121 = pneg %p42
      $region18: #{conv3d_for_d.3} parent=15 // pred_check_branch
        %123 = sbr.rel (%p121) target = $region20
      $region19: #{conv3d_for_d.3} parent=15 // pred_region
        %s124 = smul.u32 64, %s16
        %p125 = scmp.lt.s32.totalorder %s15, 1
        %s126 = scalar_select %p125, %s15, 1
        %p127 = scmp.lt.s32.totalorder %s124, 63
        %s128 = scalar_select %p127, %s124, 63
        %s129 = smul.addr %s126, 64
        %s130 = sadd.s32 %s128, %s129
        %s131 = smul.addr %s130, 4
        %s132 = scalar_lea.vmem %s0, %s131
        %s133 = smul.u32 64, %s16
      $region20: #{conv3d_for_d.3} parent=15 // pred_fallthru
        _
      // Predicated region
      $region21: #{conv3d_for_d.3} parent=15 // pred_check
        %p134 = pneg %p68
      $region22: #{conv3d_for_d.3} parent=15 // pred_check_branch
        %136 = sbr.rel (%p134) target = $region24
      $region23: #{conv3d_for_d.3} parent=15 // pred_region
        %p137 = scmp.lt.s32.totalorder %s15, 1
        %s138 = scalar_select %p137, %s15, 1
        %s139 = scalar_lea.vmem %s1, %s138
      $region24: #{conv3d_for_d.3} parent=15 // pred_fallthru
        _
    $region16: #{conv3d_for_d.3} parent=5 // pred_fallthru
      _
    %p140 = scmp.le.s32.totalorder 1, %s8
    %p141 = scmp.lt.s32.totalorder %s8, 3
    %p142 = pnand %p140, %p141
    %p143 = pneg %p142
    // Predicated region
    $region25: #{conv3d_for_d.3} parent=5 // pred_check
      _
    $region26: #{conv3d_for_d.3} parent=5 // pred_check_branch
      %145 = sbr.rel (%p142) target = $region28
    $region27: #{conv3d_for_d.3} parent=5 // pred_region
      %s146 = ssub.s32 %s8, 1
      %s147 = smul.u32 64, %s18
      %p148 = scmp.lt.s32.totalorder %s17, 1
      %s149 = scalar_select %p148, %s17, 1
      %p150 = scmp.lt.s32.totalorder %s147, 63
      %s151 = scalar_select %p150, %s147, 63
      %s152 = smul.addr %s149, 64
      %s153 = sadd.s32 %s151, %s152
      %s154 = smul.addr %s153, 4
      %s155 = scalar_lea.vmem %s0, %s154
      %p156 = pneg %p48
      %p157 = pneg %p45
      %p158 = scmp.lt.s32.totalorder %s17, 1
      %s159 = scalar_select %p158, %s17, 1
      %s160 = scalar_lea.vmem %s1, %s159
      %p161 = pneg %p74
      %p162 = pneg %p71
      %p163 = pneg %p102
      %p164 = pneg %p99
      %s165 = smul.u32 4, %s18
      %p166 = scmp.lt.s32.totalorder %s17, 1
      %s167 = scalar_select %p166, %s17, 1
      %p168 = scmp.lt.s32.totalorder %s165, 3
      %s169 = scalar_select %p168, %s165, 3
      %s170 = smul.addr %s167, 16
      %s171 = sadd.s32 %s169, %s170
      %s172 = smul.addr %s171, 8
      %s173 = scalar_lea.vmem %s2, %s172
      %s174 = smul.u32 64, %s18
      %p175 = scmp.lt.s32.totalorder %s17, 1
      %s176 = scalar_select %p175, %s17, 1
      %p177 = scmp.lt.s32.totalorder %s174, 63
      %s178 = scalar_select %p177, %s174, 63
      %s179 = smul.addr %s176, 64
      %s180 = sadd.s32 %s178, %s179
      %s181 = smul.addr %s180, 4
      %s182 = scalar_lea.vmem %s0, %s181
      %s183 = smul.u32 64, %s18
      %p184 = scmp.lt.s32.totalorder %s17, 1
      %s185 = scalar_select %p184, %s17, 1
      %s186 = scalar_lea.vmem %s1, %s185
      %s187 = smul.u32 4, %s18
      %p188 = scmp.lt.s32.totalorder %s17, 1
      %s189 = scalar_select %p188, %s17, 1
      %p190 = scmp.lt.s32.totalorder %s187, 3
      %s191 = scalar_select %p190, %s187, 3
      %s192 = smul.addr %s189, 16
      %s193 = sadd.s32 %s191, %s192
      %s194 = smul.addr %s193, 8
      %s195 = scalar_lea.vmem %s2, %s194
      %s196 = smul.u32 4, %s18
      %v197 = vld [vmem:[%s182] sm:$0xf]
      %v198 = vld [vmem:[%s182 + $0x4] sm:$0xf]
      %v199 = vld [vmem:[%s182 + $0x8] sm:$0xf]
      %v200 = vld [vmem:[%s182 + $0xc] sm:$0xf]
      %v201 = vld [vmem:[%s182 + $0x10] sm:$0xf]
      %v202 = vld [vmem:[%s182 + $0x14] sm:$0xf]
      %v203 = vld [vmem:[%s182 + $0x18] sm:$0xf]
      %v204 = vld [vmem:[%s182 + $0x1c] sm:$0xf]
      %v205 = vld [vmem:[%s182 + $0x20] sm:$0xf]
      %v206 = vld [vmem:[%s182 + $0x24] sm:$0xf]
      %v207 = vld [vmem:[%s182 + $0x28] sm:$0xf]
      %v208 = vld [vmem:[%s182 + $0x2c] sm:$0xf]
      %v209 = vld [vmem:[%s182 + $0x30] sm:$0xf]
      %v210 = vld [vmem:[%s182 + $0x34] sm:$0xf]
      %v211 = vld [vmem:[%s182 + $0x38] sm:$0xf]
      %v212 = vld [vmem:[%s182 + $0x3c] sm:$0xf]
      %v213 = vld [vmem:[%s182 + $0x40] sm:$0xf]
      %v214 = vld [vmem:[%s182 + $0x44] sm:$0xf]
      %v215 = vld [vmem:[%s182 + $0x48] sm:$0xf]
      %v216 = vld [vmem:[%s182 + $0x4c] sm:$0xf]
      %v217 = vld [vmem:[%s182 + $0x50] sm:$0xf]
      %v218 = vld [vmem:[%s182 + $0x54] sm:$0xf]
      %v219 = vld [vmem:[%s182 + $0x58] sm:$0xf]
      %v220 = vld [vmem:[%s182 + $0x5c] sm:$0xf]
      %v221 = vld [vmem:[%s182 + $0x60] sm:$0xf]
      %v222 = vld [vmem:[%s182 + $0x64] sm:$0xf]
      %v223 = vld [vmem:[%s182 + $0x68] sm:$0xf]
      %v224 = vld [vmem:[%s182 + $0x6c] sm:$0xf]
      %v225 = vld [vmem:[%s182 + $0x70] sm:$0xf]
      %v226 = vld [vmem:[%s182 + $0x74] sm:$0xf]
      %v227 = vld [vmem:[%s182 + $0x78] sm:$0xf]
      %v228 = vld [vmem:[%s182 + $0x7c] sm:$0xf]
      %v229 = vld [vmem:[%s182 + $0x80] sm:$0xf]
      %v230 = vld [vmem:[%s182 + $0x84] sm:$0xf]
      %v231 = vld [vmem:[%s182 + $0x88] sm:$0xf]
      %v232 = vld [vmem:[%s182 + $0x8c] sm:$0xf]
      %v233 = vld [vmem:[%s182 + $0x90] sm:$0xf]
      %v234 = vld [vmem:[%s182 + $0x94] sm:$0xf]
      %v235 = vld [vmem:[%s182 + $0x98] sm:$0xf]
      %v236 = vld [vmem:[%s182 + $0x9c] sm:$0xf]
      %v237 = vld [vmem:[%s182 + $0xa0] sm:$0xf]
      %v238 = vld [vmem:[%s182 + $0xa4] sm:$0xf]
      %v239 = vld [vmem:[%s182 + $0xa8] sm:$0xf]
      %v240 = vld [vmem:[%s182 + $0xac] sm:$0xf]
      %v241 = vld [vmem:[%s182 + $0xb0] sm:$0xf]
      %v242 = vld [vmem:[%s182 + $0xb4] sm:$0xf]
      %v243 = vld [vmem:[%s182 + $0xb8] sm:$0xf]
      %v244 = vld [vmem:[%s182 + $0xbc] sm:$0xf]
      %v245 = vld [vmem:[%s182 + $0xc0] sm:$0xf]
      %v246 = vld [vmem:[%s182 + $0xc4] sm:$0xf]
      %v247 = vld [vmem:[%s182 + $0xc8] sm:$0xf]
      %v248 = vld [vmem:[%s182 + $0xcc] sm:$0xf]
      %v249 = vld [vmem:[%s182 + $0xd0] sm:$0xf]
      %v250 = vld [vmem:[%s182 + $0xd4] sm:$0xf]
      %v251 = vld [vmem:[%s182 + $0xd8] sm:$0xf]
      %v252 = vld [vmem:[%s182 + $0xdc] sm:$0xf]
      %v253 = vld [vmem:[%s182 + $0xe0] sm:$0xf]
      %v254 = vld [vmem:[%s182 + $0xe4] sm:$0xf]
      %v255 = vld [vmem:[%s182 + $0xe8] sm:$0xf]
      %v256 = vld [vmem:[%s182 + $0xec] sm:$0xf]
      %v257 = vld [vmem:[%s182 + $0xf0] sm:$0xf]
      %v258 = vld [vmem:[%s182 + $0xf4] sm:$0xf]
      %v259 = vld [vmem:[%s182 + $0xf8] sm:$0xf]
      %v260 = vld [vmem:[%s182 + $0xfc] sm:$0xf]
      %v261 = vunpack.c.l.bf16 %v197
      %v262 = vunpack.c.l.bf16 %v198
      %v263 = vunpack.c.l.bf16 %v199
      %v264 = vunpack.c.l.bf16 %v200
      %v265 = vunpack.c.l.bf16 %v201
      %v266 = vunpack.c.l.bf16 %v202
      %v267 = vunpack.c.l.bf16 %v203
      %v268 = vunpack.c.l.bf16 %v204
      %v269 = vunpack.c.l.bf16 %v205
      %v270 = vunpack.c.l.bf16 %v206
      %v271 = vunpack.c.l.bf16 %v207
      %v272 = vunpack.c.l.bf16 %v208
      %v273 = vunpack.c.l.bf16 %v209
      %v274 = vunpack.c.l.bf16 %v210
      %v275 = vunpack.c.l.bf16 %v211
      %v276 = vunpack.c.l.bf16 %v212
      %v277 = vunpack.c.l.bf16 %v213
      %v278 = vunpack.c.l.bf16 %v214
      %v279 = vunpack.c.l.bf16 %v215
      %v280 = vunpack.c.l.bf16 %v216
      %v281 = vunpack.c.l.bf16 %v217
      %v282 = vunpack.c.l.bf16 %v218
      %v283 = vunpack.c.l.bf16 %v219
      %v284 = vunpack.c.l.bf16 %v220
      %v285 = vunpack.c.l.bf16 %v221
      %v286 = vunpack.c.l.bf16 %v222
      %v287 = vunpack.c.l.bf16 %v223
      %v288 = vunpack.c.l.bf16 %v224
      %v289 = vunpack.c.l.bf16 %v225
      %v290 = vunpack.c.l.bf16 %v226
      %v291 = vunpack.c.l.bf16 %v227
      %v292 = vunpack.c.l.bf16 %v228
      %v293 = vunpack.c.l.bf16 %v229
      %v294 = vunpack.c.l.bf16 %v230
      %v295 = vunpack.c.l.bf16 %v231
      %v296 = vunpack.c.l.bf16 %v232
      %v297 = vunpack.c.l.bf16 %v233
      %v298 = vunpack.c.l.bf16 %v234
      %v299 = vunpack.c.l.bf16 %v235
      %v300 = vunpack.c.l.bf16 %v236
      %v301 = vunpack.c.l.bf16 %v237
      %v302 = vunpack.c.l.bf16 %v238
      %v303 = vunpack.c.l.bf16 %v239
      %v304 = vunpack.c.l.bf16 %v240
      %v305 = vunpack.c.l.bf16 %v241
      %v306 = vunpack.c.l.bf16 %v242
      %v307 = vunpack.c.l.bf16 %v243
      %v308 = vunpack.c.l.bf16 %v244
      %v309 = vunpack.c.l.bf16 %v245
      %v310 = vunpack.c.l.bf16 %v246
      %v311 = vunpack.c.l.bf16 %v247
      %v312 = vunpack.c.l.bf16 %v248
      %v313 = vunpack.c.l.bf16 %v249
      %v314 = vunpack.c.l.bf16 %v250
      %v315 = vunpack.c.l.bf16 %v251
      %v316 = vunpack.c.l.bf16 %v252
      %v317 = vunpack.c.l.bf16 %v253
      %v318 = vunpack.c.l.bf16 %v254
      %v319 = vunpack.c.l.bf16 %v255
      %v320 = vunpack.c.l.bf16 %v256
      %v321 = vunpack.c.l.bf16 %v257
      %v322 = vunpack.c.l.bf16 %v258
      %v323 = vunpack.c.l.bf16 %v259
      %v324 = vunpack.c.l.bf16 %v260
      %v325 = vld [vmem:[%s186] sm:$0x1]
      %v327 = vlaneseq
      %v328 = vshrl.u32 %v327, 7
      %v329 = vsub.s32 0, %v328
      %v330 = vrot.slane %v325, %v329
      %v332 = vmul.f32 %v261, %v330
      %v333 = vmul.f32 %v262, %v330
      %v334 = vmul.f32 %v263, %v330
      %v335 = vmul.f32 %v264, %v330
      %v336 = vmul.f32 %v265, %v330
      %v337 = vmul.f32 %v266, %v330
      %v338 = vmul.f32 %v267, %v330
      %v339 = vmul.f32 %v268, %v330
      %v340 = vmul.f32 %v269, %v330
      %v341 = vmul.f32 %v270, %v330
      %v342 = vmul.f32 %v271, %v330
      %v343 = vmul.f32 %v272, %v330
      %v344 = vmul.f32 %v273, %v330
      %v345 = vmul.f32 %v274, %v330
      %v346 = vmul.f32 %v275, %v330
      %v347 = vmul.f32 %v276, %v330
      %v348 = vmul.f32 %v277, %v330
      %v349 = vmul.f32 %v278, %v330
      %v350 = vmul.f32 %v279, %v330
      %v351 = vmul.f32 %v280, %v330
      %v352 = vmul.f32 %v281, %v330
      %v353 = vmul.f32 %v282, %v330
      %v354 = vmul.f32 %v283, %v330
      %v355 = vmul.f32 %v284, %v330
      %v356 = vmul.f32 %v285, %v330
      %v357 = vmul.f32 %v286, %v330
      %v358 = vmul.f32 %v287, %v330
      %v359 = vmul.f32 %v288, %v330
      %v360 = vmul.f32 %v289, %v330
      %v361 = vmul.f32 %v290, %v330
      %v362 = vmul.f32 %v291, %v330
      %v363 = vmul.f32 %v292, %v330
      %v364 = vmul.f32 %v293, %v330
      %v365 = vmul.f32 %v294, %v330
      %v366 = vmul.f32 %v295, %v330
      %v367 = vmul.f32 %v296, %v330
      %v368 = vmul.f32 %v297, %v330
      %v369 = vmul.f32 %v298, %v330
      %v370 = vmul.f32 %v299, %v330
      %v371 = vmul.f32 %v300, %v330
      %v372 = vmul.f32 %v301, %v330
      %v373 = vmul.f32 %v302, %v330
      %v374 = vmul.f32 %v303, %v330
      %v375 = vmul.f32 %v304, %v330
      %v376 = vmul.f32 %v305, %v330
      %v377 = vmul.f32 %v306, %v330
      %v378 = vmul.f32 %v307, %v330
      %v379 = vmul.f32 %v308, %v330
      %v380 = vmul.f32 %v309, %v330
      %v381 = vmul.f32 %v310, %v330
      %v382 = vmul.f32 %v311, %v330
      %v383 = vmul.f32 %v312, %v330
      %v384 = vmul.f32 %v313, %v330
      %v385 = vmul.f32 %v314, %v330
      %v386 = vmul.f32 %v315, %v330
      %v387 = vmul.f32 %v316, %v330
      %v388 = vmul.f32 %v317, %v330
      %v389 = vmul.f32 %v318, %v330
      %v390 = vmul.f32 %v319, %v330
      %v391 = vmul.f32 %v320, %v330
      %v392 = vmul.f32 %v321, %v330
      %v393 = vmul.f32 %v322, %v330
      %v394 = vmul.f32 %v323, %v330
      %v395 = vmul.f32 %v324, %v330
      %v396 = vlaneseq
      %v397 = vshrl.u32 %v396, 7
      %v398 = vadd.s32 %v397, 8
      %v399 = vadd.s32 %v397, 16
      %v400 = vadd.s32 %v397, 24
      %v401 = vlaneseq
      %v402 = vand.u32 %v401, 127
      %vm403 = vcmp.eq.s32.totalorder %v397, %v402
      %vm404 = vcmp.eq.s32.totalorder %v398, %v402
      %vm405 = vcmp.eq.s32.totalorder %v399, %v402
      %vm406 = vcmp.eq.s32.totalorder %v400, %v402
      %v407 = vsel %vm403, 1, 0
      %v408 = vsel %vm404, 1, 0
      %v409 = vsel %vm405, 1, 0
      %v410 = vsel %vm406, 1, 0
      %v411 = vcvt.s32.f32 %v407
      %v412 = vcvt.s32.f32 %v408
      %v413 = vcvt.s32.f32 %v409
      %v414 = vcvt.s32.f32 %v410
      %vm415 = vcmask 261120
      %v417 = vsel %vm415, %v411, 0
      %v420 = vsel %vm415, %v412, 0
      %v423 = vsel %vm415, %v413, 0
      %v426 = vsel %vm415, %v414, 0
      %v429 = vsel %vm415, %v332, 0
      %v432 = vsel %vm415, %v333, 0
      %v435 = vsel %vm415, %v334, 0
      %v438 = vsel %vm415, %v335, 0
      %v441 = vsel %vm415, %v336, 0
      %v444 = vsel %vm415, %v337, 0
      %v447 = vsel %vm415, %v338, 0
      %v450 = vsel %vm415, %v339, 0
      %v453 = vsel %vm415, %v340, 0
      %v456 = vsel %vm415, %v341, 0
      %v459 = vsel %vm415, %v342, 0
      %v462 = vsel %vm415, %v343, 0
      %v465 = vsel %vm415, %v344, 0
      %v468 = vsel %vm415, %v345, 0
      %v471 = vsel %vm415, %v346, 0
      %v474 = vsel %vm415, %v347, 0
      %v477 = vsel %vm415, %v348, 0
      %v480 = vsel %vm415, %v349, 0
      %v483 = vsel %vm415, %v350, 0
      %v486 = vsel %vm415, %v351, 0
      %v489 = vsel %vm415, %v352, 0
      %v492 = vsel %vm415, %v353, 0
      %v495 = vsel %vm415, %v354, 0
      %v498 = vsel %vm415, %v355, 0
      %v501 = vsel %vm415, %v356, 0
      %v504 = vsel %vm415, %v357, 0
      %v507 = vsel %vm415, %v358, 0
      %v510 = vsel %vm415, %v359, 0
      %v513 = vsel %vm415, %v360, 0
      %v516 = vsel %vm415, %v361, 0
      %v519 = vsel %vm415, %v362, 0
      %v522 = vsel %vm415, %v363, 0
      %v525 = vsel %vm415, %v364, 0
      %v528 = vsel %vm415, %v365, 0
      %v531 = vsel %vm415, %v366, 0
      %v534 = vsel %vm415, %v367, 0
      %v537 = vsel %vm415, %v368, 0
      %v540 = vsel %vm415, %v369, 0
      %v543 = vsel %vm415, %v370, 0
      %v546 = vsel %vm415, %v371, 0
      %v549 = vsel %vm415, %v372, 0
      %v552 = vsel %vm415, %v373, 0
      %v555 = vsel %vm415, %v374, 0
      %v558 = vsel %vm415, %v375, 0
      %v561 = vsel %vm415, %v376, 0
      %v564 = vsel %vm415, %v377, 0
      %v567 = vsel %vm415, %v378, 0
      %v570 = vsel %vm415, %v379, 0
      %v573 = vsel %vm415, %v380, 0
      %v576 = vsel %vm415, %v381, 0
      %v579 = vsel %vm415, %v382, 0
      %v582 = vsel %vm415, %v383, 0
      %v585 = vsel %vm415, %v384, 0
      %v588 = vsel %vm415, %v385, 0
      %v591 = vsel %vm415, %v386, 0
      %v594 = vsel %vm415, %v387, 0
      %v597 = vsel %vm415, %v388, 0
      %v600 = vsel %vm415, %v389, 0
      %v603 = vsel %vm415, %v390, 0
      %v606 = vsel %vm415, %v391, 0
      %v609 = vsel %vm415, %v392, 0
      %v612 = vsel %vm415, %v393, 0
      %v615 = vsel %vm415, %v394, 0
      %v618 = vsel %vm415, %v395, 0
      %620 = vmatprep.subr.mxu0 0.0
      %621 = vmatpush1.xpose.msra.mxu0 %v429
      %622 = vmatprep.subr.mxu0 0.0
      %623 = vmatpush1.xpose.msra.mxu0 %v432
      %624 = vmatprep.subr.mxu0 0.0
      %625 = vmatpush1.xpose.msra.mxu0 %v435
      %626 = vmatprep.subr.mxu0 0.0
      %627 = vmatpush1.xpose.msra.mxu0 %v438
      %628 = vmatprep.subr.mxu0 0.0
      %629 = vmatpush1.xpose.msra.mxu0 %v441
      %630 = vmatprep.subr.mxu0 0.0
      %631 = vmatpush1.xpose.msra.mxu0 %v444
      %632 = vmatprep.subr.mxu0 0.0
      %633 = vmatpush1.xpose.msra.mxu0 %v447
      %634 = vmatprep.subr.mxu0 0.0
      %635 = vmatpush1.xpose.msra.mxu0 %v450
      %636 = vmatprep.subr.mxu0 0.0
      %637 = vmatpush1.xpose.msra.mxu0 %v453
      %638 = vmatprep.subr.mxu0 0.0
      %639 = vmatpush1.xpose.msra.mxu0 %v456
      %640 = vmatprep.subr.mxu0 0.0
      %641 = vmatpush1.xpose.msra.mxu0 %v459
      %642 = vmatprep.subr.mxu0 0.0
      %643 = vmatpush1.xpose.msra.mxu0 %v462
      %644 = vmatprep.subr.mxu0 0.0
      %645 = vmatpush1.xpose.msra.mxu0 %v465
      %646 = vmatprep.subr.mxu0 0.0
      %647 = vmatpush1.xpose.msra.mxu0 %v468
      %648 = vmatprep.subr.mxu0 0.0
      %649 = vmatpush1.xpose.msra.mxu0 %v471
      %650 = vmatprep.subr.mxu0 0.0
      %651 = vmatpush1.xpose.msra.mxu0 %v474
      %652 = vmatprep.subr.mxu0 0.0
      %653 = vmatpush1.xpose.msra.mxu0 %v477
      %654 = vmatprep.subr.mxu0 0.0
      %655 = vmatpush1.xpose.msra.mxu0 %v480
      %656 = vmatprep.subr.mxu0 0.0
      %657 = vmatpush1.xpose.msra.mxu0 %v483
      %658 = vmatprep.subr.mxu0 0.0
      %659 = vmatpush1.xpose.msra.mxu0 %v486
      %660 = vmatprep.subr.mxu0 0.0
      %661 = vmatpush1.xpose.msra.mxu0 %v489
      %662 = vmatprep.subr.mxu0 0.0
      %663 = vmatpush1.xpose.msra.mxu0 %v492
      %664 = vmatprep.subr.mxu0 0.0
      %665 = vmatpush1.xpose.msra.mxu0 %v495
      %666 = vmatprep.subr.mxu0 0.0
      %667 = vmatpush1.xpose.msra.mxu0 %v498
      %668 = vmatprep.subr.mxu0 0.0
      %669 = vmatpush1.xpose.msra.mxu0 %v501
      %670 = vmatprep.subr.mxu0 0.0
      %671 = vmatpush1.xpose.msra.mxu0 %v504
      %672 = vmatprep.subr.mxu0 0.0
      %673 = vmatpush1.xpose.msra.mxu0 %v507
      %674 = vmatprep.subr.mxu0 0.0
      %675 = vmatpush1.xpose.msra.mxu0 %v510
      %676 = vmatprep.subr.mxu0 0.0
      %677 = vmatpush1.xpose.msra.mxu0 %v513
      %678 = vmatprep.subr.mxu0 0.0
      %679 = vmatpush1.xpose.msra.mxu0 %v516
      %680 = vmatprep.subr.mxu0 0.0
      %681 = vmatpush1.xpose.msra.mxu0 %v519
      %682 = vmatprep.subr.mxu0 0.0
      %683 = vmatpush1.xpose.msra.mxu0 %v522
      %684 = vmatprep.mubr.f32.mxu0 0.0
      %685 = vmatmul.mubr.f32.gmra.mrb[0].mxu0 %v417
      %v686 = vpop.f32.mrb[0].mxu0
      %v687 = vadd.f32 0.0, %v686
      %v688 = vpop.f32.mrb[0].mxu0
      %v689 = vadd.f32 0.0, %v688
      %690 = vmatprep.mubr.f32.mxu0 0.0
      %691 = vmatmul.mubr.f32.gmra.mrb[0].mxu0 %v420
      %v692 = vpop.f32.mrb[0].mxu0
      %v693 = vadd.f32 0.0, %v692
      %v694 = vpop.f32.mrb[0].mxu0
      %v695 = vadd.f32 0.0, %v694
      %696 = vmatprep.mubr.f32.mxu0 0.0
      %697 = vmatmul.mubr.f32.gmra.mrb[0].mxu0 %v423
      %v698 = vpop.f32.mrb[0].mxu0
      %v699 = vadd.f32 0.0, %v698
      %v700 = vpop.f32.mrb[0].mxu0
      %v701 = vadd.f32 0.0, %v700
      %702 = vmatprep.mubr.f32.mxu0 0.0
      %703 = vmatmul.mubr.f32.gmra.mrb[0].mxu0 %v426
      %v704 = vpop.f32.mrb[0].mxu0
      %v705 = vadd.f32 0.0, %v704
      %v706 = vpop.f32.mrb[0].mxu0
      %v707 = vadd.f32 0.0, %v706
      %708 = vdwg.mxu0
      %709 = vmatprep.subr.mxu0 0.0
      %710 = vmatpush1.xpose.msra.mxu0 %v525
      %711 = vmatprep.subr.mxu0 0.0
      %712 = vmatpush1.xpose.msra.mxu0 %v528
      %713 = vmatprep.subr.mxu0 0.0
      %714 = vmatpush1.xpose.msra.mxu0 %v531
      %715 = vmatprep.subr.mxu0 0.0
      %716 = vmatpush1.xpose.msra.mxu0 %v534
      %717 = vmatprep.subr.mxu0 0.0
      %718 = vmatpush1.xpose.msra.mxu0 %v537
      %719 = vmatprep.subr.mxu0 0.0
      %720 = vmatpush1.xpose.msra.mxu0 %v540
      %721 = vmatprep.subr.mxu0 0.0
      %722 = vmatpush1.xpose.msra.mxu0 %v543
      %723 = vmatprep.subr.mxu0 0.0
      %724 = vmatpush1.xpose.msra.mxu0 %v546
      %725 = vmatprep.subr.mxu0 0.0
      %726 = vmatpush1.xpose.msra.mxu0 %v549
      %727 = vmatprep.subr.mxu0 0.0
      %728 = vmatpush1.xpose.msra.mxu0 %v552
      %729 = vmatprep.subr.mxu0 0.0
      %730 = vmatpush1.xpose.msra.mxu0 %v555
      %731 = vmatprep.subr.mxu0 0.0
      %732 = vmatpush1.xpose.msra.mxu0 %v558
      %733 = vmatprep.subr.mxu0 0.0
      %734 = vmatpush1.xpose.msra.mxu0 %v561
      %735 = vmatprep.subr.mxu0 0.0
      %736 = vmatpush1.xpose.msra.mxu0 %v564
      %737 = vmatprep.subr.mxu0 0.0
      %738 = vmatpush1.xpose.msra.mxu0 %v567
      %739 = vmatprep.subr.mxu0 0.0
      %740 = vmatpush1.xpose.msra.mxu0 %v570
      %741 = vmatprep.subr.mxu0 0.0
      %742 = vmatpush1.xpose.msra.mxu0 %v573
      %743 = vmatprep.subr.mxu0 0.0
      %744 = vmatpush1.xpose.msra.mxu0 %v576
      %745 = vmatprep.subr.mxu0 0.0
      %746 = vmatpush1.xpose.msra.mxu0 %v579
      %747 = vmatprep.subr.mxu0 0.0
      %748 = vmatpush1.xpose.msra.mxu0 %v582
      %749 = vmatprep.subr.mxu0 0.0
      %750 = vmatpush1.xpose.msra.mxu0 %v585
      %751 = vmatprep.subr.mxu0 0.0
      %752 = vmatpush1.xpose.msra.mxu0 %v588
      %753 = vmatprep.subr.mxu0 0.0
      %754 = vmatpush1.xpose.msra.mxu0 %v591
      %755 = vmatprep.subr.mxu0 0.0
      %756 = vmatpush1.xpose.msra.mxu0 %v594
      %757 = vmatprep.subr.mxu0 0.0
      %758 = vmatpush1.xpose.msra.mxu0 %v597
      %759 = vmatprep.subr.mxu0 0.0
      %760 = vmatpush1.xpose.msra.mxu0 %v600
      %761 = vmatprep.subr.mxu0 0.0
      %762 = vmatpush1.xpose.msra.mxu0 %v603
      %763 = vmatprep.subr.mxu0 0.0
      %764 = vmatpush1.xpose.msra.mxu0 %v606
      %765 = vmatprep.subr.mxu0 0.0
      %766 = vmatpush1.xpose.msra.mxu0 %v609
      %767 = vmatprep.subr.mxu0 0.0
      %768 = vmatpush1.xpose.msra.mxu0 %v612
      %769 = vmatprep.subr.mxu0 0.0
      %770 = vmatpush1.xpose.msra.mxu0 %v615
      %771 = vmatprep.subr.mxu0 0.0
      %772 = vmatpush1.xpose.msra.mxu0 %v618
      %773 = vmatprep.mubr.f32.mxu0 0.0
      %774 = vmatmul.mubr.f32.gmra.mrb[0].mxu0 %v417
      %v775 = vpop.f32.mrb[0].mxu0
      %v776 = vadd.f32 0.0, %v775
      %v777 = vpop.f32.mrb[0].mxu0
      %v778 = vadd.f32 0.0, %v777
      %779 = vmatprep.mubr.f32.mxu0 0.0
      %780 = vmatmul.mubr.f32.gmra.mrb[0].mxu0 %v420
      %v781 = vpop.f32.mrb[0].mxu0
      %v782 = vadd.f32 0.0, %v781
      %v783 = vpop.f32.mrb[0].mxu0
      %v784 = vadd.f32 0.0, %v783
      %785 = vmatprep.mubr.f32.mxu0 0.0
      %786 = vmatmul.mubr.f32.gmra.mrb[0].mxu0 %v423
      %v787 = vpop.f32.mrb[0].mxu0
      %v788 = vadd.f32 0.0, %v787
      %v789 = vpop.f32.mrb[0].mxu0
      %v790 = vadd.f32 0.0, %v789
      %791 = vmatprep.mubr.f32.mxu0 0.0
      %792 = vmatmul.mubr.f32.gmra.mrb[0].mxu0 %v426
      %v793 = vpop.f32.mrb[0].mxu0
      %v794 = vadd.f32 0.0, %v793
      %v795 = vpop.f32.mrb[0].mxu0
      %v796 = vadd.f32 0.0, %v795
      %797 = vdwg.mxu0
      %798 = vst [vmem:[%s195] sm:$0xff] %v687
      %799 = vst [vmem:[%s195 + $0x8] sm:$0xff] %v689
      %800 = vst [vmem:[%s195 + $0x10] sm:$0xff] %v776
      %801 = vst [vmem:[%s195 + $0x18] sm:$0xff] %v778
      %802 = vst [vmem:[%s195 + $0x20] sm:$0xff] %v693
      %803 = vst [vmem:[%s195 + $0x28] sm:$0xff] %v695
      %804 = vst [vmem:[%s195 + $0x30] sm:$0xff] %v782
      %805 = vst [vmem:[%s195 + $0x38] sm:$0xff] %v784
      %806 = vst [vmem:[%s195 + $0x40] sm:$0xff] %v699
      %807 = vst [vmem:[%s195 + $0x48] sm:$0xff] %v701
      %808 = vst [vmem:[%s195 + $0x50] sm:$0xff] %v788
      %809 = vst [vmem:[%s195 + $0x58] sm:$0xff] %v790
      %810 = vst [vmem:[%s195 + $0x60] sm:$0xff] %v705
      %811 = vst [vmem:[%s195 + $0x68] sm:$0xff] %v707
      %812 = vst [vmem:[%s195 + $0x70] sm:$0xff] %v794
      %813 = vst [vmem:[%s195 + $0x78] sm:$0xff] %v796
      %s814 = smul.u32 4, %s18
      %p815 = scmp.lt.s32.totalorder %s17, 1
      %s816 = scalar_select %p815, %s17, 1
      %p817 = scmp.lt.s32.totalorder %s814, 3
      %s818 = scalar_select %p817, %s814, 3
      %s819 = smul.addr %s816, 16
      %s820 = sadd.s32 %s818, %s819
      %s821 = smul.addr %s820, 8
      %s822 = scalar_lea.vmem %s2, %s821
      // Predicated region
      $region29: #{conv3d_for_d.3} parent=27 // pred_check
        %p823 = pneg %p99
      $region30: #{conv3d_for_d.3} parent=27 // pred_check_branch
        %825 = sbr.rel (%p823) target = $region32
      $region31: #{conv3d_for_d.3} parent=27 // pred_region
        %s826 = smul.u32 4, %s18
      $region32: #{conv3d_for_d.3} parent=27 // pred_fallthru
        _
    $region28: #{conv3d_for_d.3} parent=5 // pred_fallthru
      _
    %p827 = scmp.le.s32.totalorder 2, %s8
    // Predicated region
    $region33: #{conv3d_for_d.3} parent=5 // pred_check
      %p828 = pneg %p827
    $region34: #{conv3d_for_d.3} parent=5 // pred_check_branch
      %830 = sbr.rel (%p828) target = $region36
    $region35: #{conv3d_for_d.3} parent=5 // pred_region
      %s831 = ssub.s32 %s8, 2
      // Predicated region
      $region37: #{conv3d_for_d.3} parent=35 // pred_check
        %p832 = pneg %p105
      $region38: #{conv3d_for_d.3} parent=35 // pred_check_branch
        %834 = sbr.rel (%p832) target = $region40
      $region39: #{conv3d_for_d.3} parent=35 // pred_region
        %s835 = smul.u32 4, %s20
        %p836 = scmp.lt.s32.totalorder %s19, 1
        %s837 = scalar_select %p836, %s19, 1
        %p838 = scmp.lt.s32.totalorder %s835, 3
        %s839 = scalar_select %p838, %s835, 3
        %s840 = smul.addr %s837, 16
        %s841 = sadd.s32 %s839, %s840
        %s842 = smul.addr %s841, 8
        %s843 = scalar_lea.vmem %s2, %s842
      $region40: #{conv3d_for_d.3} parent=35 // pred_fallthru
        _
    $region36: #{conv3d_for_d.3} parent=5 // pred_fallthru
      _
  $region6: #{conv3d_for_d.3} parent=0 // loop_footer
    %s12 = sadd.s32 1, %s8
  $region7: #{conv3d_for_d.3} parent=0 // loop_footer_branch
    %7 = sbr.rel target = $region3
  $region8: #{conv3d_for_d.3} parent=0 // loop_exit
    _

// kernel: conv3d_for_d.2
$region0: #{conv3d_for_d.2}
  #allocation0 [shape = 'u32[]', space=smem, size = 0x4, offset = 0x4, fixed_abs, tag = 'smem constant byte address 0x4 - core index']
  #allocation1 [shape = 'u32[144,128]{1,0:T(1,128)}', space=vmem, size = 0x12000, scoped, tag = 'internal scratch']
  %s0 = inlined_call_operand.vmem [shape: bf16[2,10,10,40], index: 0, kind: input, shape index: {}]
  %s1 = inlined_call_operand.vmem [shape: bf16[9,40,256], index: 1, kind: input, shape index: {}]
  %s2 = inlined_call_operand.vmem [shape: f32[1,256], index: 2, kind: input, shape index: {}]
  %s3 = inlined_call_operand.vmem [shape: bf16[2,64,256], index: 3, kind: output, shape index: {0}]
  %s4 = inlined_call_operand.vmem [shape: f32[2,1,1,256], index: 4, kind: output, shape index: {1}]
  %5 = xla_tuple %s3, %s4
  %s6 = sld [smem:[#allocation0]]
  $region53: #{conv3d_for_d.2} parent=0
    _
  %s8 = ssub.s32 1, %s6
  %s9 = scalar_select 0, %s8, %s6
  loop: start=0, step=1, limit=4
  $region2: #{conv3d_for_d.2} parent=0 // loop_pre_header
    _
  $region3: #{conv3d_for_d.2} parent=0 // loop_header
    %s11 = sphi 0, %s15
    %p12 = scmp.ge.s32.totalorder %s11, 4
    %s18 = sphi 0, %s30
    %s19 = sphi 0, %s26
    %s20 = sphi 0, %s18
    %s21 = sphi 0, %s19
    %s22 = sphi 0, %s20
    %s23 = sphi 0, %s21
    %s33 = sphi 0, %s35
    %s36 = sphi 0, %s33
    %s37 = sphi 0, %s36
    %s53 = sphi 0, %s37
    %s57 = sphi 0, %s57
    %s59 = sphi 0, %s57
    %s60 = sphi 0, %s59
    %s74 = sphi 0, %s60
    %s78 = sphi 0, %s78
    %s80 = sphi 0, %s78
    %s81 = sphi 0, %s80
    %s95 = sphi 0, %s81
    %s103 = sphi 0, %s105
    %s106 = sphi 0, %s103
    %s107 = sphi 0, %s106
    %s123 = sphi 0, %s107
    %s131 = sphi 0, %s133
    %s134 = sphi 0, %s131
    %s135 = sphi 0, %s134
    %s151 = sphi 0, %s135
  $region4: #{conv3d_for_d.2} parent=0 // loop_header_branch
    %14 = sbr.rel (%p12) target = $region8
  $region5: #{conv3d_for_d.2} parent=0 // loop_body
    %s16 = ssub.s32 %s11, 1
    %s17 = ssub.s32 %s11, 2
    %s24 = sadd.s32 1, %s19
    %p25 = scmp.ge.s32.totalorder %s24, 1
    %s26 = scalar_select %p25, 0, %s24
    %s27 = sadd.s32 1, %s18
    %s28 = scalar_select %p25, %s27, %s18
    %p29 = scmp.ge.s32.totalorder %s28, 2
    %s30 = scalar_select %p29, 0, %s28
    %s31 = ssub.s32 %s18, %s30
    %p32 = scmp.eq.s32.totalorder %s31, 0
    %s34 = sadd.s32 %s33, 1
    %s35 = scalar_select %p32, %s33, %s34
    %p38 = pneg %p32
    %p39 = scmp.eq.s32.totalorder %s11, 1
    %p40 = por %p38, %p39
    %p41 = scmp.ne.s32.totalorder %s33, %s36
    %p42 = scmp.eq.s32.totalorder %s11, 0
    %p43 = por %p41, %p42
    %p44 = scmp.ne.s32.totalorder %s33, %s36
    %p45 = scmp.eq.s32.totalorder %s16, 1
    %p46 = por %p44, %p45
    %p47 = scmp.ne.s32.totalorder %s36, %s37
    %p48 = scmp.eq.s32.totalorder %s16, 0
    %p49 = por %p47, %p48
    %p50 = scmp.ne.s32.totalorder %s36, %s37
    %p51 = scmp.eq.s32.totalorder %s17, 1
    %p52 = por %p50, %p51
    %p54 = scmp.ne.s32.totalorder %s37, %s53
    %p55 = scmp.eq.s32.totalorder %s17, 0
    %p56 = por %p54, %p55
    %s58 = sadd.s32 %s57, 1
    %p61 = scmp.eq.s32.totalorder %s11, 1
    %p62 = scmp.ne.s32.totalorder %s57, %s59
    %p63 = scmp.eq.s32.totalorder %s11, 0
    %p64 = por %p62, %p63
    %p65 = scmp.ne.s32.totalorder %s57, %s59
    %p66 = scmp.eq.s32.totalorder %s16, 1
    %p67 = por %p65, %p66
    %p68 = scmp.ne.s32.totalorder %s59, %s60
    %p69 = scmp.eq.s32.totalorder %s16, 0
    %p70 = por %p68, %p69
    %p71 = scmp.ne.s32.totalorder %s59, %s60
    %p72 = scmp.eq.s32.totalorder %s17, 1
    %p73 = por %p71, %p72
    %p75 = scmp.ne.s32.totalorder %s60, %s74
    %p76 = scmp.eq.s32.totalorder %s17, 0
    %p77 = por %p75, %p76
    %s79 = sadd.s32 %s78, 1
    %p82 = scmp.eq.s32.totalorder %s11, 1
    %p83 = scmp.ne.s32.totalorder %s78, %s80
    %p84 = scmp.eq.s32.totalorder %s11, 0
    %p85 = por %p83, %p84
    %p86 = scmp.ne.s32.totalorder %s78, %s80
    %p87 = scmp.eq.s32.totalorder %s16, 1
    %p88 = por %p86, %p87
    %p89 = scmp.ne.s32.totalorder %s80, %s81
    %p90 = scmp.eq.s32.totalorder %s16, 0
    %p91 = por %p89, %p90
    %p92 = scmp.ne.s32.totalorder %s80, %s81
    %p93 = scmp.eq.s32.totalorder %s17, 1
    %p94 = por %p92, %p93
    %p96 = scmp.ne.s32.totalorder %s81, %s95
    %p97 = scmp.eq.s32.totalorder %s17, 0
    %p98 = por %p96, %p97
    %s99 = ssub.s32 %s18, %s30
    %s100 = ssub.s32 %s19, %s26
    %s101 = sor.u32 %s99, %s100
    %p102 = scmp.eq.s32.totalorder %s101, 0
    %s104 = sadd.s32 %s103, 1
    %s105 = scalar_select %p102, %s103, %s104
    %p108 = pneg %p102
    %p109 = scmp.eq.s32.totalorder %s11, 1
    %p110 = por %p108, %p109
    %p111 = scmp.ne.s32.totalorder %s103, %s106
    %p112 = scmp.eq.s32.totalorder %s11, 0
    %p113 = por %p111, %p112
    %p114 = scmp.ne.s32.totalorder %s103, %s106
    %p115 = scmp.eq.s32.totalorder %s16, 1
    %p116 = por %p114, %p115
    %p117 = scmp.ne.s32.totalorder %s106, %s107
    %p118 = scmp.eq.s32.totalorder %s16, 0
    %p119 = por %p117, %p118
    %p120 = scmp.ne.s32.totalorder %s106, %s107
    %p121 = scmp.eq.s32.totalorder %s17, 1
    %p122 = por %p120, %p121
    %p124 = scmp.ne.s32.totalorder %s107, %s123
    %p125 = scmp.eq.s32.totalorder %s17, 0
    %p126 = por %p124, %p125
    %s127 = ssub.s32 %s18, %s30
    %s128 = ssub.s32 %s19, %s26
    %s129 = sor.u32 %s127, %s128
    %p130 = scmp.eq.s32.totalorder %s129, 0
    %s132 = sadd.s32 %s131, 1
    %s133 = scalar_select %p130, %s131, %s132
    %p136 = pneg %p130
    %p137 = scmp.eq.s32.totalorder %s11, 1
    %p138 = por %p136, %p137
    %p139 = scmp.ne.s32.totalorder %s131, %s134
    %p140 = scmp.eq.s32.totalorder %s11, 0
    %p141 = por %p139, %p140
    %p142 = scmp.ne.s32.totalorder %s131, %s134
    %p143 = scmp.eq.s32.totalorder %s16, 1
    %p144 = por %p142, %p143
    %p145 = scmp.ne.s32.totalorder %s134, %s135
    %p146 = scmp.eq.s32.totalorder %s16, 0
    %p147 = por %p145, %p146
    %p148 = scmp.ne.s32.totalorder %s134, %s135
    %p149 = scmp.eq.s32.totalorder %s17, 1
    %p150 = por %p148, %p149
    %p152 = scmp.ne.s32.totalorder %s135, %s151
    %p153 = scmp.eq.s32.totalorder %s17, 0
    %p154 = por %p152, %p153
    %p155 = scmp.le.s32.totalorder 1, %s11
    %p156 = scmp.lt.s32.totalorder %s11, 3
    %p157 = pnand %p155, %p156
    %p158 = pneg %p157
    // Predicated region
    $region9: #{conv3d_for_d.2} parent=5 // pred_check
      _
    $region10: #{conv3d_for_d.2} parent=5 // pred_check_branch
      %160 = sbr.rel (%p157) target = $region12
    $region11: #{conv3d_for_d.2} parent=5 // pred_region
      %s161 = ssub.s32 %s11, 1
      // Predicated region
      $region13: #{conv3d_for_d.2} parent=11 // pred_check
        %p162 = pneg %p70
      $region14: #{conv3d_for_d.2} parent=11 // pred_check_branch
        %164 = sbr.rel (%p162) target = $region16
      $region15: #{conv3d_for_d.2} parent=11 // pred_region
        _
      $region16: #{conv3d_for_d.2} parent=11 // pred_fallthru
        _
      // Predicated region
      $region17: #{conv3d_for_d.2} parent=11 // pred_check
        %p165 = pneg %p91
      $region18: #{conv3d_for_d.2} parent=11 // pred_check_branch
        %167 = sbr.rel (%p165) target = $region20
      $region19: #{conv3d_for_d.2} parent=11 // pred_region
        _
      $region20: #{conv3d_for_d.2} parent=11 // pred_fallthru
        _
    $region12: #{conv3d_for_d.2} parent=5 // pred_fallthru
      _
    %p168 = scmp.lt.s32.totalorder %s11, 2
    // Predicated region
    $region21: #{conv3d_for_d.2} parent=5 // pred_check
      %p169 = pneg %p168
    $region22: #{conv3d_for_d.2} parent=5 // pred_check_branch
      %171 = sbr.rel (%p169) target = $region24
    $region23: #{conv3d_for_d.2} parent=5 // pred_region
      // Predicated region
      $region25: #{conv3d_for_d.2} parent=23 // pred_check
        %p172 = pneg %p43
      $region26: #{conv3d_for_d.2} parent=23 // pred_check_branch
        %174 = sbr.rel (%p172) target = $region28
      $region27: #{conv3d_for_d.2} parent=23 // pred_region
        %p175 = scmp.lt.s32.totalorder %s18, 1
        %s176 = scalar_select %p175, %s18, 1
        %s177 = smul.addr %s176, 20
        %s178 = smul.addr %s177, 4
        %s179 = scalar_lea.vmem %s0, %s178
      $region28: #{conv3d_for_d.2} parent=23 // pred_fallthru
        _
    $region24: #{conv3d_for_d.2} parent=5 // pred_fallthru
      _
    %p180 = scmp.le.s32.totalorder 1, %s11
    %p181 = scmp.lt.s32.totalorder %s11, 3
    %p182 = pnand %p180, %p181
    %p183 = pneg %p182
    // Predicated region
    $region29: #{conv3d_for_d.2} parent=5 // pred_check
      _
    $region30: #{conv3d_for_d.2} parent=5 // pred_check_branch
      %185 = sbr.rel (%p182) target = $region32
    $region31: #{conv3d_for_d.2} parent=5 // pred_region
      %s186 = ssub.s32 %s11, 1
      %p187 = scmp.lt.s32.totalorder %s20, 1
      %s188 = scalar_select %p187, %s20, 1
      %s189 = smul.addr %s188, 20
      %s190 = smul.addr %s189, 4
      %s191 = scalar_lea.vmem %s0, %s190
      %p192 = pneg %p49
      %p193 = pneg %p46
      %p194 = pneg %p70
      %p195 = pneg %p67
      %p196 = pneg %p91
      %p197 = pneg %p88
      %p198 = pneg %p119
      %p199 = pneg %p116
      %s200 = smul.u32 8, %s21
      %p201 = scmp.lt.s32.totalorder %s20, 1
      %s202 = scalar_select %p201, %s20, 1
      %p203 = scmp.lt.s32.totalorder %s200, 7
      %s204 = scalar_select %p203, %s200, 7
      %s205 = smul.addr %s204, 2
      %s206 = smul.addr %s202, 16
      %s207 = sadd.s32 %s205, %s206
      %s208 = smul.addr %s207, 4
      %s209 = scalar_lea.vmem %s3, %s208
      %p210 = pneg %p147
      %p211 = pneg %p144
      %p212 = scmp.lt.s32.totalorder %s20, 1
      %s213 = scalar_select %p212, %s20, 1
      %p214 = scmp.lt.s32.totalorder %s21, 0
      %s215 = scalar_select %p214, %s21, 0
      %s216 = smul.addr %s215, 2
      %s217 = smul.addr %s213, 2
      %s218 = sadd.s32 %s216, %s217
      %s219 = scalar_lea.vmem %s4, %s218
      %p220 = scmp.lt.s32.totalorder %s20, 1
      %s221 = scalar_select %p220, %s20, 1
      %s222 = smul.addr %s221, 20
      %s223 = smul.addr %s222, 4
      %s224 = scalar_lea.vmem %s0, %s223
      %s225 = smul.u32 8, %s21
      %p226 = scmp.lt.s32.totalorder %s20, 1
      %s227 = scalar_select %p226, %s20, 1
      %p228 = scmp.lt.s32.totalorder %s225, 7
      %s229 = scalar_select %p228, %s225, 7
      %s230 = smul.addr %s229, 2
      %s231 = smul.addr %s227, 16
      %s232 = sadd.s32 %s230, %s231
      %s233 = smul.addr %s232, 4
      %s234 = scalar_lea.vmem %s3, %s233
      %s235 = smul.u32 8, %s21
      %p236 = scmp.lt.s32.totalorder %s20, 1
      %s237 = scalar_select %p236, %s20, 1
      %p238 = scmp.lt.s32.totalorder %s21, 0
      %s239 = scalar_select %p238, %s21, 0
      %s240 = smul.addr %s239, 2
      %s241 = smul.addr %s237, 2
      %s242 = sadd.s32 %s240, %s241
      %s243 = scalar_lea.vmem %s4, %s242
      %s245 = smul.u32 %s21, 8
      %s246 = smul.u32 %s245, 2
      %s247 = smul.addr %s246, 4
      %s248 = scalar_lea.vmem %s224, %s247
      %v249 = vld [vmem:[%s248] sm:$0xf]
      %v250 = vld [vmem:[%s248 + $0x8] sm:$0xf]
      %v251 = vld [vmem:[%s248 + $0x10] sm:$0xf]
      %v252 = vld [vmem:[%s248 + $0x18] sm:$0xf]
      %v253 = vld [vmem:[%s248 + $0x20] sm:$0xf]
      %v254 = vld [vmem:[%s248 + $0x28] sm:$0xf]
      %v255 = vld [vmem:[%s248 + $0x30] sm:$0xf]
      %v256 = vld [vmem:[%s248 + $0x38] sm:$0xf]
      %v257 = vld [vmem:[%s1] sm:$0xff]
      %v258 = vld [vmem:[%s1 + $0x8] sm:$0xff]
      %v259 = vld [vmem:[%s1 + $0x10] sm:$0xff]
      %v260 = vld [vmem:[%s1 + $0x18] sm:$0xff]
      %v261 = vld [vmem:[%s1 + $0x20] sm:$0xff]
      %v262 = vld [vmem:[%s248 + $0x4] sm:$0x1]
      %v263 = vld [vmem:[%s248 + $0xc] sm:$0x1]
      %v264 = vld [vmem:[%s248 + $0x14] sm:$0x1]
      %v265 = vld [vmem:[%s248 + $0x1c] sm:$0x1]
      %v266 = vld [vmem:[%s248 + $0x24] sm:$0x1]
      %v267 = vld [vmem:[%s248 + $0x2c] sm:$0x1]
      %v268 = vld [vmem:[%s248 + $0x34] sm:$0x1]
      %v269 = vld [vmem:[%s248 + $0x3c] sm:$0x1]
      %vm270 = vsmask.f32 3328
      %vm271 = vsmask.f32 7440
      %vm272 = vmor %vm270, %vm271
      %v274 = vshrl.u32 %v249, 16
      %v276 = vrot.slane %v274, 4
      %v277 = vshll.u32 %v249, 16
      %v279 = vrot.slane %v277, 5
      %v280 = vor.u32 %v276, %v279
      %v281 = vrot.slane %v280, 4
      %v283 = vshll.u32 %v262, 16
      %v285 = vrot.slane %v283, 5
      %v286 = vsel %vm272, %v281, %v285
      %v288 = vshrl.u32 %v250, 16
      %v290 = vrot.slane %v288, 4
      %v291 = vshll.u32 %v250, 16
      %v293 = vrot.slane %v291, 5
      %v294 = vor.u32 %v290, %v293
      %v295 = vrot.slane %v294, 4
      %v297 = vshll.u32 %v263, 16
      %v299 = vrot.slane %v297, 5
      %v300 = vsel %vm272, %v295, %v299
      %v302 = vshrl.u32 %v251, 16
      %v304 = vrot.slane %v302, 4
      %v305 = vshll.u32 %v251, 16
      %v307 = vrot.slane %v305, 5
      %v308 = vor.u32 %v304, %v307
      %v309 = vrot.slane %v308, 4
      %v311 = vshll.u32 %v264, 16
      %v313 = vrot.slane %v311, 5
      %v314 = vsel %vm272, %v309, %v313
      %v316 = vshrl.u32 %v252, 16
      %v318 = vrot.slane %v316, 4
      %v319 = vshll.u32 %v252, 16
      %v321 = vrot.slane %v319, 5
      %v322 = vor.u32 %v318, %v321
      %v323 = vrot.slane %v322, 4
      %v325 = vshll.u32 %v265, 16
      %v327 = vrot.slane %v325, 5
      %v328 = vsel %vm272, %v323, %v327
      %v330 = vshrl.u32 %v253, 16
      %v332 = vrot.slane %v330, 4
      %v333 = vshll.u32 %v253, 16
      %v335 = vrot.slane %v333, 5
      %v336 = vor.u32 %v332, %v335
      %v337 = vrot.slane %v336, 4
      %v339 = vshll.u32 %v266, 16
      %v341 = vrot.slane %v339, 5
      %v342 = vsel %vm272, %v337, %v341
      %v344 = vshrl.u32 %v254, 16
      %v346 = vrot.slane %v344, 4
      %v347 = vshll.u32 %v254, 16
      %v349 = vrot.slane %v347, 5
      %v350 = vor.u32 %v346, %v349
      %v351 = vrot.slane %v350, 4
      %v353 = vshll.u32 %v267, 16
      %v355 = vrot.slane %v353, 5
      %v356 = vsel %vm272, %v351, %v355
      %v358 = vshrl.u32 %v255, 16
      %v360 = vrot.slane %v358, 4
      %v361 = vshll.u32 %v255, 16
      %v363 = vrot.slane %v361, 5
      %v364 = vor.u32 %v360, %v363
      %v365 = vrot.slane %v364, 4
      %v367 = vshll.u32 %v268, 16
      %v369 = vrot.slane %v367, 5
      %v370 = vsel %vm272, %v365, %v369
      %v372 = vshrl.u32 %v256, 16
      %v374 = vrot.slane %v372, 4
      %v375 = vshll.u32 %v256, 16
      %v377 = vrot.slane %v375, 5
      %v378 = vor.u32 %v374, %v377
      %v379 = vrot.slane %v378, 4
      %v381 = vshll.u32 %v269, 16
      %v383 = vrot.slane %v381, 5
      %v384 = vsel %vm272, %v379, %v383
      %s385 = scalar_lea.vmem %s1, 40
      %v386 = vld [vmem:[%s385] sm:$0xff]
      %v387 = vld [vmem:[%s385 + $0x8] sm:$0xff]
      %v388 = vld [vmem:[%s385 + $0x10] sm:$0xff]
      %v389 = vld [vmem:[%s385 + $0x18] sm:$0xff]
      %v390 = vld [vmem:[%s385 + $0x20] sm:$0xff]
      %v391 = vunpack.c.l.b16 %v286
      %v392 = vunpack.c.l.b16 %v300
      %v393 = vunpack.c.l.b16 %v314
      %v394 = vunpack.c.l.b16 %v328
      %v395 = vunpack.c.l.b16 %v342
      %v396 = vunpack.c.l.b16 %v356
      %v397 = vunpack.c.l.b16 %v370
      %v398 = vunpack.c.l.b16 %v384
      %v399 = vpack.c.b16 %v392, %v391
      %v400 = vpack.c.b16 %v394, %v393
      %v401 = vpack.c.b16 %v396, %v395
      %v402 = vpack.c.b16 %v398, %v397
      %v408 = vunpack.c.l.b16 %v386
      %v409 = vunpack.c.h.b16 %v386
      %v410 = vunpack.c.l.b16 %v387
      %v411 = vunpack.c.h.b16 %v387
      %v412 = vunpack.c.l.b16 %v388
      %v413 = vunpack.c.h.b16 %v388
      %v414 = vunpack.c.l.b16 %v389
      %v415 = vunpack.c.h.b16 %v389
      %v416 = vunpack.c.l.b16 %v390
      %v417 = vunpack.c.h.b16 %v390
      %v418 = vpack.c.b16 %v410, %v408
      %v419 = vpack.c.b16 %v411, %v409
      %v420 = vpack.c.b16 %v414, %v412
      %v421 = vpack.c.b16 %v415, %v413
      %v422 = vpack.c.b16 %v416, %v416
      %v423 = vpack.c.b16 %v417, %v417
      %vm428 = vcmask 326656
      %v430 = vsel %vm428, %v399, 0
      %v433 = vsel %vm428, %v400, 0
      %v436 = vsel %vm428, %v401, 0
      %v439 = vsel %vm428, %v402, 0
      %vm441 = vcmask 1043456
      %v443 = vsel %vm441, %v422, 0
      %v446 = vsel %vm441, %v423, 0
      %448 = vmatprep.subr.bf16.mxu0 %v419
      %449 = vmatpush1.bf16.msra.mxu0 %v418
      %450 = vmatprep.subr.bf16.mxu0 %v421
      %451 = vmatpush1.bf16.msra.mxu0 %v420
      %452 = vmatprep.subr.bf16.mxu0 %v446
      %453 = vmatpush1.bf16.msra.mxu0 %v443
      %454 = vmatprep.subr.bf16.mxu0 0
      %455 = vmatpush1.bf16.msra.mxu0 0
      %456 = vmatprep.subr.bf16.mxu0 0
      %457 = vmatpush1.bf16.msra.mxu0 0
      %458 = vmatprep.subr.bf16.mxu0 0
      %459 = vmatpush1.bf16.msra.mxu0 0
      %460 = vmatprep.subr.bf16.mxu0 0
      %461 = vmatpush1.bf16.msra.mxu0 0
      %462 = vmatprep.subr.bf16.mxu0 0
      %463 = vmatpush1.bf16.msra.mxu0 0
      %464 = vmatprep.subr.bf16.mxu0 0
      %465 = vmatpush1.bf16.msra.mxu0 0
      %466 = vmatprep.subr.bf16.mxu0 0
      %467 = vmatpush1.bf16.msra.mxu0 0
      %468 = vmatprep.subr.bf16.mxu0 0
      %469 = vmatpush1.bf16.msra.mxu0 0
      %470 = vmatprep.subr.bf16.mxu0 0
      %471 = vmatpush1.bf16.msra.mxu0 0
      %472 = vmatprep.subr.bf16.mxu0 0
      %473 = vmatpush1.bf16.msra.mxu0 0
      %474 = vmatprep.subr.bf16.mxu0 0
      %475 = vmatpush1.bf16.msra.mxu0 0
      %476 = vmatprep.subr.bf16.mxu0 0
      %477 = vmatpush1.bf16.msra.mxu0 0
      %478 = vmatprep.subr.bf16.mxu0 0
      %479 = vmatpush1.bf16.msra.mxu0 0
      %480 = vmatprep.mubr.bf16.mxu0 0
      %481 = vmatmul.mubr.bf16.gmra.mrb[0].mxu0 %v430
      %v482 = vpop.f32.mrb[0].mxu0
      %v483 = vadd.f32 0.0, %v482
      %v484 = vpop.f32.mrb[0].mxu0
      %v485 = vadd.f32 0.0, %v484
      %v486 = vpop.f32.mrb[0].mxu0
      %v487 = vadd.f32 0.0, %v486
      %v488 = vpop.f32.mrb[0].mxu0
      %v489 = vadd.f32 0.0, %v488
      %490 = vmatprep.mubr.bf16.mxu0 0
      %491 = vmatmul.mubr.bf16.gmra.mrb[0].mxu0 %v433
      %v492 = vpop.f32.mrb[0].mxu0
      %v493 = vadd.f32 0.0, %v492
      %v494 = vpop.f32.mrb[0].mxu0
      %v495 = vadd.f32 0.0, %v494
      %v496 = vpop.f32.mrb[0].mxu0
      %v497 = vadd.f32 0.0, %v496
      %v498 = vpop.f32.mrb[0].mxu0
      %v499 = vadd.f32 0.0, %v498
      %500 = vmatprep.mubr.bf16.mxu0 0
      %501 = vmatmul.mubr.bf16.gmra.mrb[0].mxu0 %v436
      %v502 = vpop.f32.mrb[0].mxu0
      %v503 = vadd.f32 0.0, %v502
      %v504 = vpop.f32.mrb[0].mxu0
      %v505 = vadd.f32 0.0, %v504
      %v506 = vpop.f32.mrb[0].mxu0
      %v507 = vadd.f32 0.0, %v506
      %v508 = vpop.f32.mrb[0].mxu0
      %v509 = vadd.f32 0.0, %v508
      %510 = vmatprep.mubr.bf16.mxu0 0
      %511 = vmatmul.mubr.bf16.gmra.mrb[0].mxu0 %v439
      %v512 = vpop.f32.mrb[0].mxu0
      %v513 = vadd.f32 0.0, %v512
      %v514 = vpop.f32.mrb[0].mxu0
      %v515 = vadd.f32 0.0, %v514
      %v516 = vpop.f32.mrb[0].mxu0
      %v517 = vadd.f32 0.0, %v516
      %v518 = vpop.f32.mrb[0].mxu0
      %v519 = vadd.f32 0.0, %v518
      %520 = vdwg.mxu0
      %v529 = vunpack.c.l.b16 %v249
      %v530 = vunpack.c.l.b16 %v250
      %v531 = vunpack.c.l.b16 %v251
      %v532 = vunpack.c.l.b16 %v252
      %v533 = vunpack.c.l.b16 %v253
      %v534 = vunpack.c.l.b16 %v254
      %v535 = vunpack.c.l.b16 %v255
      %v536 = vunpack.c.l.b16 %v256
      %v537 = vpack.c.b16 %v530, %v529
      %v538 = vpack.c.b16 %v532, %v531
      %v539 = vpack.c.b16 %v534, %v533
      %v540 = vpack.c.b16 %v536, %v535
      %v546 = vunpack.c.l.b16 %v257
      %v547 = vunpack.c.h.b16 %v257
      %v548 = vunpack.c.l.b16 %v258
      %v549 = vunpack.c.h.b16 %v258
      %v550 = vunpack.c.l.b16 %v259
      %v551 = vunpack.c.h.b16 %v259
      %v552 = vunpack.c.l.b16 %v260
      %v553 = vunpack.c.h.b16 %v260
      %v554 = vunpack.c.l.b16 %v261
      %v555 = vunpack.c.h.b16 %v261
      %v556 = vpack.c.b16 %v548, %v546
      %v557 = vpack.c.b16 %v549, %v547
      %v558 = vpack.c.b16 %v552, %v550
      %v559 = vpack.c.b16 %v553, %v551
      %v560 = vpack.c.b16 %v554, %v554
      %v561 = vpack.c.b16 %v555, %v555
      %v567 = vsel %vm428, %v537, 0
      %v570 = vsel %vm428, %v538, 0
      %v573 = vsel %vm428, %v539, 0
      %v576 = vsel %vm428, %v540, 0
      %v579 = vsel %vm441, %v560, 0
      %v582 = vsel %vm441, %v561, 0
      %584 = vmatprep.subr.bf16.mxu0 %v557
      %585 = vmatpush1.bf16.msra.mxu0 %v556
      %586 = vmatprep.subr.bf16.mxu0 %v559
      %587 = vmatpush1.bf16.msra.mxu0 %v558
      %588 = vmatprep.subr.bf16.mxu0 %v582
      %589 = vmatpush1.bf16.msra.mxu0 %v579
      %590 = vmatprep.subr.bf16.mxu0 0
      %591 = vmatpush1.bf16.msra.mxu0 0
      %592 = vmatprep.subr.bf16.mxu0 0
      %593 = vmatpush1.bf16.msra.mxu0 0
      %594 = vmatprep.subr.bf16.mxu0 0
      %595 = vmatpush1.bf16.msra.mxu0 0
      %596 = vmatprep.subr.bf16.mxu0 0
      %597 = vmatpush1.bf16.msra.mxu0 0
      %598 = vmatprep.subr.bf16.mxu0 0
      %599 = vmatpush1.bf16.msra.mxu0 0
      %600 = vmatprep.subr.bf16.mxu0 0
      %601 = vmatpush1.bf16.msra.mxu0 0
      %602 = vmatprep.subr.bf16.mxu0 0
      %603 = vmatpush1.bf16.msra.mxu0 0
      %604 = vmatprep.subr.bf16.mxu0 0
      %605 = vmatpush1.bf16.msra.mxu0 0
      %606 = vmatprep.subr.bf16.mxu0 0
      %607 = vmatpush1.bf16.msra.mxu0 0
      %608 = vmatprep.subr.bf16.mxu0 0
      %609 = vmatpush1.bf16.msra.mxu0 0
      %610 = vmatprep.subr.bf16.mxu0 0
      %611 = vmatpush1.bf16.msra.mxu0 0
      %612 = vmatprep.subr.bf16.mxu0 0
      %613 = vmatpush1.bf16.msra.mxu0 0
      %614 = vmatprep.subr.bf16.mxu0 0
      %615 = vmatpush1.bf16.msra.mxu0 0
      %616 = vmatprep.mubr.bf16.mxu0 0
      %617 = vmatmul.mubr.bf16.gmra.mrb[0].mxu0 %v567
      %v618 = vpop.f32.mrb[0].mxu0
      %v619 = vadd.f32 %v483, %v618
      %v620 = vpop.f32.mrb[0].mxu0
      %v621 = vadd.f32 %v485, %v620
      %v622 = vpop.f32.mrb[0].mxu0
      %v623 = vadd.f32 %v487, %v622
      %v624 = vpop.f32.mrb[0].mxu0
      %v625 = vadd.f32 %v489, %v624
      %626 = vmatprep.mubr.bf16.mxu0 0
      %627 = vmatmul.mubr.bf16.gmra.mrb[0].mxu0 %v570
      %v628 = vpop.f32.mrb[0].mxu0
      %v629 = vadd.f32 %v493, %v628
      %v630 = vpop.f32.mrb[0].mxu0
      %v631 = vadd.f32 %v495, %v630
      %v632 = vpop.f32.mrb[0].mxu0
      %v633 = vadd.f32 %v497, %v632
      %v634 = vpop.f32.mrb[0].mxu0
      %v635 = vadd.f32 %v499, %v634
      %636 = vmatprep.mubr.bf16.mxu0 0
      %637 = vmatmul.mubr.bf16.gmra.mrb[0].mxu0 %v573
      %v638 = vpop.f32.mrb[0].mxu0
      %v639 = vadd.f32 %v503, %v638
      %v640 = vpop.f32.mrb[0].mxu0
      %v641 = vadd.f32 %v505, %v640
      %v642 = vpop.f32.mrb[0].mxu0
      %v643 = vadd.f32 %v507, %v642
      %v644 = vpop.f32.mrb[0].mxu0
      %v645 = vadd.f32 %v509, %v644
      %646 = vmatprep.mubr.bf16.mxu0 0
      %647 = vmatmul.mubr.bf16.gmra.mrb[0].mxu0 %v576
      %v648 = vpop.f32.mrb[0].mxu0
      %v649 = vadd.f32 %v513, %v648
      %v650 = vpop.f32.mrb[0].mxu0
      %v651 = vadd.f32 %v515, %v650
      %v652 = vpop.f32.mrb[0].mxu0
      %v653 = vadd.f32 %v517, %v652
      %v654 = vpop.f32.mrb[0].mxu0
      %v655 = vadd.f32 %v519, %v654
      %656 = vdwg.mxu0
      %v657 = vld [vmem:[%s248] sm:$0xe]
      %v658 = vld [vmem:[%s248 + $0x8] sm:$0xe]
      %v659 = vld [vmem:[%s248 + $0x10] sm:$0xe]
      %v660 = vld [vmem:[%s248 + $0x18] sm:$0xe]
      %v661 = vld [vmem:[%s248 + $0x20] sm:$0xe]
      %v662 = vld [vmem:[%s248 + $0x28] sm:$0xe]
      %v663 = vld [vmem:[%s248 + $0x30] sm:$0xe]
      %v664 = vld [vmem:[%s248 + $0x38] sm:$0xe]
      %vm681 = vcmask 1042432
      %vm682 = vcmask 1046532
      %vm683 = vmor %vm681, %vm682
      %v684 = vrot.slane %v657, 5
      %v685 = vrot.slane %v684, 4
      %v686 = vrot.slane %v262, 5
      %v687 = vsel %vm683, %v685, %v686
      %v688 = vrot.slane %v658, 5
      %v689 = vrot.slane %v688, 4
      %v690 = vrot.slane %v263, 5
      %v691 = vsel %vm683, %v689, %v690
      %v692 = vrot.slane %v659, 5
      %v693 = vrot.slane %v692, 4
      %v694 = vrot.slane %v264, 5
      %v695 = vsel %vm683, %v693, %v694
      %v696 = vrot.slane %v660, 5
      %v697 = vrot.slane %v696, 4
      %v698 = vrot.slane %v265, 5
      %v699 = vsel %vm683, %v697, %v698
      %v700 = vrot.slane %v661, 5
      %v701 = vrot.slane %v700, 4
      %v702 = vrot.slane %v266, 5
      %v703 = vsel %vm683, %v701, %v702
      %v704 = vrot.slane %v662, 5
      %v705 = vrot.slane %v704, 4
      %v706 = vrot.slane %v267, 5
      %v707 = vsel %vm683, %v705, %v706
      %v708 = vrot.slane %v663, 5
      %v709 = vrot.slane %v708, 4
      %v710 = vrot.slane %v268, 5
      %v711 = vsel %vm683, %v709, %v710
      %v712 = vrot.slane %v664, 5
      %v713 = vrot.slane %v712, 4
      %v714 = vrot.slane %v269, 5
      %v715 = vsel %vm683, %v713, %v714
      %s716 = scalar_lea.vmem %s1, 80
      %v717 = vld [vmem:[%s716] sm:$0xff]
      %v718 = vld [vmem:[%s716 + $0x8] sm:$0xff]
      %v719 = vld [vmem:[%s716 + $0x10] sm:$0xff]
      %v720 = vld [vmem:[%s716 + $0x18] sm:$0xff]
      %v721 = vld [vmem:[%s716 + $0x20] sm:$0xff]
      %v722 = vunpack.c.l.b16 %v687
      %v723 = vunpack.c.l.b16 %v691
      %v724 = vunpack.c.l.b16 %v695
      %v725 = vunpack.c.l.b16 %v699
      %v726 = vunpack.c.l.b16 %v703
      %v727 = vunpack.c.l.b16 %v707
      %v728 = vunpack.c.l.b16 %v711
      %v729 = vunpack.c.l.b16 %v715
      %v730 = vpack.c.b16 %v723, %v722
      %v731 = vpack.c.b16 %v725, %v724
      %v732 = vpack.c.b16 %v727, %v726
      %v733 = vpack.c.b16 %v729, %v728
      %v739 = vunpack.c.l.b16 %v717
      %v740 = vunpack.c.h.b16 %v717
      %v741 = vunpack.c.l.b16 %v718
      %v742 = vunpack.c.h.b16 %v718
      %v743 = vunpack.c.l.b16 %v719
      %v744 = vunpack.c.h.b16 %v719
      %v745 = vunpack.c.l.b16 %v720
      %v746 = vunpack.c.h.b16 %v720
      %v747 = vunpack.c.l.b16 %v721
      %v748 = vunpack.c.h.b16 %v721
      %v749 = vpack.c.b16 %v741, %v739
      %v750 = vpack.c.b16 %v742, %v740
      %v751 = vpack.c.b16 %v745, %v743
      %v752 = vpack.c.b16 %v746, %v744
      %v753 = vpack.c.b16 %v747, %v747
      %v754 = vpack.c.b16 %v748, %v748
      %v760 = vsel %vm428, %v730, 0
      %v763 = vsel %vm428, %v731, 0
      %v766 = vsel %vm428, %v732, 0
      %v769 = vsel %vm428, %v733, 0
      %v772 = vsel %vm441, %v753, 0
      %v775 = vsel %vm441, %v754, 0
      %777 = vmatprep.subr.bf16.mxu0 %v750
      %778 = vmatpush1.bf16.msra.mxu0 %v749
      %779 = vmatprep.subr.bf16.mxu0 %v752
      %780 = vmatpush1.bf16.msra.mxu0 %v751
      %781 = vmatprep.subr.bf16.mxu0 %v775
      %782 = vmatpush1.bf16.msra.mxu0 %v772
      %783 = vmatprep.subr.bf16.mxu0 0
      %784 = vmatpush1.bf16.msra.mxu0 0
      %785 = vmatprep.subr.bf16.mxu0 0
      %786 = vmatpush1.bf16.msra.mxu0 0
      %787 = vmatprep.subr.bf16.mxu0 0
      %788 = vmatpush1.bf16.msra.mxu0 0
      %789 = vmatprep.subr.bf16.mxu0 0
      %790 = vmatpush1.bf16.msra.mxu0 0
      %791 = vmatprep.subr.bf16.mxu0 0
      %792 = vmatpush1.bf16.msra.mxu0 0
      %793 = vmatprep.subr.bf16.mxu0 0
      %794 = vmatpush1.bf16.msra.mxu0 0
      %795 = vmatprep.subr.bf16.mxu0 0
      %796 = vmatpush1.bf16.msra.mxu0 0
      %797 = vmatprep.subr.bf16.mxu0 0
      %798 = vmatpush1.bf16.msra.mxu0 0
      %799 = vmatprep.subr.bf16.mxu0 0
      %800 = vmatpush1.bf16.msra.mxu0 0
      %801 = vmatprep.subr.bf16.mxu0 0
      %802 = vmatpush1.bf16.msra.mxu0 0
      %803 = vmatprep.subr.bf16.mxu0 0
      %804 = vmatpush1.bf16.msra.mxu0 0
      %805 = vmatprep.subr.bf16.mxu0 0
      %806 = vmatpush1.bf16.msra.mxu0 0
      %807 = vmatprep.subr.bf16.mxu0 0
      %808 = vmatpush1.bf16.msra.mxu0 0
      %809 = vmatprep.mubr.bf16.mxu0 0
      %810 = vmatmul.mubr.bf16.gmra.mrb[0].mxu0 %v760
      %v811 = vpop.f32.mrb[0].mxu0
      %v812 = vadd.f32 0.0, %v811
      %v813 = vpop.f32.mrb[0].mxu0
      %v814 = vadd.f32 0.0, %v813
      %v815 = vpop.f32.mrb[0].mxu0
      %v816 = vadd.f32 0.0, %v815
      %v817 = vpop.f32.mrb[0].mxu0
      %v818 = vadd.f32 0.0, %v817
      %819 = vmatprep.mubr.bf16.mxu0 0
      %820 = vmatmul.mubr.bf16.gmra.mrb[0].mxu0 %v763
      %v821 = vpop.f32.mrb[0].mxu0
      %v822 = vadd.f32 0.0, %v821
      %v823 = vpop.f32.mrb[0].mxu0
      %v824 = vadd.f32 0.0, %v823
      %v825 = vpop.f32.mrb[0].mxu0
      %v826 = vadd.f32 0.0, %v825
      %v827 = vpop.f32.mrb[0].mxu0
      %v828 = vadd.f32 0.0, %v827
      %829 = vmatprep.mubr.bf16.mxu0 0
      %830 = vmatmul.mubr.bf16.gmra.mrb[0].mxu0 %v766
      %v831 = vpop.f32.mrb[0].mxu0
      %v832 = vadd.f32 0.0, %v831
      %v833 = vpop.f32.mrb[0].mxu0
      %v834 = vadd.f32 0.0, %v833
      %v835 = vpop.f32.mrb[0].mxu0
      %v836 = vadd.f32 0.0, %v835
      %v837 = vpop.f32.mrb[0].mxu0
      %v838 = vadd.f32 0.0, %v837
      %839 = vmatprep.mubr.bf16.mxu0 0
      %840 = vmatmul.mubr.bf16.gmra.mrb[0].mxu0 %v769
      %v841 = vpop.f32.mrb[0].mxu0
      %v842 = vadd.f32 0.0, %v841
      %v843 = vpop.f32.mrb[0].mxu0
      %v844 = vadd.f32 0.0, %v843
      %v845 = vpop.f32.mrb[0].mxu0
      %v846 = vadd.f32 0.0, %v845
      %v847 = vpop.f32.mrb[0].mxu0
      %v848 = vadd.f32 0.0, %v847
      %849 = vdwg.mxu0
      %v850 = vadd.f32 %v619, %v812
      %v851 = vadd.f32 %v621, %v814
      %v852 = vadd.f32 %v623, %v816
      %v853 = vadd.f32 %v625, %v818
      %v854 = vadd.f32 %v629, %v822
      %v855 = vadd.f32 %v631, %v824
      %v856 = vadd.f32 %v633, %v826
      %v857 = vadd.f32 %v635, %v828
      %v858 = vadd.f32 %v639, %v832
      %v859 = vadd.f32 %v641, %v834
      %v860 = vadd.f32 %v643, %v836
      %v861 = vadd.f32 %v645, %v838
      %v862 = vadd.f32 %v649, %v842
      %v863 = vadd.f32 %v651, %v844
      %v864 = vadd.f32 %v653, %v846
      %v865 = vadd.f32 %v655, %v848
      %s866 = sadd.s32 %s245, 1
      %s867 = smul.u32 %s866, 2
      %s868 = smul.addr %s867, 4
      %s869 = scalar_lea.vmem %s224, %s868
      %v870 = vld [vmem:[%s869] sm:$0xf]
      %v871 = vld [vmem:[%s869 + $0x8] sm:$0xf]
      %v872 = vld [vmem:[%s869 + $0x10] sm:$0xf]
      %v873 = vld [vmem:[%s869 + $0x18] sm:$0xf]
      %v874 = vld [vmem:[%s869 + $0x20] sm:$0xf]
      %v875 = vld [vmem:[%s869 + $0x28] sm:$0xf]
      %v876 = vld [vmem:[%s869 + $0x30] sm:$0xf]
      %v877 = vld [vmem:[%s869 + $0x38] sm:$0xf]
      %s878 = scalar_lea.vmem %s1, 120
      %v879 = vld [vmem:[%s878] sm:$0xff]
      %v880 = vld [vmem:[%s878 + $0x8] sm:$0xff]
      %v881 = vld [vmem:[%s878 + $0x10] sm:$0xff]
      %v882 = vld [vmem:[%s878 + $0x18] sm:$0xff]
      %v883 = vld [vmem:[%s878 + $0x20] sm:$0xff]
      %v892 = vunpack.c.l.b16 %v870
      %v893 = vunpack.c.l.b16 %v871
      %v894 = vunpack.c.l.b16 %v872
      %v895 = vunpack.c.l.b16 %v873
      %v896 = vunpack.c.l.b16 %v874
      %v897 = vunpack.c.l.b16 %v875
      %v898 = vunpack.c.l.b16 %v876
      %v899 = vunpack.c.l.b16 %v877
      %v900 = vpack.c.b16 %v893, %v892
      %v901 = vpack.c.b16 %v895, %v894
      %v902 = vpack.c.b16 %v897, %v896
      %v903 = vpack.c.b16 %v899, %v898
      %v909 = vunpack.c.l.b16 %v879
      %v910 = vunpack.c.h.b16 %v879
      %v911 = vunpack.c.l.b16 %v880
      %v912 = vunpack.c.h.b16 %v880
      %v913 = vunpack.c.l.b16 %v881
      %v914 = vunpack.c.h.b16 %v881
      %v915 = vunpack.c.l.b16 %v882
      %v916 = vunpack.c.h.b16 %v882
      %v917 = vunpack.c.l.b16 %v883
      %v918 = vunpack.c.h.b16 %v883
      %v919 = vpack.c.b16 %v911, %v909
      %v920 = vpack.c.b16 %v912, %v910
      %v921 = vpack.c.b16 %v915, %v913
      %v922 = vpack.c.b16 %v916, %v914
      %v923 = vpack.c.b16 %v917, %v917
      %v924 = vpack.c.b16 %v918, %v918
      %v930 = vsel %vm428, %v900, 0
      %v933 = vsel %vm428, %v901, 0
      %v936 = vsel %vm428, %v902, 0
      %v939 = vsel %vm428, %v903, 0
      %v942 = vsel %vm441, %v923, 0
      %v945 = vsel %vm441, %v924, 0
      %947 = vmatprep.subr.bf16.mxu0 %v920
      %948 = vmatpush1.bf16.msra.mxu0 %v919
      %949 = vmatprep.subr.bf16.mxu0 %v922
      %950 = vmatpush1.bf16.msra.mxu0 %v921
      %951 = vmatprep.subr.bf16.mxu0 %v945
      %952 = vmatpush1.bf16.msra.mxu0 %v942
      %953 = vmatprep.subr.bf16.mxu0 0
      %954 = vmatpush1.bf16.msra.mxu0 0
      %955 = vmatprep.subr.bf16.mxu0 0
      %956 = vmatpush1.bf16.msra.mxu0 0
      %957 = vmatprep.subr.bf16.mxu0 0
      %958 = vmatpush1.bf16.msra.mxu0 0
      %959 = vmatprep.subr.bf16.mxu0 0
      %960 = vmatpush1.bf16.msra.mxu0 0
      %961 = vmatprep.subr.bf16.mxu0 0
      %962 = vmatpush1.bf16.msra.mxu0 0
      %963 = vmatprep.subr.bf16.mxu0 0
      %964 = vmatpush1.bf16.msra.mxu0 0
      %965 = vmatprep.subr.bf16.mxu0 0
      %966 = vmatpush1.bf16.msra.mxu0 0
      %967 = vmatprep.subr.bf16.mxu0 0
      %968 = vmatpush1.bf16.msra.mxu0 0
      %969 = vmatprep.subr.bf16.mxu0 0
      %970 = vmatpush1.bf16.msra.mxu0 0
      %971 = vmatprep.subr.bf16.mxu0 0
      %972 = vmatpush1.bf16.msra.mxu0 0
      %973 = vmatprep.subr.bf16.mxu0 0
      %974 = vmatpush1.bf16.msra.mxu0 0
      %975 = vmatprep.subr.bf16.mxu0 0
      %976 = vmatpush1.bf16.msra.mxu0 0
      %977 = vmatprep.subr.bf16.mxu0 0
      %978 = vmatpush1.bf16.msra.mxu0 0
      %979 = vmatprep.mubr.bf16.mxu0 0
      %980 = vmatmul.mubr.bf16.gmra.mrb[0].mxu0 %v930
      %v981 = vpop.f32.mrb[0].mxu0
      %v982 = vadd.f32 0.0, %v981
      %v983 = vpop.f32.mrb[0].mxu0
      %v984 = vadd.f32 0.0, %v983
      %v985 = vpop.f32.mrb[0].mxu0
      %v986 = vadd.f32 0.0, %v985
      %v987 = vpop.f32.mrb[0].mxu0
      %v988 = vadd.f32 0.0, %v987
      %989 = vmatprep.mubr.bf16.mxu0 0
      %990 = vmatmul.mubr.bf16.gmra.mrb[0].mxu0 %v933
      %v991 = vpop.f32.mrb[0].mxu0
      %v992 = vadd.f32 0.0, %v991
      %v993 = vpop.f32.mrb[0].mxu0
      %v994 = vadd.f32 0.0, %v993
      %v995 = vpop.f32.mrb[0].mxu0
      %v996 = vadd.f32 0.0, %v995
      %v997 = vpop.f32.mrb[0].mxu0
      %v998 = vadd.f32 0.0, %v997
      %999 = vmatprep.mubr.bf16.mxu0 0
      %1000 = vmatmul.mubr.bf16.gmra.mrb[0].mxu0 %v936
      %v1001 = vpop.f32.mrb[0].mxu0
      %v1002 = vadd.f32 0.0, %v1001
      %v1003 = vpop.f32.mrb[0].mxu0
      %v1004 = vadd.f32 0.0, %v1003
      %v1005 = vpop.f32.mrb[0].mxu0
      %v1006 = vadd.f32 0.0, %v1005
      %v1007 = vpop.f32.mrb[0].mxu0
      %v1008 = vadd.f32 0.0, %v1007
      %1009 = vmatprep.mubr.bf16.mxu0 0
      %1010 = vmatmul.mubr.bf16.gmra.mrb[0].mxu0 %v939
      %v1011 = vpop.f32.mrb[0].mxu0
      %v1012 = vadd.f32 0.0, %v1011
      %v1013 = vpop.f32.mrb[0].mxu0
      %v1014 = vadd.f32 0.0, %v1013
      %v1015 = vpop.f32.mrb[0].mxu0
      %v1016 = vadd.f32 0.0, %v1015
      %v1017 = vpop.f32.mrb[0].mxu0
      %v1018 = vadd.f32 0.0, %v1017
      %1019 = vdwg.mxu0
      %v1020 = vadd.f32 %v850, %v982
      %v1021 = vadd.f32 %v851, %v984
      %v1022 = vadd.f32 %v852, %v986
      %v1023 = vadd.f32 %v853, %v988
      %v1024 = vadd.f32 %v854, %v992
      %v1025 = vadd.f32 %v855, %v994
      %v1026 = vadd.f32 %v856, %v996
      %v1027 = vadd.f32 %v857, %v998
      %v1028 = vadd.f32 %v858, %v1002
      %v1029 = vadd.f32 %v859, %v1004
      %v1030 = vadd.f32 %v860, %v1006
      %v1031 = vadd.f32 %v861, %v1008
      %v1032 = vadd.f32 %v862, %v1012
      %v1033 = vadd.f32 %v863, %v1014
      %v1034 = vadd.f32 %v864, %v1016
      %v1035 = vadd.f32 %v865, %v1018
      %v1036 = vld [vmem:[%s869] sm:$0xf]
      %v1037 = vld [vmem:[%s869 + $0x4] sm:$0x1]
      %v1038 = vld [vmem:[%s869 + $0x8] sm:$0xf]
      %v1039 = vld [vmem:[%s869 + $0xc] sm:$0x1]
      %v1040 = vld [vmem:[%s869 + $0x10] sm:$0xf]
      %v1041 = vld [vmem:[%s869 + $0x14] sm:$0x1]
      %v1042 = vld [vmem:[%s869 + $0x18] sm:$0xf]
      %v1043 = vld [vmem:[%s869 + $0x1c] sm:$0x1]
      %v1044 = vld [vmem:[%s869 + $0x20] sm:$0xf]
      %v1045 = vld [vmem:[%s869 + $0x24] sm:$0x1]
      %v1046 = vld [vmem:[%s869 + $0x28] sm:$0xf]
      %v1047 = vld [vmem:[%s869 + $0x2c] sm:$0x1]
      %v1048 = vld [vmem:[%s869 + $0x30] sm:$0xf]
      %v1049 = vld [vmem:[%s869 + $0x34] sm:$0x1]
      %v1050 = vld [vmem:[%s869 + $0x38] sm:$0xf]
      %v1051 = vld [vmem:[%s869 + $0x3c] sm:$0x1]
      %v1053 = vshrl.u32 %v1036, 16
      %v1055 = vrot.slane %v1053, 4
      %v1056 = vshll.u32 %v1036, 16
      %v1058 = vrot.slane %v1056, 5
      %v1059 = vor.u32 %v1055, %v1058
      %v1060 = vrot.slane %v1059, 4
      %v1062 = vshll.u32 %v1037, 16
      %v1064 = vrot.slane %v1062, 5
      %v1065 = vsel %vm272, %v1060, %v1064
      %v1067 = vshrl.u32 %v1038, 16
      %v1069 = vrot.slane %v1067, 4
      %v1070 = vshll.u32 %v1038, 16
      %v1072 = vrot.slane %v1070, 5
      %v1073 = vor.u32 %v1069, %v1072
      %v1074 = vrot.slane %v1073, 4
      %v1076 = vshll.u32 %v1039, 16
      %v1078 = vrot.slane %v1076, 5
      %v1079 = vsel %vm272, %v1074, %v1078
      %v1081 = vshrl.u32 %v1040, 16
      %v1083 = vrot.slane %v1081, 4
      %v1084 = vshll.u32 %v1040, 16
      %v1086 = vrot.slane %v1084, 5
      %v1087 = vor.u32 %v1083, %v1086
      %v1088 = vrot.slane %v1087, 4
      %v1090 = vshll.u32 %v1041, 16
      %v1092 = vrot.slane %v1090, 5
      %v1093 = vsel %vm272, %v1088, %v1092
      %v1095 = vshrl.u32 %v1042, 16
      %v1097 = vrot.slane %v1095, 4
      %v1098 = vshll.u32 %v1042, 16
      %v1100 = vrot.slane %v1098, 5
      %v1101 = vor.u32 %v1097, %v1100
      %v1102 = vrot.slane %v1101, 4
      %v1104 = vshll.u32 %v1043, 16
      %v1106 = vrot.slane %v1104, 5
      %v1107 = vsel %vm272, %v1102, %v1106
      %v1109 = vshrl.u32 %v1044, 16
      %v1111 = vrot.slane %v1109, 4
      %v1112 = vshll.u32 %v1044, 16
      %v1114 = vrot.slane %v1112, 5
      %v1115 = vor.u32 %v1111, %v1114
      %v1116 = vrot.slane %v1115, 4
      %v1118 = vshll.u32 %v1045, 16
      %v1120 = vrot.slane %v1118, 5
      %v1121 = vsel %vm272, %v1116, %v1120
      %v1123 = vshrl.u32 %v1046, 16
      %v1125 = vrot.slane %v1123, 4
      %v1126 = vshll.u32 %v1046, 16
      %v1128 = vrot.slane %v1126, 5
      %v1129 = vor.u32 %v1125, %v1128
      %v1130 = vrot.slane %v1129, 4
      %v1132 = vshll.u32 %v1047, 16
      %v1134 = vrot.slane %v1132, 5
      %v1135 = vsel %vm272, %v1130, %v1134
      %v1137 = vshrl.u32 %v1048, 16
      %v1139 = vrot.slane %v1137, 4
      %v1140 = vshll.u32 %v1048, 16
      %v1142 = vrot.slane %v1140, 5
      %v1143 = vor.u32 %v1139, %v1142
      %v1144 = vrot.slane %v1143, 4
      %v1146 = vshll.u32 %v1049, 16
      %v1148 = vrot.slane %v1146, 5
      %v1149 = vsel %vm272, %v1144, %v1148
      %v1151 = vshrl.u32 %v1050, 16
      %v1153 = vrot.slane %v1151, 4
      %v1154 = vshll.u32 %v1050, 16
      %v1156 = vrot.slane %v1154, 5
      %v1157 = vor.u32 %v1153, %v1156
      %v1158 = vrot.slane %v1157, 4
      %v1160 = vshll.u32 %v1051, 16
      %v1162 = vrot.slane %v1160, 5
      %v1163 = vsel %vm272, %v1158, %v1162
      %s1164 = scalar_lea.vmem %s1, 160
      %v1165 = vld [vmem:[%s1164] sm:$0xff]
      %v1166 = vld [vmem:[%s1164 + $0x8] sm:$0xff]
      %v1167 = vld [vmem:[%s1164 + $0x10] sm:$0xff]
      %v1168 = vld [vmem:[%s1164 + $0x18] sm:$0xff]
      %v1169 = vld [vmem:[%s1164 + $0x20] sm:$0xff]
      %v1170 = vunpack.c.l.b16 %v1065
      %v1171 = vunpack.c.l.b16 %v1079
      %v1172 = vunpack.c.l.b16 %v1093
      %v1173 = vunpack.c.l.b16 %v1107
      %v1174 = vunpack.c.l.b16 %v1121
      %v1175 = vunpack.c.l.b16 %v1135
      %v1176 = vunpack.c.l.b16 %v1149
      %v1177 = vunpack.c.l.b16 %v1163
      %v1178 = vpack.c.b16 %v1171, %v1170
      %v1179 = vpack.c.b16 %v1173, %v1172
      %v1180 = vpack.c.b16 %v1175, %v1174
      %v1181 = vpack.c.b16 %v1177, %v1176
      %v1187 = vunpack.c.l.b16 %v1165
      %v1188 = vunpack.c.h.b16 %v1165
      %v1189 = vunpack.c.l.b16 %v1166
      %v1190 = vunpack.c.h.b16 %v1166
      %v1191 = vunpack.c.l.b16 %v1167
      %v1192 = vunpack.c.h.b16 %v1167
      %v1193 = vunpack.c.l.b16 %v1168
      %v1194 = vunpack.c.h.b16 %v1168
      %v1195 = vunpack.c.l.b16 %v1169
      %v1196 = vunpack.c.h.b16 %v1169
      %v1197 = vpack.c.b16 %v1189, %v1187
      %v1198 = vpack.c.b16 %v1190, %v1188
      %v1199 = vpack.c.b16 %v1193, %v1191
      %v1200 = vpack.c.b16 %v1194, %v1192
      %v1201 = vpack.c.b16 %v1195, %v1195
      %v1202 = vpack.c.b16 %v1196, %v1196
      %v1208 = vsel %vm428, %v1178, 0
      %v1211 = vsel %vm428, %v1179, 0
      %v1214 = vsel %vm428, %v1180, 0
      %v1217 = vsel %vm428, %v1181, 0
      %v1220 = vsel %vm441, %v1201, 0
      %v1223 = vsel %vm441, %v1202, 0
      %1225 = vmatprep.subr.bf16.mxu0 %v1198
      %1226 = vmatpush1.bf16.msra.mxu0 %v1197
      %1227 = vmatprep.subr.bf16.mxu0 %v1200
      %1228 = vmatpush1.bf16.msra.mxu0 %v1199
      %1229 = vmatprep.subr.bf16.mxu0 %v1223
      %1230 = vmatpush1.bf16.msra.mxu0 %v1220
      %1231 = vmatprep.subr.bf16.mxu0 0
      %1232 = vmatpush1.bf16.msra.mxu0 0
      %1233 = vmatprep.subr.bf16.mxu0 0
      %1234 = vmatpush1.bf16.msra.mxu0 0
      %1235 = vmatprep.subr.bf16.mxu0 0
      %1236 = vmatpush1.bf16.msra.mxu0 0
      %1237 = vmatprep.subr.bf16.mxu0 0
      %1238 = vmatpush1.bf16.msra.mxu0 0
      %1239 = vmatprep.subr.bf16.mxu0 0
      %1240 = vmatpush1.bf16.msra.mxu0 0
      %1241 = vmatprep.subr.bf16.mxu0 0
      %1242 = vmatpush1.bf16.msra.mxu0 0
      %1243 = vmatprep.subr.bf16.mxu0 0
      %1244 = vmatpush1.bf16.msra.mxu0 0
      %1245 = vmatprep.subr.bf16.mxu0 0
      %1246 = vmatpush1.bf16.msra.mxu0 0
      %1247 = vmatprep.subr.bf16.mxu0 0
      %1248 = vmatpush1.bf16.msra.mxu0 0
      %1249 = vmatprep.subr.bf16.mxu0 0
      %1250 = vmatpush1.bf16.msra.mxu0 0
      %1251 = vmatprep.subr.bf16.mxu0 0
      %1252 = vmatpush1.bf16.msra.mxu0 0
      %1253 = vmatprep.subr.bf16.mxu0 0
      %1254 = vmatpush1.bf16.msra.mxu0 0
      %1255 = vmatprep.subr.bf16.mxu0 0
      %1256 = vmatpush1.bf16.msra.mxu0 0
      %1257 = vmatprep.mubr.bf16.mxu0 0
      %1258 = vmatmul.mubr.bf16.gmra.mrb[0].mxu0 %v1208
      %v1259 = vpop.f32.mrb[0].mxu0
      %v1260 = vadd.f32 0.0, %v1259
      %v1261 = vpop.f32.mrb[0].mxu0
      %v1262 = vadd.f32 0.0, %v1261
      %v1263 = vpop.f32.mrb[0].mxu0
      %v1264 = vadd.f32 0.0, %v1263
      %v1265 = vpop.f32.mrb[0].mxu0
      %v1266 = vadd.f32 0.0, %v1265
      %1267 = vmatprep.mubr.bf16.mxu0 0
      %1268 = vmatmul.mubr.bf16.gmra.mrb[0].mxu0 %v1211
      %v1269 = vpop.f32.mrb[0].mxu0
      %v1270 = vadd.f32 0.0, %v1269
      %v1271 = vpop.f32.mrb[0].mxu0
      %v1272 = vadd.f32 0.0, %v1271
      %v1273 = vpop.f32.mrb[0].mxu0
      %v1274 = vadd.f32 0.0, %v1273
      %v1275 = vpop.f32.mrb[0].mxu0
      %v1276 = vadd.f32 0.0, %v1275
      %1277 = vmatprep.mubr.bf16.mxu0 0
      %1278 = vmatmul.mubr.bf16.gmra.mrb[0].mxu0 %v1214
      %v1279 = vpop.f32.mrb[0].mxu0
      %v1280 = vadd.f32 0.0, %v1279
      %v1281 = vpop.f32.mrb[0].mxu0
      %v1282 = vadd.f32 0.0, %v1281
      %v1283 = vpop.f32.mrb[0].mxu0
      %v1284 = vadd.f32 0.0, %v1283
      %v1285 = vpop.f32.mrb[0].mxu0
      %v1286 = vadd.f32 0.0, %v1285
      %1287 = vmatprep.mubr.bf16.mxu0 0
      %1288 = vmatmul.mubr.bf16.gmra.mrb[0].mxu0 %v1217
      %v1289 = vpop.f32.mrb[0].mxu0
      %v1290 = vadd.f32 0.0, %v1289
      %v1291 = vpop.f32.mrb[0].mxu0
      %v1292 = vadd.f32 0.0, %v1291
      %v1293 = vpop.f32.mrb[0].mxu0
      %v1294 = vadd.f32 0.0, %v1293
      %v1295 = vpop.f32.mrb[0].mxu0
      %v1296 = vadd.f32 0.0, %v1295
      %1297 = vdwg.mxu0
      %v1298 = vadd.f32 %v1020, %v1260
      %v1299 = vadd.f32 %v1021, %v1262
      %v1300 = vadd.f32 %v1022, %v1264
      %v1301 = vadd.f32 %v1023, %v1266
      %v1302 = vadd.f32 %v1024, %v1270
      %v1303 = vadd.f32 %v1025, %v1272
      %v1304 = vadd.f32 %v1026, %v1274
      %v1305 = vadd.f32 %v1027, %v1276
      %v1306 = vadd.f32 %v1028, %v1280
      %v1307 = vadd.f32 %v1029, %v1282
      %v1308 = vadd.f32 %v1030, %v1284
      %v1309 = vadd.f32 %v1031, %v1286
      %v1310 = vadd.f32 %v1032, %v1290
      %v1311 = vadd.f32 %v1033, %v1292
      %v1312 = vadd.f32 %v1034, %v1294
      %v1313 = vadd.f32 %v1035, %v1296
      %v1314 = vld [vmem:[%s869] sm:$0xe]
      %v1315 = vld [vmem:[%s869 + $0x8] sm:$0xe]
      %v1316 = vld [vmem:[%s869 + $0x10] sm:$0xe]
      %v1317 = vld [vmem:[%s869 + $0x18] sm:$0xe]
      %v1318 = vld [vmem:[%s869 + $0x20] sm:$0xe]
      %v1319 = vld [vmem:[%s869 + $0x28] sm:$0xe]
      %v1320 = vld [vmem:[%s869 + $0x30] sm:$0xe]
      %v1321 = vld [vmem:[%s869 + $0x38] sm:$0xe]
      %v1338 = vrot.slane %v1314, 5
      %v1339 = vrot.slane %v1338, 4
      %v1340 = vrot.slane %v1037, 5
      %v1341 = vsel %vm683, %v1339, %v1340
      %v1342 = vrot.slane %v1315, 5
      %v1343 = vrot.slane %v1342, 4
      %v1344 = vrot.slane %v1039, 5
      %v1345 = vsel %vm683, %v1343, %v1344
      %v1346 = vrot.slane %v1316, 5
      %v1347 = vrot.slane %v1346, 4
      %v1348 = vrot.slane %v1041, 5
      %v1349 = vsel %vm683, %v1347, %v1348
      %v1350 = vrot.slane %v1317, 5
      %v1351 = vrot.slane %v1350, 4
      %v1352 = vrot.slane %v1043, 5
      %v1353 = vsel %vm683, %v1351, %v1352
      %v1354 = vrot.slane %v1318, 5
      %v1355 = vrot.slane %v1354, 4
      %v1356 = vrot.slane %v1045, 5
      %v1357 = vsel %vm683, %v1355, %v1356
      %v1358 = vrot.slane %v1319, 5
      %v1359 = vrot.slane %v1358, 4
      %v1360 = vrot.slane %v1047, 5
      %v1361 = vsel %vm683, %v1359, %v1360
      %v1362 = vrot.slane %v1320, 5
      %v1363 = vrot.slane %v1362, 4
      %v1364 = vrot.slane %v1049, 5
      %v1365 = vsel %vm683, %v1363, %v1364
      %v1366 = vrot.slane %v1321, 5
      %v1367 = vrot.slane %v1366, 4
      %v1368 = vrot.slane %v1051, 5
      %v1369 = vsel %vm683, %v1367, %v1368
      %s1370 = scalar_lea.vmem %s1, 200
      %v1371 = vld [vmem:[%s1370] sm:$0xff]
      %v1372 = vld [vmem:[%s1370 + $0x8] sm:$0xff]
      %v1373 = vld [vmem:[%s1370 + $0x10] sm:$0xff]
      %v1374 = vld [vmem:[%s1370 + $0x18] sm:$0xff]
      %v1375 = vld [vmem:[%s1370 + $0x20] sm:$0xff]
      %v1376 = vunpack.c.l.b16 %v1341
      %v1377 = vunpack.c.l.b16 %v1345
      %v1378 = vunpack.c.l.b16 %v1349
      %v1379 = vunpack.c.l.b16 %v1353
      %v1380 = vunpack.c.l.b16 %v1357
      %v1381 = vunpack.c.l.b16 %v1361
      %v1382 = vunpack.c.l.b16 %v1365
      %v1383 = vunpack.c.l.b16 %v1369
      %v1384 = vpack.c.b16 %v1377, %v1376
      %v1385 = vpack.c.b16 %v1379, %v1378
      %v1386 = vpack.c.b16 %v1381, %v1380
      %v1387 = vpack.c.b16 %v1383, %v1382
      %v1393 = vunpack.c.l.b16 %v1371
      %v1394 = vunpack.c.h.b16 %v1371
      %v1395 = vunpack.c.l.b16 %v1372
      %v1396 = vunpack.c.h.b16 %v1372
      %v1397 = vunpack.c.l.b16 %v1373
      %v1398 = vunpack.c.h.b16 %v1373
      %v1399 = vunpack.c.l.b16 %v1374
      %v1400 = vunpack.c.h.b16 %v1374
      %v1401 = vunpack.c.l.b16 %v1375
      %v1402 = vunpack.c.h.b16 %v1375
      %v1403 = vpack.c.b16 %v1395, %v1393
      %v1404 = vpack.c.b16 %v1396, %v1394
      %v1405 = vpack.c.b16 %v1399, %v1397
      %v1406 = vpack.c.b16 %v1400, %v1398
      %v1407 = vpack.c.b16 %v1401, %v1401
      %v1408 = vpack.c.b16 %v1402, %v1402
      %v1414 = vsel %vm428, %v1384, 0
      %v1417 = vsel %vm428, %v1385, 0
      %v1420 = vsel %vm428, %v1386, 0
      %v1423 = vsel %vm428, %v1387, 0
      %v1426 = vsel %vm441, %v1407, 0
      %v1429 = vsel %vm441, %v1408, 0
      %1431 = vmatprep.subr.bf16.mxu0 %v1404
      %1432 = vmatpush1.bf16.msra.mxu0 %v1403
      %1433 = vmatprep.subr.bf16.mxu0 %v1406
      %1434 = vmatpush1.bf16.msra.mxu0 %v1405
      %1435 = vmatprep.subr.bf16.mxu0 %v1429
      %1436 = vmatpush1.bf16.msra.mxu0 %v1426
      %1437 = vmatprep.subr.bf16.mxu0 0
      %1438 = vmatpush1.bf16.msra.mxu0 0
      %1439 = vmatprep.subr.bf16.mxu0 0
      %1440 = vmatpush1.bf16.msra.mxu0 0
      %1441 = vmatprep.subr.bf16.mxu0 0
      %1442 = vmatpush1.bf16.msra.mxu0 0
      %1443 = vmatprep.subr.bf16.mxu0 0
      %1444 = vmatpush1.bf16.msra.mxu0 0
      %1445 = vmatprep.subr.bf16.mxu0 0
      %1446 = vmatpush1.bf16.msra.mxu0 0
      %1447 = vmatprep.subr.bf16.mxu0 0
      %1448 = vmatpush1.bf16.msra.mxu0 0
      %1449 = vmatprep.subr.bf16.mxu0 0
      %1450 = vmatpush1.bf16.msra.mxu0 0
      %1451 = vmatprep.subr.bf16.mxu0 0
      %1452 = vmatpush1.bf16.msra.mxu0 0
      %1453 = vmatprep.subr.bf16.mxu0 0
      %1454 = vmatpush1.bf16.msra.mxu0 0
      %1455 = vmatprep.subr.bf16.mxu0 0
      %1456 = vmatpush1.bf16.msra.mxu0 0
      %1457 = vmatprep.subr.bf16.mxu0 0
      %1458 = vmatpush1.bf16.msra.mxu0 0
      %1459 = vmatprep.subr.bf16.mxu0 0
      %1460 = vmatpush1.bf16.msra.mxu0 0
      %1461 = vmatprep.subr.bf16.mxu0 0
      %1462 = vmatpush1.bf16.msra.mxu0 0
      %1463 = vmatprep.mubr.bf16.mxu0 0
      %1464 = vmatmul.mubr.bf16.gmra.mrb[0].mxu0 %v1414
      %v1465 = vpop.f32.mrb[0].mxu0
      %v1466 = vadd.f32 0.0, %v1465
      %v1467 = vpop.f32.mrb[0].mxu0
      %v1468 = vadd.f32 0.0, %v1467
      %v1469 = vpop.f32.mrb[0].mxu0
      %v1470 = vadd.f32 0.0, %v1469
      %v1471 = vpop.f32.mrb[0].mxu0
      %v1472 = vadd.f32 0.0, %v1471
      %1473 = vmatprep.mubr.bf16.mxu0 0
      %1474 = vmatmul.mubr.bf16.gmra.mrb[0].mxu0 %v1417
      %v1475 = vpop.f32.mrb[0].mxu0
      %v1476 = vadd.f32 0.0, %v1475
      %v1477 = vpop.f32.mrb[0].mxu0
      %v1478 = vadd.f32 0.0, %v1477
      %v1479 = vpop.f32.mrb[0].mxu0
      %v1480 = vadd.f32 0.0, %v1479
      %v1481 = vpop.f32.mrb[0].mxu0
      %v1482 = vadd.f32 0.0, %v1481
      %1483 = vmatprep.mubr.bf16.mxu0 0
      %1484 = vmatmul.mubr.bf16.gmra.mrb[0].mxu0 %v1420
      %v1485 = vpop.f32.mrb[0].mxu0
      %v1486 = vadd.f32 0.0, %v1485
      %v1487 = vpop.f32.mrb[0].mxu0
      %v1488 = vadd.f32 0.0, %v1487
      %v1489 = vpop.f32.mrb[0].mxu0
      %v1490 = vadd.f32 0.0, %v1489
      %v1491 = vpop.f32.mrb[0].mxu0
      %v1492 = vadd.f32 0.0, %v1491
      %1493 = vmatprep.mubr.bf16.mxu0 0
      %1494 = vmatmul.mubr.bf16.gmra.mrb[0].mxu0 %v1423
      %v1495 = vpop.f32.mrb[0].mxu0
      %v1496 = vadd.f32 0.0, %v1495
      %v1497 = vpop.f32.mrb[0].mxu0
      %v1498 = vadd.f32 0.0, %v1497
      %v1499 = vpop.f32.mrb[0].mxu0
      %v1500 = vadd.f32 0.0, %v1499
      %v1501 = vpop.f32.mrb[0].mxu0
      %v1502 = vadd.f32 0.0, %v1501
      %1503 = vdwg.mxu0
      %v1504 = vadd.f32 %v1298, %v1466
      %v1505 = vadd.f32 %v1299, %v1468
      %v1506 = vadd.f32 %v1300, %v1470
      %v1507 = vadd.f32 %v1301, %v1472
      %v1508 = vadd.f32 %v1302, %v1476
      %v1509 = vadd.f32 %v1303, %v1478
      %v1510 = vadd.f32 %v1304, %v1480
      %v1511 = vadd.f32 %v1305, %v1482
      %v1512 = vadd.f32 %v1306, %v1486
      %v1513 = vadd.f32 %v1307, %v1488
      %v1514 = vadd.f32 %v1308, %v1490
      %v1515 = vadd.f32 %v1309, %v1492
      %v1516 = vadd.f32 %v1310, %v1496
      %v1517 = vadd.f32 %v1311, %v1498
      %v1518 = vadd.f32 %v1312, %v1500
      %v1519 = vadd.f32 %v1313, %v1502
      %s1520 = sadd.s32 %s245, 2
      %s1521 = smul.u32 %s1520, 2
      %s1522 = smul.addr %s1521, 4
      %s1523 = scalar_lea.vmem %s224, %s1522
      %v1524 = vld [vmem:[%s1523] sm:$0xf]
      %v1525 = vld [vmem:[%s1523 + $0x8] sm:$0xf]
      %v1526 = vld [vmem:[%s1523 + $0x10] sm:$0xf]
      %v1527 = vld [vmem:[%s1523 + $0x18] sm:$0xf]
      %v1528 = vld [vmem:[%s1523 + $0x20] sm:$0xf]
      %v1529 = vld [vmem:[%s1523 + $0x28] sm:$0xf]
      %v1530 = vld [vmem:[%s1523 + $0x30] sm:$0xf]
      %v1531 = vld [vmem:[%s1523 + $0x38] sm:$0xf]
      %s1532 = scalar_lea.vmem %s1, 240
      %v1533 = vld [vmem:[%s1532] sm:$0xff]
      %v1534 = vld [vmem:[%s1532 + $0x8] sm:$0xff]
      %v1535 = vld [vmem:[%s1532 + $0x10] sm:$0xff]
      %v1536 = vld [vmem:[%s1532 + $0x18] sm:$0xff]
      %v1537 = vld [vmem:[%s1532 + $0x20] sm:$0xff]
      %v1546 = vunpack.c.l.b16 %v1524
      %v1547 = vunpack.c.l.b16 %v1525
      %v1548 = vunpack.c.l.b16 %v1526
      %v1549 = vunpack.c.l.b16 %v1527
      %v1550 = vunpack.c.l.b16 %v1528
      %v1551 = vunpack.c.l.b16 %v1529
      %v1552 = vunpack.c.l.b16 %v1530
      %v1553 = vunpack.c.l.b16 %v1531
      %v1554 = vpack.c.b16 %v1547, %v1546
      %v1555 = vpack.c.b16 %v1549, %v1548
      %v1556 = vpack.c.b16 %v1551, %v1550
      %v1557 = vpack.c.b16 %v1553, %v1552
      %v1563 = vunpack.c.l.b16 %v1533
      %v1564 = vunpack.c.h.b16 %v1533
      %v1565 = vunpack.c.l.b16 %v1534
      %v1566 = vunpack.c.h.b16 %v1534
      %v1567 = vunpack.c.l.b16 %v1535
      %v1568 = vunpack.c.h.b16 %v1535
      %v1569 = vunpack.c.l.b16 %v1536
      %v1570 = vunpack.c.h.b16 %v1536
      %v1571 = vunpack.c.l.b16 %v1537
      %v1572 = vunpack.c.h.b16 %v1537
      %v1573 = vpack.c.b16 %v1565, %v1563
      %v1574 = vpack.c.b16 %v1566, %v1564
      %v1575 = vpack.c.b16 %v1569, %v1567
      %v1576 = vpack.c.b16 %v1570, %v1568
      %v1577 = vpack.c.b16 %v1571, %v1571
      %v1578 = vpack.c.b16 %v1572, %v1572
      %v1584 = vsel %vm428, %v1554, 0
      %v1587 = vsel %vm428, %v1555, 0
      %v1590 = vsel %vm428, %v1556, 0
      %v1593 = vsel %vm428, %v1557, 0
      %v1596 = vsel %vm441, %v1577, 0
      %v1599 = vsel %vm441, %v1578, 0
      %1601 = vmatprep.subr.bf16.mxu0 %v1574
      %1602 = vmatpush1.bf16.msra.mxu0 %v1573
      %1603 = vmatprep.subr.bf16.mxu0 %v1576
      %1604 = vmatpush1.bf16.msra.mxu0 %v1575
      %1605 = vmatprep.subr.bf16.mxu0 %v1599
      %1606 = vmatpush1.bf16.msra.mxu0 %v1596
      %1607 = vmatprep.subr.bf16.mxu0 0
      %1608 = vmatpush1.bf16.msra.mxu0 0
      %1609 = vmatprep.subr.bf16.mxu0 0
      %1610 = vmatpush1.bf16.msra.mxu0 0
      %1611 = vmatprep.subr.bf16.mxu0 0
      %1612 = vmatpush1.bf16.msra.mxu0 0
      %1613 = vmatprep.subr.bf16.mxu0 0
      %1614 = vmatpush1.bf16.msra.mxu0 0
      %1615 = vmatprep.subr.bf16.mxu0 0
      %1616 = vmatpush1.bf16.msra.mxu0 0
      %1617 = vmatprep.subr.bf16.mxu0 0
      %1618 = vmatpush1.bf16.msra.mxu0 0
      %1619 = vmatprep.subr.bf16.mxu0 0
      %1620 = vmatpush1.bf16.msra.mxu0 0
      %1621 = vmatprep.subr.bf16.mxu0 0
      %1622 = vmatpush1.bf16.msra.mxu0 0
      %1623 = vmatprep.subr.bf16.mxu0 0
      %1624 = vmatpush1.bf16.msra.mxu0 0
      %1625 = vmatprep.subr.bf16.mxu0 0
      %1626 = vmatpush1.bf16.msra.mxu0 0
      %1627 = vmatprep.subr.bf16.mxu0 0
      %1628 = vmatpush1.bf16.msra.mxu0 0
      %1629 = vmatprep.subr.bf16.mxu0 0
      %1630 = vmatpush1.bf16.msra.mxu0 0
      %1631 = vmatprep.subr.bf16.mxu0 0
      %1632 = vmatpush1.bf16.msra.mxu0 0
      %1633 = vmatprep.mubr.bf16.mxu0 0
      %1634 = vmatmul.mubr.bf16.gmra.mrb[0].mxu0 %v1584
      %v1635 = vpop.f32.mrb[0].mxu0
      %v1636 = vadd.f32 0.0, %v1635
      %v1637 = vpop.f32.mrb[0].mxu0
      %v1638 = vadd.f32 0.0, %v1637
      %v1639 = vpop.f32.mrb[0].mxu0
      %v1640 = vadd.f32 0.0, %v1639
      %v1641 = vpop.f32.mrb[0].mxu0
      %v1642 = vadd.f32 0.0, %v1641
      %1643 = vmatprep.mubr.bf16.mxu0 0
      %1644 = vmatmul.mubr.bf16.gmra.mrb[0].mxu0 %v1587
      %v1645 = vpop.f32.mrb[0].mxu0
      %v1646 = vadd.f32 0.0, %v1645
      %v1647 = vpop.f32.mrb[0].mxu0
      %v1648 = vadd.f32 0.0, %v1647
      %v1649 = vpop.f32.mrb[0].mxu0
      %v1650 = vadd.f32 0.0, %v1649
      %v1651 = vpop.f32.mrb[0].mxu0
      %v1652 = vadd.f32 0.0, %v1651
      %1653 = vmatprep.mubr.bf16.mxu0 0
      %1654 = vmatmul.mubr.bf16.gmra.mrb[0].mxu0 %v1590
      %v1655 = vpop.f32.mrb[0].mxu0
      %v1656 = vadd.f32 0.0, %v1655
      %v1657 = vpop.f32.mrb[0].mxu0
      %v1658 = vadd.f32 0.0, %v1657
      %v1659 = vpop.f32.mrb[0].mxu0
      %v1660 = vadd.f32 0.0, %v1659
      %v1661 = vpop.f32.mrb[0].mxu0
      %v1662 = vadd.f32 0.0, %v1661
      %1663 = vmatprep.mubr.bf16.mxu0 0
      %1664 = vmatmul.mubr.bf16.gmra.mrb[0].mxu0 %v1593
      %v1665 = vpop.f32.mrb[0].mxu0
      %v1666 = vadd.f32 0.0, %v1665
      %v1667 = vpop.f32.mrb[0].mxu0
      %v1668 = vadd.f32 0.0, %v1667
      %v1669 = vpop.f32.mrb[0].mxu0
      %v1670 = vadd.f32 0.0, %v1669
      %v1671 = vpop.f32.mrb[0].mxu0
      %v1672 = vadd.f32 0.0, %v1671
      %1673 = vdwg.mxu0
      %v1674 = vadd.f32 %v1504, %v1636
      %v1675 = vadd.f32 %v1505, %v1638
      %v1676 = vadd.f32 %v1506, %v1640
      %v1677 = vadd.f32 %v1507, %v1642
      %v1678 = vadd.f32 %v1508, %v1646
      %v1679 = vadd.f32 %v1509, %v1648
      %v1680 = vadd.f32 %v1510, %v1650
      %v1681 = vadd.f32 %v1511, %v1652
      %v1682 = vadd.f32 %v1512, %v1656
      %v1683 = vadd.f32 %v1513, %v1658
      %v1684 = vadd.f32 %v1514, %v1660
      %v1685 = vadd.f32 %v1515, %v1662
      %v1686 = vadd.f32 %v1516, %v1666
      %v1687 = vadd.f32 %v1517, %v1668
      %v1688 = vadd.f32 %v1518, %v1670
      %v1689 = vadd.f32 %v1519, %v1672
      %v1690 = vld [vmem:[%s1523] sm:$0xf]
      %v1691 = vld [vmem:[%s1523 + $0x4] sm:$0x1]
      %v1692 = vld [vmem:[%s1523 + $0x8] sm:$0xf]
      %v1693 = vld [vmem:[%s1523 + $0xc] sm:$0x1]
      %v1694 = vld [vmem:[%s1523 + $0x10] sm:$0xf]
      %v1695 = vld [vmem:[%s1523 + $0x14] sm:$0x1]
      %v1696 = vld [vmem:[%s1523 + $0x18] sm:$0xf]
      %v1697 = vld [vmem:[%s1523 + $0x1c] sm:$0x1]
      %v1698 = vld [vmem:[%s1523 + $0x20] sm:$0xf]
      %v1699 = vld [vmem:[%s1523 + $0x24] sm:$0x1]
      %v1700 = vld [vmem:[%s1523 + $0x28] sm:$0xf]
      %v1701 = vld [vmem:[%s1523 + $0x2c] sm:$0x1]
      %v1702 = vld [vmem:[%s1523 + $0x30] sm:$0xf]
      %v1703 = vld [vmem:[%s1523 + $0x34] sm:$0x1]
      %v1704 = vld [vmem:[%s1523 + $0x38] sm:$0xf]
      %v1705 = vld [vmem:[%s1523 + $0x3c] sm:$0x1]
      %v1707 = vshrl.u32 %v1690, 16
      %v1709 = vrot.slane %v1707, 4
      %v1710 = vshll.u32 %v1690, 16
      %v1712 = vrot.slane %v1710, 5
      %v1713 = vor.u32 %v1709, %v1712
      %v1714 = vrot.slane %v1713, 4
      %v1716 = vshll.u32 %v1691, 16
      %v1718 = vrot.slane %v1716, 5
      %v1719 = vsel %vm272, %v1714, %v1718
      %v1721 = vshrl.u32 %v1692, 16
      %v1723 = vrot.slane %v1721, 4
      %v1724 = vshll.u32 %v1692, 16
      %v1726 = vrot.slane %v1724, 5
      %v1727 = vor.u32 %v1723, %v1726
      %v1728 = vrot.slane %v1727, 4
      %v1730 = vshll.u32 %v1693, 16
      %v1732 = vrot.slane %v1730, 5
      %v1733 = vsel %vm272, %v1728, %v1732
      %v1735 = vshrl.u32 %v1694, 16
      %v1737 = vrot.slane %v1735, 4
      %v1738 = vshll.u32 %v1694, 16
      %v1740 = vrot.slane %v1738, 5
      %v1741 = vor.u32 %v1737, %v1740
      %v1742 = vrot.slane %v1741, 4
      %v1744 = vshll.u32 %v1695, 16
      %v1746 = vrot.slane %v1744, 5
      %v1747 = vsel %vm272, %v1742, %v1746
      %v1749 = vshrl.u32 %v1696, 16
      %v1751 = vrot.slane %v1749, 4
      %v1752 = vshll.u32 %v1696, 16
      %v1754 = vrot.slane %v1752, 5
      %v1755 = vor.u32 %v1751, %v1754
      %v1756 = vrot.slane %v1755, 4
      %v1758 = vshll.u32 %v1697, 16
      %v1760 = vrot.slane %v1758, 5
      %v1761 = vsel %vm272, %v1756, %v1760
      %v1763 = vshrl.u32 %v1698, 16
      %v1765 = vrot.slane %v1763, 4
      %v1766 = vshll.u32 %v1698, 16
      %v1768 = vrot.slane %v1766, 5
      %v1769 = vor.u32 %v1765, %v1768
      %v1770 = vrot.slane %v1769, 4
      %v1772 = vshll.u32 %v1699, 16
      %v1774 = vrot.slane %v1772, 5
      %v1775 = vsel %vm272, %v1770, %v1774
      %v1777 = vshrl.u32 %v1700, 16
      %v1779 = vrot.slane %v1777, 4
      %v1780 = vshll.u32 %v1700, 16
      %v1782 = vrot.slane %v1780, 5
      %v1783 = vor.u32 %v1779, %v1782
      %v1784 = vrot.slane %v1783, 4
      %v1786 = vshll.u32 %v1701, 16
      %v1788 = vrot.slane %v1786, 5
      %v1789 = vsel %vm272, %v1784, %v1788
      %v1791 = vshrl.u32 %v1702, 16
      %v1793 = vrot.slane %v1791, 4
      %v1794 = vshll.u32 %v1702, 16
      %v1796 = vrot.slane %v1794, 5
      %v1797 = vor.u32 %v1793, %v1796
      %v1798 = vrot.slane %v1797, 4
      %v1800 = vshll.u32 %v1703, 16
      %v1802 = vrot.slane %v1800, 5
      %v1803 = vsel %vm272, %v1798, %v1802
      %v1805 = vshrl.u32 %v1704, 16
      %v1807 = vrot.slane %v1805, 4
      %v1808 = vshll.u32 %v1704, 16
      %v1810 = vrot.slane %v1808, 5
      %v1811 = vor.u32 %v1807, %v1810
      %v1812 = vrot.slane %v1811, 4
      %v1814 = vshll.u32 %v1705, 16
      %v1816 = vrot.slane %v1814, 5
      %v1817 = vsel %vm272, %v1812, %v1816
      %s1818 = scalar_lea.vmem %s1, 280
      %v1819 = vld [vmem:[%s1818] sm:$0xff]
      %v1820 = vld [vmem:[%s1818 + $0x8] sm:$0xff]
      %v1821 = vld [vmem:[%s1818 + $0x10] sm:$0xff]
      %v1822 = vld [vmem:[%s1818 + $0x18] sm:$0xff]
      %v1823 = vld [vmem:[%s1818 + $0x20] sm:$0xff]
      %v1824 = vunpack.c.l.b16 %v1719
      %v1825 = vunpack.c.l.b16 %v1733
      %v1826 = vunpack.c.l.b16 %v1747
      %v1827 = vunpack.c.l.b16 %v1761
      %v1828 = vunpack.c.l.b16 %v1775
      %v1829 = vunpack.c.l.b16 %v1789
      %v1830 = vunpack.c.l.b16 %v1803
      %v1831 = vunpack.c.l.b16 %v1817
      %v1832 = vpack.c.b16 %v1825, %v1824
      %v1833 = vpack.c.b16 %v1827, %v1826
      %v1834 = vpack.c.b16 %v1829, %v1828
      %v1835 = vpack.c.b16 %v1831, %v1830
      %v1841 = vunpack.c.l.b16 %v1819
      %v1842 = vunpack.c.h.b16 %v1819
      %v1843 = vunpack.c.l.b16 %v1820
      %v1844 = vunpack.c.h.b16 %v1820
      %v1845 = vunpack.c.l.b16 %v1821
      %v1846 = vunpack.c.h.b16 %v1821
      %v1847 = vunpack.c.l.b16 %v1822
      %v1848 = vunpack.c.h.b16 %v1822
      %v1849 = vunpack.c.l.b16 %v1823
      %v1850 = vunpack.c.h.b16 %v1823
      %v1851 = vpack.c.b16 %v1843, %v1841
      %v1852 = vpack.c.b16 %v1844, %v1842
      %v1853 = vpack.c.b16 %v1847, %v1845
      %v1854 = vpack.c.b16 %v1848, %v1846
      %v1855 = vpack.c.b16 %v1849, %v1849
      %v1856 = vpack.c.b16 %v1850, %v1850
      %v1862 = vsel %vm428, %v1832, 0
      %v1865 = vsel %vm428, %v1833, 0
      %v1868 = vsel %vm428, %v1834, 0
      %v1871 = vsel %vm428, %v1835, 0
      %v1874 = vsel %vm441, %v1855, 0
      %v1877 = vsel %vm441, %v1856, 0
      %1879 = vmatprep.subr.bf16.mxu0 %v1852
      %1880 = vmatpush1.bf16.msra.mxu0 %v1851
      %1881 = vmatprep.subr.bf16.mxu0 %v1854
      %1882 = vmatpush1.bf16.msra.mxu0 %v1853
      %1883 = vmatprep.subr.bf16.mxu0 %v1877
      %1884 = vmatpush1.bf16.msra.mxu0 %v1874
      %1885 = vmatprep.subr.bf16.mxu0 0
      %1886 = vmatpush1.bf16.msra.mxu0 0
      %1887 = vmatprep.subr.bf16.mxu0 0
      %1888 = vmatpush1.bf16.msra.mxu0 0
      %1889 = vmatprep.subr.bf16.mxu0 0
      %1890 = vmatpush1.bf16.msra.mxu0 0
      %1891 = vmatprep.subr.bf16.mxu0 0
      %1892 = vmatpush1.bf16.msra.mxu0 0
      %1893 = vmatprep.subr.bf16.mxu0 0
      %1894 = vmatpush1.bf16.msra.mxu0 0
      %1895 = vmatprep.subr.bf16.mxu0 0
      %1896 = vmatpush1.bf16.msra.mxu0 0
      %1897 = vmatprep.subr.bf16.mxu0 0
      %1898 = vmatpush1.bf16.msra.mxu0 0
      %1899 = vmatprep.subr.bf16.mxu0 0
      %1900 = vmatpush1.bf16.msra.mxu0 0
      %1901 = vmatprep.subr.bf16.mxu0 0
      %1902 = vmatpush1.bf16.msra.mxu0 0
      %1903 = vmatprep.subr.bf16.mxu0 0
      %1904 = vmatpush1.bf16.msra.mxu0 0
      %1905 = vmatprep.subr.bf16.mxu0 0
      %1906 = vmatpush1.bf16.msra.mxu0 0
      %1907 = vmatprep.subr.bf16.mxu0 0
      %1908 = vmatpush1.bf16.msra.mxu0 0
      %1909 = vmatprep.subr.bf16.mxu0 0
      %1910 = vmatpush1.bf16.msra.mxu0 0
      %1911 = vmatprep.mubr.bf16.mxu0 0
      %1912 = vmatmul.mubr.bf16.gmra.mrb[0].mxu0 %v1862
      %v1913 = vpop.f32.mrb[0].mxu0
      %v1914 = vadd.f32 0.0, %v1913
      %v1915 = vpop.f32.mrb[0].mxu0
      %v1916 = vadd.f32 0.0, %v1915
      %v1917 = vpop.f32.mrb[0].mxu0
      %v1918 = vadd.f32 0.0, %v1917
      %v1919 = vpop.f32.mrb[0].mxu0
      %v1920 = vadd.f32 0.0, %v1919
      %1921 = vmatprep.mubr.bf16.mxu0 0
      %1922 = vmatmul.mubr.bf16.gmra.mrb[0].mxu0 %v1865
      %v1923 = vpop.f32.mrb[0].mxu0
      %v1924 = vadd.f32 0.0, %v1923
      %v1925 = vpop.f32.mrb[0].mxu0
      %v1926 = vadd.f32 0.0, %v1925
      %v1927 = vpop.f32.mrb[0].mxu0
      %v1928 = vadd.f32 0.0, %v1927
      %v1929 = vpop.f32.mrb[0].mxu0
      %v1930 = vadd.f32 0.0, %v1929
      %1931 = vmatprep.mubr.bf16.mxu0 0
      %1932 = vmatmul.mubr.bf16.gmra.mrb[0].mxu0 %v1868
      %v1933 = vpop.f32.mrb[0].mxu0
      %v1934 = vadd.f32 0.0, %v1933
      %v1935 = vpop.f32.mrb[0].mxu0
      %v1936 = vadd.f32 0.0, %v1935
      %v1937 = vpop.f32.mrb[0].mxu0
      %v1938 = vadd.f32 0.0, %v1937
      %v1939 = vpop.f32.mrb[0].mxu0
      %v1940 = vadd.f32 0.0, %v1939
      %1941 = vmatprep.mubr.bf16.mxu0 0
      %1942 = vmatmul.mubr.bf16.gmra.mrb[0].mxu0 %v1871
      %v1943 = vpop.f32.mrb[0].mxu0
      %v1944 = vadd.f32 0.0, %v1943
      %v1945 = vpop.f32.mrb[0].mxu0
      %v1946 = vadd.f32 0.0, %v1945
      %v1947 = vpop.f32.mrb[0].mxu0
      %v1948 = vadd.f32 0.0, %v1947
      %v1949 = vpop.f32.mrb[0].mxu0
      %v1950 = vadd.f32 0.0, %v1949
      %1951 = vdwg.mxu0
      %v1952 = vadd.f32 %v1674, %v1914
      %v1953 = vadd.f32 %v1675, %v1916
      %v1954 = vadd.f32 %v1676, %v1918
      %v1955 = vadd.f32 %v1677, %v1920
      %v1956 = vadd.f32 %v1678, %v1924
      %v1957 = vadd.f32 %v1679, %v1926
      %v1958 = vadd.f32 %v1680, %v1928
      %v1959 = vadd.f32 %v1681, %v1930
      %v1960 = vadd.f32 %v1682, %v1934
      %v1961 = vadd.f32 %v1683, %v1936
      %v1962 = vadd.f32 %v1684, %v1938
      %v1963 = vadd.f32 %v1685, %v1940
      %v1964 = vadd.f32 %v1686, %v1944
      %v1965 = vadd.f32 %v1687, %v1946
      %v1966 = vadd.f32 %v1688, %v1948
      %v1967 = vadd.f32 %v1689, %v1950
      %v1968 = vld [vmem:[%s1523] sm:$0xe]
      %v1969 = vld [vmem:[%s1523 + $0x8] sm:$0xe]
      %v1970 = vld [vmem:[%s1523 + $0x10] sm:$0xe]
      %v1971 = vld [vmem:[%s1523 + $0x18] sm:$0xe]
      %v1972 = vld [vmem:[%s1523 + $0x20] sm:$0xe]
      %v1973 = vld [vmem:[%s1523 + $0x28] sm:$0xe]
      %v1974 = vld [vmem:[%s1523 + $0x30] sm:$0xe]
      %v1975 = vld [vmem:[%s1523 + $0x38] sm:$0xe]
      %v1992 = vrot.slane %v1968, 5
      %v1993 = vrot.slane %v1992, 4
      %v1994 = vrot.slane %v1691, 5
      %v1995 = vsel %vm683, %v1993, %v1994
      %v1996 = vrot.slane %v1969, 5
      %v1997 = vrot.slane %v1996, 4
      %v1998 = vrot.slane %v1693, 5
      %v1999 = vsel %vm683, %v1997, %v1998
      %v2000 = vrot.slane %v1970, 5
      %v2001 = vrot.slane %v2000, 4
      %v2002 = vrot.slane %v1695, 5
      %v2003 = vsel %vm683, %v2001, %v2002
      %v2004 = vrot.slane %v1971, 5
      %v2005 = vrot.slane %v2004, 4
      %v2006 = vrot.slane %v1697, 5
      %v2007 = vsel %vm683, %v2005, %v2006
      %v2008 = vrot.slane %v1972, 5
      %v2009 = vrot.slane %v2008, 4
      %v2010 = vrot.slane %v1699, 5
      %v2011 = vsel %vm683, %v2009, %v2010
      %v2012 = vrot.slane %v1973, 5
      %v2013 = vrot.slane %v2012, 4
      %v2014 = vrot.slane %v1701, 5
      %v2015 = vsel %vm683, %v2013, %v2014
      %v2016 = vrot.slane %v1974, 5
      %v2017 = vrot.slane %v2016, 4
      %v2018 = vrot.slane %v1703, 5
      %v2019 = vsel %vm683, %v2017, %v2018
      %v2020 = vrot.slane %v1975, 5
      %v2021 = vrot.slane %v2020, 4
      %v2022 = vrot.slane %v1705, 5
      %v2023 = vsel %vm683, %v2021, %v2022
      %s2024 = scalar_lea.vmem %s1, 320
      %v2025 = vld [vmem:[%s2024] sm:$0xff]
      %v2026 = vld [vmem:[%s2024 + $0x8] sm:$0xff]
      %v2027 = vld [vmem:[%s2024 + $0x10] sm:$0xff]
      %v2028 = vld [vmem:[%s2024 + $0x18] sm:$0xff]
      %v2029 = vld [vmem:[%s2024 + $0x20] sm:$0xff]
      %v2030 = vunpack.c.l.b16 %v1995
      %v2031 = vunpack.c.l.b16 %v1999
      %v2032 = vunpack.c.l.b16 %v2003
      %v2033 = vunpack.c.l.b16 %v2007
      %v2034 = vunpack.c.l.b16 %v2011
      %v2035 = vunpack.c.l.b16 %v2015
      %v2036 = vunpack.c.l.b16 %v2019
      %v2037 = vunpack.c.l.b16 %v2023
      %v2038 = vpack.c.b16 %v2031, %v2030
      %v2039 = vpack.c.b16 %v2033, %v2032
      %v2040 = vpack.c.b16 %v2035, %v2034
      %v2041 = vpack.c.b16 %v2037, %v2036
      %v2047 = vunpack.c.l.b16 %v2025
      %v2048 = vunpack.c.h.b16 %v2025
      %v2049 = vunpack.c.l.b16 %v2026
      %v2050 = vunpack.c.h.b16 %v2026
      %v2051 = vunpack.c.l.b16 %v2027
      %v2052 = vunpack.c.h.b16 %v2027
      %v2053 = vunpack.c.l.b16 %v2028
      %v2054 = vunpack.c.h.b16 %v2028
      %v2055 = vunpack.c.l.b16 %v2029
      %v2056 = vunpack.c.h.b16 %v2029
      %v2057 = vpack.c.b16 %v2049, %v2047
      %v2058 = vpack.c.b16 %v2050, %v2048
      %v2059 = vpack.c.b16 %v2053, %v2051
      %v2060 = vpack.c.b16 %v2054, %v2052
      %v2061 = vpack.c.b16 %v2055, %v2055
      %v2062 = vpack.c.b16 %v2056, %v2056
      %v2068 = vsel %vm428, %v2038, 0
      %v2071 = vsel %vm428, %v2039, 0
      %v2074 = vsel %vm428, %v2040, 0
      %v2077 = vsel %vm428, %v2041, 0
      %v2080 = vsel %vm441, %v2061, 0
      %v2083 = vsel %vm441, %v2062, 0
      %2085 = vmatprep.subr.bf16.mxu0 %v2058
      %2086 = vmatpush1.bf16.msra.mxu0 %v2057
      %2087 = vmatprep.subr.bf16.mxu0 %v2060
      %2088 = vmatpush1.bf16.msra.mxu0 %v2059
      %2089 = vmatprep.subr.bf16.mxu0 %v2083
      %2090 = vmatpush1.bf16.msra.mxu0 %v2080
      %2091 = vmatprep.subr.bf16.mxu0 0
      %2092 = vmatpush1.bf16.msra.mxu0 0
      %2093 = vmatprep.subr.bf16.mxu0 0
      %2094 = vmatpush1.bf16.msra.mxu0 0
      %2095 = vmatprep.subr.bf16.mxu0 0
      %2096 = vmatpush1.bf16.msra.mxu0 0
      %2097 = vmatprep.subr.bf16.mxu0 0
      %2098 = vmatpush1.bf16.msra.mxu0 0
      %2099 = vmatprep.subr.bf16.mxu0 0
      %2100 = vmatpush1.bf16.msra.mxu0 0
      %2101 = vmatprep.subr.bf16.mxu0 0
      %2102 = vmatpush1.bf16.msra.mxu0 0
      %2103 = vmatprep.subr.bf16.mxu0 0
      %2104 = vmatpush1.bf16.msra.mxu0 0
      %2105 = vmatprep.subr.bf16.mxu0 0
      %2106 = vmatpush1.bf16.msra.mxu0 0
      %2107 = vmatprep.subr.bf16.mxu0 0
      %2108 = vmatpush1.bf16.msra.mxu0 0
      %2109 = vmatprep.subr.bf16.mxu0 0
      %2110 = vmatpush1.bf16.msra.mxu0 0
      %2111 = vmatprep.subr.bf16.mxu0 0
      %2112 = vmatpush1.bf16.msra.mxu0 0
      %2113 = vmatprep.subr.bf16.mxu0 0
      %2114 = vmatpush1.bf16.msra.mxu0 0
      %2115 = vmatprep.subr.bf16.mxu0 0
      %2116 = vmatpush1.bf16.msra.mxu0 0
      %2117 = vmatprep.mubr.bf16.mxu0 0
      %2118 = vmatmul.mubr.bf16.gmra.mrb[0].mxu0 %v2068
      %v2119 = vpop.f32.mrb[0].mxu0
      %v2120 = vadd.f32 0.0, %v2119
      %v2121 = vpop.f32.mrb[0].mxu0
      %v2122 = vadd.f32 0.0, %v2121
      %v2123 = vpop.f32.mrb[0].mxu0
      %v2124 = vadd.f32 0.0, %v2123
      %v2125 = vpop.f32.mrb[0].mxu0
      %v2126 = vadd.f32 0.0, %v2125
      %2127 = vmatprep.mubr.bf16.mxu0 0
      %2128 = vmatmul.mubr.bf16.gmra.mrb[0].mxu0 %v2071
      %v2129 = vpop.f32.mrb[0].mxu0
      %v2130 = vadd.f32 0.0, %v2129
      %v2131 = vpop.f32.mrb[0].mxu0
      %v2132 = vadd.f32 0.0, %v2131
      %v2133 = vpop.f32.mrb[0].mxu0
      %v2134 = vadd.f32 0.0, %v2133
      %v2135 = vpop.f32.mrb[0].mxu0
      %v2136 = vadd.f32 0.0, %v2135
      %2137 = vmatprep.mubr.bf16.mxu0 0
      %2138 = vmatmul.mubr.bf16.gmra.mrb[0].mxu0 %v2074
      %v2139 = vpop.f32.mrb[0].mxu0
      %v2140 = vadd.f32 0.0, %v2139
      %v2141 = vpop.f32.mrb[0].mxu0
      %v2142 = vadd.f32 0.0, %v2141
      %v2143 = vpop.f32.mrb[0].mxu0
      %v2144 = vadd.f32 0.0, %v2143
      %v2145 = vpop.f32.mrb[0].mxu0
      %v2146 = vadd.f32 0.0, %v2145
      %2147 = vmatprep.mubr.bf16.mxu0 0
      %2148 = vmatmul.mubr.bf16.gmra.mrb[0].mxu0 %v2077
      %v2149 = vpop.f32.mrb[0].mxu0
      %v2150 = vadd.f32 0.0, %v2149
      %v2151 = vpop.f32.mrb[0].mxu0
      %v2152 = vadd.f32 0.0, %v2151
      %v2153 = vpop.f32.mrb[0].mxu0
      %v2154 = vadd.f32 0.0, %v2153
      %v2155 = vpop.f32.mrb[0].mxu0
      %v2156 = vadd.f32 0.0, %v2155
      %2157 = vdwg.mxu0
      %v2158 = vadd.f32 %v1952, %v2120
      %v2159 = vadd.f32 %v1953, %v2122
      %v2160 = vadd.f32 %v1954, %v2124
      %v2161 = vadd.f32 %v1955, %v2126
      %v2162 = vadd.f32 %v1956, %v2130
      %v2163 = vadd.f32 %v1957, %v2132
      %v2164 = vadd.f32 %v1958, %v2134
      %v2165 = vadd.f32 %v1959, %v2136
      %v2166 = vadd.f32 %v1960, %v2140
      %v2167 = vadd.f32 %v1961, %v2142
      %v2168 = vadd.f32 %v1962, %v2144
      %v2169 = vadd.f32 %v1963, %v2146
      %v2170 = vadd.f32 %v1964, %v2150
      %v2171 = vadd.f32 %v1965, %v2152
      %v2172 = vadd.f32 %v1966, %v2154
      %v2173 = vadd.f32 %v1967, %v2156
      %v2174 = vld [vmem:[%s2] sm:$0x3]
      %v2176 = vlaneseq
      %v2177 = vshrl.u32 %v2176, 7
      %v2178 = vsub.s32 0, %v2177
      %v2179 = vrot.slane %v2174, %v2178
      %v2180 = vlaneseq
      %v2181 = vshrl.u32 %v2180, 7
      %v2182 = vsub.s32 1, %v2181
      %v2183 = vrot.slane %v2174, %v2182
      %v2186 = vadd.f32 %v2158, %v2179
      %v2187 = vadd.f32 %v2159, %v2183
      %v2188 = vadd.f32 %v2160, %v2179
      %v2189 = vadd.f32 %v2161, %v2183
      %v2190 = vadd.f32 %v2162, %v2179
      %v2191 = vadd.f32 %v2163, %v2183
      %v2192 = vadd.f32 %v2164, %v2179
      %v2193 = vadd.f32 %v2165, %v2183
      %v2194 = vadd.f32 %v2166, %v2179
      %v2195 = vadd.f32 %v2167, %v2183
      %v2196 = vadd.f32 %v2168, %v2179
      %v2197 = vadd.f32 %v2169, %v2183
      %v2198 = vadd.f32 %v2170, %v2179
      %v2199 = vadd.f32 %v2171, %v2183
      %v2200 = vadd.f32 %v2172, %v2179
      %v2201 = vadd.f32 %v2173, %v2183
      %vm2202 = vcmp.ge.f32.partialorder %v2186, 0.0
      %vm2203 = vcmp.ge.f32.partialorder %v2187, 0.0
      %vm2204 = vcmp.ge.f32.partialorder %v2188, 0.0
      %vm2205 = vcmp.ge.f32.partialorder %v2189, 0.0
      %vm2206 = vcmp.ge.f32.partialorder %v2190, 0.0
      %vm2207 = vcmp.ge.f32.partialorder %v2191, 0.0
      %vm2208 = vcmp.ge.f32.partialorder %v2192, 0.0
      %vm2209 = vcmp.ge.f32.partialorder %v2193, 0.0
      %vm2210 = vcmp.ge.f32.partialorder %v2194, 0.0
      %vm2211 = vcmp.ge.f32.partialorder %v2195, 0.0
      %vm2212 = vcmp.ge.f32.partialorder %v2196, 0.0
      %vm2213 = vcmp.ge.f32.partialorder %v2197, 0.0
      %vm2214 = vcmp.ge.f32.partialorder %v2198, 0.0
      %vm2215 = vcmp.ge.f32.partialorder %v2199, 0.0
      %vm2216 = vcmp.ge.f32.partialorder %v2200, 0.0
      %vm2217 = vcmp.ge.f32.partialorder %v2201, 0.0
      %v2218 = vmul.f32 %v2186, 0.2
      %v2219 = vmul.f32 %v2187, 0.2
      %v2220 = vmul.f32 %v2188, 0.2
      %v2221 = vmul.f32 %v2189, 0.2
      %v2222 = vmul.f32 %v2190, 0.2
      %v2223 = vmul.f32 %v2191, 0.2
      %v2224 = vmul.f32 %v2192, 0.2
      %v2225 = vmul.f32 %v2193, 0.2
      %v2226 = vmul.f32 %v2194, 0.2
      %v2227 = vmul.f32 %v2195, 0.2
      %v2228 = vmul.f32 %v2196, 0.2
      %v2229 = vmul.f32 %v2197, 0.2
      %v2230 = vmul.f32 %v2198, 0.2
      %v2231 = vmul.f32 %v2199, 0.2
      %v2232 = vmul.f32 %v2200, 0.2
      %v2233 = vmul.f32 %v2201, 0.2
      %v2234 = vsel %vm2202, %v2186, %v2218
      %v2235 = vsel %vm2203, %v2187, %v2219
      %v2236 = vsel %vm2204, %v2188, %v2220
      %v2237 = vsel %vm2205, %v2189, %v2221
      %v2238 = vsel %vm2206, %v2190, %v2222
      %v2239 = vsel %vm2207, %v2191, %v2223
      %v2240 = vsel %vm2208, %v2192, %v2224
      %v2241 = vsel %vm2209, %v2193, %v2225
      %v2242 = vsel %vm2210, %v2194, %v2226
      %v2243 = vsel %vm2211, %v2195, %v2227
      %v2244 = vsel %vm2212, %v2196, %v2228
      %v2245 = vsel %vm2213, %v2197, %v2229
      %v2246 = vsel %vm2214, %v2198, %v2230
      %v2247 = vsel %vm2215, %v2199, %v2231
      %v2248 = vsel %vm2216, %v2200, %v2232
      %v2249 = vsel %vm2217, %v2201, %v2233
      %v2250 = vpack.c.bf16 %v2236, %v2234
      %v2251 = vpack.c.bf16 %v2237, %v2235
      %v2252 = vpack.c.bf16 %v2240, %v2238
      %v2253 = vpack.c.bf16 %v2241, %v2239
      %v2254 = vpack.c.bf16 %v2244, %v2242
      %v2255 = vpack.c.bf16 %v2245, %v2243
      %v2256 = vpack.c.bf16 %v2248, %v2246
      %v2257 = vpack.c.bf16 %v2249, %v2247
      %v2266 = vunpack.c.l.b16 %v2250
      %v2267 = vunpack.c.l.b16 %v2251
      %v2268 = vunpack.c.h.b16 %v2250
      %v2269 = vunpack.c.h.b16 %v2251
      %v2270 = vunpack.c.l.b16 %v2252
      %v2271 = vunpack.c.l.b16 %v2253
      %v2272 = vunpack.c.h.b16 %v2252
      %v2273 = vunpack.c.h.b16 %v2253
      %v2274 = vunpack.c.l.b16 %v2254
      %v2275 = vunpack.c.l.b16 %v2255
      %v2276 = vunpack.c.h.b16 %v2254
      %v2277 = vunpack.c.h.b16 %v2255
      %v2278 = vunpack.c.l.b16 %v2256
      %v2279 = vunpack.c.l.b16 %v2257
      %v2280 = vunpack.c.h.b16 %v2256
      %v2281 = vunpack.c.h.b16 %v2257
      %v2282 = vpack.c.b16 %v2267, %v2266
      %v2283 = vpack.c.b16 %v2269, %v2268
      %v2284 = vpack.c.b16 %v2271, %v2270
      %v2285 = vpack.c.b16 %v2273, %v2272
      %v2286 = vpack.c.b16 %v2275, %v2274
      %v2287 = vpack.c.b16 %v2277, %v2276
      %v2288 = vpack.c.b16 %v2279, %v2278
      %v2289 = vpack.c.b16 %v2281, %v2280
      %2298 = vst [vmem:[%s234] sm:$0xff] %v2282
      %2299 = vst [vmem:[%s234 + $0x8] sm:$0xff] %v2283
      %2300 = vst [vmem:[%s234 + $0x10] sm:$0xff] %v2284
      %2301 = vst [vmem:[%s234 + $0x18] sm:$0xff] %v2285
      %2302 = vst [vmem:[%s234 + $0x20] sm:$0xff] %v2286
      %2303 = vst [vmem:[%s234 + $0x28] sm:$0xff] %v2287
      %2304 = vst [vmem:[%s234 + $0x30] sm:$0xff] %v2288
      %2305 = vst [vmem:[%s234 + $0x38] sm:$0xff] %v2289
      %v2306 = vadd.f32 %v2234, %v2236
      %v2307 = vadd.f32 %v2306, %v2238
      %v2308 = vadd.f32 %v2307, %v2240
      %v2309 = vadd.f32 %v2308, %v2242
      %v2310 = vadd.f32 %v2309, %v2244
      %v2311 = vadd.f32 %v2310, %v2246
      %v2312 = vadd.f32 %v2311, %v2248
      %v2313 = vrot.slane %v2312, 4
      %v2314 = vadd.f32 %v2312, %v2313
      %v2315 = vrot.slane %v2314, 2
      %v2316 = vadd.f32 %v2314, %v2315
      %v2317 = vrot.slane %v2316, 1
      %v2318 = vadd.f32 %v2316, %v2317
      %v2319 = vadd.f32 %v2235, %v2237
      %v2320 = vadd.f32 %v2319, %v2239
      %v2321 = vadd.f32 %v2320, %v2241
      %v2322 = vadd.f32 %v2321, %v2243
      %v2323 = vadd.f32 %v2322, %v2245
      %v2324 = vadd.f32 %v2323, %v2247
      %v2325 = vadd.f32 %v2324, %v2249
      %v2326 = vrot.slane %v2325, 4
      %v2327 = vadd.f32 %v2325, %v2326
      %v2328 = vrot.slane %v2327, 2
      %v2329 = vadd.f32 %v2327, %v2328
      %v2330 = vrot.slane %v2329, 1
      %v2331 = vadd.f32 %v2329, %v2330
      %v2334 = vcombine.low %v2318, %v2331
      %v2336 = vunpack.c.l.s4 1966171168
      %v2337 = vunpack.c.0.s8 %v2336
      %v2338 = vlaneseq
      %v2339 = vshrl.u32 %v2338, 7
      %v2340 = vsub.s32 %v2337, %v2339
      %v2341 = vrot.slane %v2334, %v2340
      %v2343 = vunpack.c.l.s4 1966171168
      %v2344 = vunpack.c.0.s8 %v2343
      %v2345 = vlaneseq
      %v2346 = vshrl.u32 %v2345, 7
      %v2347 = vsub.s32 %v2344, %v2346
      %v2348 = vrot.slane %v2341, %v2347
      %v2350 = vlaneseq
      %vm2351 = vcmp.ge.s32.totalorder %v2350, 0
      %vm2352 = vcmp.lt.s32.totalorder %v2350, 256
      %vm2353 = vmand %vm2351, %vm2352
      %2354 = vst.msk [vmem:[%s243] sm:$0x3] %vm2353, %v2348
      %s2355 = smul.u32 8, %s21
      %p2356 = scmp.lt.s32.totalorder %s20, 1
      %s2357 = scalar_select %p2356, %s20, 1
      %p2358 = scmp.lt.s32.totalorder %s2355, 7
      %s2359 = scalar_select %p2358, %s2355, 7
      %s2360 = smul.addr %s2359, 2
      %s2361 = smul.addr %s2357, 16
      %s2362 = sadd.s32 %s2360, %s2361
      %s2363 = smul.addr %s2362, 4
      %s2364 = scalar_lea.vmem %s3, %s2363
      %p2365 = scmp.lt.s32.totalorder %s20, 1
      %s2366 = scalar_select %p2365, %s20, 1
      %p2367 = scmp.lt.s32.totalorder %s21, 0
      %s2368 = scalar_select %p2367, %s21, 0
      %s2369 = smul.addr %s2368, 2
      %s2370 = smul.addr %s2366, 2
      %s2371 = sadd.s32 %s2369, %s2370
      %s2372 = scalar_lea.vmem %s4, %s2371
      // Predicated region
      $region33: #{conv3d_for_d.2} parent=31 // pred_check
        %p2373 = pneg %p116
      $region34: #{conv3d_for_d.2} parent=31 // pred_check_branch
        %2375 = sbr.rel (%p2373) target = $region36
      $region35: #{conv3d_for_d.2} parent=31 // pred_region
        %s2376 = smul.u32 8, %s21
      $region36: #{conv3d_for_d.2} parent=31 // pred_fallthru
        _
      // Predicated region
      $region37: #{conv3d_for_d.2} parent=31 // pred_check
        %p2377 = pneg %p144
      $region38: #{conv3d_for_d.2} parent=31 // pred_check_branch
        %2379 = sbr.rel (%p2377) target = $region40
      $region39: #{conv3d_for_d.2} parent=31 // pred_region
        _
      $region40: #{conv3d_for_d.2} parent=31 // pred_fallthru
        _
    $region32: #{conv3d_for_d.2} parent=5 // pred_fallthru
      _
    %p2380 = scmp.le.s32.totalorder 2, %s11
    // Predicated region
    $region41: #{conv3d_for_d.2} parent=5 // pred_check
      %p2381 = pneg %p2380
    $region42: #{conv3d_for_d.2} parent=5 // pred_check_branch
      %2383 = sbr.rel (%p2381) target = $region44
    $region43: #{conv3d_for_d.2} parent=5 // pred_region
      %s2384 = ssub.s32 %s11, 2
      // Predicated region
      $region45: #{conv3d_for_d.2} parent=43 // pred_check
        %p2385 = pneg %p122
      $region46: #{conv3d_for_d.2} parent=43 // pred_check_branch
        %2387 = sbr.rel (%p2385) target = $region48
      $region47: #{conv3d_for_d.2} parent=43 // pred_region
        %s2388 = smul.u32 8, %s23
        %p2389 = scmp.lt.s32.totalorder %s22, 1
        %s2390 = scalar_select %p2389, %s22, 1
        %p2391 = scmp.lt.s32.totalorder %s2388, 7
        %s2392 = scalar_select %p2391, %s2388, 7
        %s2393 = smul.addr %s2392, 2
        %s2394 = smul.addr %s2390, 16
        %s2395 = sadd.s32 %s2393, %s2394
        %s2396 = smul.addr %s2395, 4
        %s2397 = scalar_lea.vmem %s3, %s2396
      $region48: #{conv3d_for_d.2} parent=43 // pred_fallthru
        _
      // Predicated region
      $region49: #{conv3d_for_d.2} parent=43 // pred_check
        %p2398 = pneg %p150
      $region50: #{conv3d_for_d.2} parent=43 // pred_check_branch
        %2400 = sbr.rel (%p2398) target = $region52
      $region51: #{conv3d_for_d.2} parent=43 // pred_region
        %p2401 = scmp.lt.s32.totalorder %s22, 1
        %s2402 = scalar_select %p2401, %s22, 1
        %p2403 = scmp.lt.s32.totalorder %s23, 0
        %s2404 = scalar_select %p2403, %s23, 0
        %s2405 = smul.addr %s2404, 2
        %s2406 = smul.addr %s2402, 2
        %s2407 = sadd.s32 %s2405, %s2406
        %s2408 = scalar_lea.vmem %s4, %s2407
      $region52: #{conv3d_for_d.2} parent=43 // pred_fallthru
        _
    $region44: #{conv3d_for_d.2} parent=5 // pred_fallthru
      _
  $region6: #{conv3d_for_d.2} parent=0 // loop_footer
    %s15 = sadd.s32 1, %s11
  $region7: #{conv3d_for_d.2} parent=0 // loop_footer_branch
    %10 = sbr.rel target = $region3
  $region8: #{conv3d_for_d.2} parent=0 // loop_exit
    _

</llo_original>
